<compile_context>
chip_gen: v7x
topology: tpu7x:2x2x1
jax: 0.10.0
libtpu: 0.0.40
codegen_flags: <defaults>
</compile_context>

<pallas_src>
import functools
import math

import jax
import jax.numpy as jnp
from jax import lax
from jax.experimental import pallas as pl
from jax.experimental.pallas import tpu as pltpu

EPS = 1e-5


def _layer_norm_rows(z, gamma, beta):
    """Reference LayerNorm: unbiased (N-1) var, eps on var, scalar gamma/beta."""
    d = z.shape[-1]
    mean = jnp.mean(z, axis=-1, keepdims=True)
    var = jnp.sum((z - mean) ** 2, axis=-1, keepdims=True) * (1.0 / (d - 1))
    scale = gamma * lax.rsqrt(var + EPS)          # folded scale, EUP rsqrt
    return (z - mean) * scale + beta


def _encoder_block_kernel(x_ref, wq_ref, wk_ref, wv_ref, wo_ref,
                          w1_ref, b1_ref, w2_ref, b2_ref, ln_ref, o_ref,
                          *, num_heads, d_k):
    x = x_ref[...].astype(jnp.float32)            # (S, D) residual kept in f32
    xb = x.astype(jnp.bfloat16)                   # bf16 MXU operand

    # ---------------- Multi-head attention sublayer ----------------
    inv_sqrt_dk = 1.0 / math.sqrt(d_k)
    # Fold 1/sqrt(d_k) into q once: one (S,D) multiply instead of H (S,S) ones.
    q = (jnp.dot(xb, wq_ref[...], preferred_element_type=jnp.float32)
         * inv_sqrt_dk).astype(jnp.bfloat16)
    k = jnp.dot(xb, wk_ref[...],
                preferred_element_type=jnp.float32).astype(jnp.bfloat16)
    v = jnp.dot(xb, wv_ref[...],
                preferred_element_type=jnp.float32).astype(jnp.bfloat16)

    attn = None
    for h in range(num_heads):                    # static unroll over heads
        sl = slice(h * d_k, (h + 1) * d_k)
        qh, kh, vh = q[:, sl], k[:, sl], v[:, sl]
        # scores = qh @ kh.T  (contract the d_k axis of both), f32 accumulate.
        s = lax.dot_general(qh, kh, (((1,), (1,)), ((), ())),
                            preferred_element_type=jnp.float32)
        # NOTE: reference calls masked_fill without assignment -> src_mask is
        # a no-op on the forward pass; faithfully skipped here.
        s = s - jnp.max(s, axis=-1, keepdims=True)
        p = jnp.exp(s)                            # unnormalized probabilities
        l = jnp.sum(p, axis=-1, keepdims=True)    # (S, 1) row sums
        # attention dropout: identity in eval mode.
        ctx = jnp.dot(p.astype(jnp.bfloat16), vh,
                      preferred_element_type=jnp.float32)
        # Deferred normalization on the narrow (S, d_k) tile via EUP reciprocal.
        ctx = ctx * pl.reciprocal(l, approx=True)
        # Per-head output projection against the sublane-aligned wo row slice
        # (no lane-axis concatenate of heads, no extra ctx liveness).
        part = jnp.dot(ctx.astype(jnp.bfloat16), wo_ref[sl, :],
                       preferred_element_type=jnp.float32)
        attn = part if attn is None else attn + part

    # residual dropout: identity in eval mode.
    # TODO(synk): training-mode dropout would need pltpu.prng_seed /
    # pltpu.prng_random_bits; only eval semantics are implemented.
    x1 = _layer_norm_rows(x + attn, ln_ref[0], ln_ref[1])     # (S, D) f32

    # ---------------- Feed-forward sublayer ----------------
    x1b = x1.astype(jnp.bfloat16)
    h1 = jnp.dot(x1b, w1_ref[...], preferred_element_type=jnp.float32)
    h1 = jnp.maximum(h1 + b1_ref[...], 0.0)       # ReLU
    # FFN dropout (after ReLU): identity in eval mode.
    y = jnp.dot(h1.astype(jnp.bfloat16), w2_ref[...],
                preferred_element_type=jnp.float32) + b2_ref[...]
    # residual dropout: identity in eval mode.
    o_ref[...] = _layer_norm_rows(x1 + y, ln_ref[2], ln_ref[3]
                                  ).astype(o_ref.dtype)


def encoder_block(x, src_mask, params, *, num_heads):
    """Fused EncoderBlock forward (one pallas_call).

    src_mask is a forward-pass no-op in the reference (masked_fill result
    discarded); accepted for signature parity only.
    """
    del src_mask
    B, S, D = x.shape
    assert D % num_heads == 0
    d_ff = params["w1"].shape[1]
    bf16 = jnp.bfloat16

    # Scalar LayerNorm params for both sublayers, read from SMEM in-kernel.
    ln = jnp.array([params["ln1_gamma"], params["ln1_beta"],
                    params["ln2_gamma"], params["ln2_beta"]],
                   dtype=jnp.float32)

    kernel = functools.partial(_encoder_block_kernel,
                               num_heads=num_heads, d_k=D // num_heads)
    w_dd = pl.BlockSpec((D, D), lambda b: (0, 0))          # resident weights

    return pl.pallas_call(
        kernel,
        out_shape=jax.ShapeDtypeStruct((B, S, D), x.dtype),
        grid_spec=pltpu.PrefetchScalarGridSpec(
            num_scalar_prefetch=0,
            grid=(B,),
            in_specs=[
                pl.BlockSpec((None, S, D), lambda b: (b, 0, 0)),    # x slab
                w_dd, w_dd, w_dd, w_dd,                             # wq wk wv wo
                pl.BlockSpec((D, d_ff), lambda b: (0, 0)),          # w1
                pl.BlockSpec((1, d_ff), lambda b: (0, 0)),          # b1
                pl.BlockSpec((d_ff, D), lambda b: (0, 0)),          # w2
                pl.BlockSpec((1, D),    lambda b: (0, 0)),          # b2
                pl.BlockSpec(memory_space=pltpu.MemorySpace.SMEM),  # ln scalars
            ],
            out_specs=pl.BlockSpec((None, S, D), lambda b: (b, 0, 0)),
        ),
        compiler_params=pltpu.CompilerParams(
            dimension_semantics=("parallel",)),
    )(x,
      params["wq"].astype(bf16), params["wk"].astype(bf16),
      params["wv"].astype(bf16), params["wo"].astype(bf16),
      params["w1"].astype(bf16),
      params["b1"].reshape(1, d_ff).astype(jnp.float32),
      params["w2"].astype(bf16),
      params["b2"].reshape(1, D).astype(jnp.float32),
      ln)


def _reference_encoder_block(x, params, *, num_heads):
    """Pure-JAX eval-mode reference (full f32 precision)."""
    B, S, D = x.shape
    d_k = D // num_heads
    hp = jax.lax.Precision.HIGHEST

    def layer_norm(z, gamma, beta):
        mean = jnp.mean(z, axis=-1, keepdims=True)
        var = jnp.sum((z - mean) ** 2, axis=-1, keepdims=True) / (D - 1)
        return (z - mean) * gamma / jnp.sqrt(var + EPS) + beta

    q = jnp.einsum("bsd,de->bse", x, params["wq"], precision=hp)
    k = jnp.einsum("bsd,de->bse", x, params["wk"], precision=hp)
    v = jnp.einsum("bsd,de->bse", x, params["wv"], precision=hp)
    q = q.reshape(B, S, num_heads, d_k).transpose(0, 2, 1, 3)
    k = k.reshape(B, S, num_heads, d_k).transpose(0, 2, 1, 3)
    v = v.reshape(B, S, num_heads, d_k).transpose(0, 2, 1, 3)
    s = jnp.einsum("bhqd,bhkd->bhqk", q, k, precision=hp) / math.sqrt(d_k)
    p = jax.nn.softmax(s, axis=-1)
    ctx = jnp.einsum("bhqk,bhkd->bhqd", p, v, precision=hp)
    ctx = ctx.transpose(0, 2, 1, 3).reshape(B, S, D)
    attn = jnp.einsum("bsd,de->bse", ctx, params["wo"], precision=hp)
    x1 = layer_norm(x + attn, params["ln1_gamma"], params["ln1_beta"])
    h = jnp.maximum(
        jnp.einsum("bsd,df->bsf", x1, params["w1"], precision=hp) + params["b1"],
        0.0)
    y = jnp.einsum("bsf,fd->bsd", h, params["w2"], precision=hp) + params["b2"]
    return layer_norm(x1 + y, params["ln2_gamma"], params["ln2_beta"])


if __name__ == "__main__":
    # Small but lane-dense / MXU-friendly shapes: d_model multiple of 128, and
    # B=4 so each v7x TensorCore gets >=2 grid steps to software-pipeline.
    B, S, D_MODEL, NUM_HEADS, D_FF = 4, 128, 128, 4, 256

    key = jax.random.PRNGKey(0)
    ks = jax.random.split(key, 9)
    w_scale = 1.0 / math.sqrt(D_MODEL)
    params = {
        "wq": jax.random.normal(ks[0], (D_MODEL, D_MODEL), jnp.float32) * w_scale,
        "wk": jax.random.normal(ks[1], (D_MODEL, D_MODEL), jnp.float32) * w_scale,
        "wv": jax.random.normal(ks[2], (D_MODEL, D_MODEL), jnp.float32) * w_scale,
        "wo": jax.random.normal(ks[3], (D_MODEL, D_MODEL), jnp.float32) * w_scale,
        "w1": jax.random.normal(ks[4], (D_MODEL, D_FF), jnp.float32) * w_scale,
        "b1": jax.random.normal(ks[5], (D_FF,), jnp.float32) * 0.01,
        "w2": jax.random.normal(ks[6], (D_FF, D_MODEL), jnp.float32)
              * (1.0 / math.sqrt(D_FF)),
        "b2": jax.random.normal(ks[7], (D_MODEL,), jnp.float32) * 0.01,
        # LayerNorm scalar params per the module's __init__ (torch.ones(1)):
        "ln1_gamma": 1.0, "ln1_beta": 1.0,
        "ln2_gamma": 1.0, "ln2_beta": 1.0,
    }
    x = jax.random.normal(ks[8], (B, S, D_MODEL), jnp.float32)
    src_mask = jnp.ones((B, 1, 1, S), dtype=jnp.float32)   # unused (see note)

    out = encoder_block(x, src_mask, params, num_heads=NUM_HEADS)
    out = jax.block_until_ready(out)

    ref = _reference_encoder_block(x, params, num_heads=NUM_HEADS)
    assert out.shape == (B, S, D_MODEL)
    max_err = float(jnp.max(jnp.abs(out - ref)))
    # Tolerance accounts for bf16 MXU operands (f32 accumulation) and the
    # approximate EUP reciprocal vs. the all-f32 HIGHEST-precision reference.
    assert jnp.allclose(out, ref, rtol=5e-2, atol=5e-2), \
        f"mismatch vs reference, max abs err = {max_err}"

    print("KERNEL_OK")
</pallas_src>

<mosaic_0001>
module attributes {stable_mosaic.version = 11 : i64} {
  func.func @_encoder_block_kernel(%arg0: i32, %arg1: memref<1x128x128xf32, #tpu.memory_space<vmem>>, %arg2: memref<128x128xbf16, #tpu.memory_space<vmem>>, %arg3: memref<128x128xbf16, #tpu.memory_space<vmem>>, %arg4: memref<128x128xbf16, #tpu.memory_space<vmem>>, %arg5: memref<128x128xbf16, #tpu.memory_space<vmem>>, %arg6: memref<128x256xbf16, #tpu.memory_space<vmem>>, %arg7: memref<1x256xf32, #tpu.memory_space<vmem>>, %arg8: memref<256x128xbf16, #tpu.memory_space<vmem>>, %arg9: memref<1x128xf32, #tpu.memory_space<vmem>>, %arg10: memref<4xf32, #tpu.memory_space<smem>>, %arg11: memref<1x128x128xf32, #tpu.memory_space<vmem>>) attributes {dimension_semantics = [#tpu.dimension_semantics<parallel>], iteration_bounds = array<i64: 4>, scalar_prefetch = 0 : i64, scratch_operands = 0 : i64, tpu.core_type = #tpu.core_type<tc>, window_params = [{transform_indices = @transform_0, window_bounds = array<i64: 1, 128, 128>}, {pipeline_mode = #tpu.pipeline_mode<synchronous>, transform_indices = @transform_1, window_bounds = array<i64: 128, 128>}, {pipeline_mode = #tpu.pipeline_mode<synchronous>, transform_indices = @transform_2, window_bounds = array<i64: 128, 128>}, {pipeline_mode = #tpu.pipeline_mode<synchronous>, transform_indices = @transform_3, window_bounds = array<i64: 128, 128>}, {pipeline_mode = #tpu.pipeline_mode<synchronous>, transform_indices = @transform_4, window_bounds = array<i64: 128, 128>}, {pipeline_mode = #tpu.pipeline_mode<synchronous>, transform_indices = @transform_5, window_bounds = array<i64: 128, 256>}, {pipeline_mode = #tpu.pipeline_mode<synchronous>, transform_indices = @transform_6, window_bounds = array<i64: 1, 256>}, {pipeline_mode = #tpu.pipeline_mode<synchronous>, transform_indices = @transform_7, window_bounds = array<i64: 256, 128>}, {pipeline_mode = #tpu.pipeline_mode<synchronous>, transform_indices = @transform_8, window_bounds = array<i64: 1, 128>}, {transform_indices = @transform_9, window_bounds = array<i64: 4>}, {transform_indices = @transform_10, window_bounds = array<i64: 1, 128, 128>}]} {
    %c0 = arith.constant 0 : index
    %c0_0 = arith.constant 0 : index
    %c0_1 = arith.constant 0 : index
    %0 = vector.load %arg1[%c0, %c0_0, %c0_1] : memref<1x128x128xf32, #tpu.memory_space<vmem>>, vector<1x128x128xf32>
    %1 = vector.shape_cast %0 : vector<1x128x128xf32> to vector<128x128xf32>
    %2 = arith.truncf %1 : vector<128x128xf32> to vector<128x128xbf16>
    %c0_2 = arith.constant 0 : index
    %c0_3 = arith.constant 0 : index
    %3 = vector.load %arg2[%c0_2, %c0_3] : memref<128x128xbf16, #tpu.memory_space<vmem>>, vector<128x128xbf16>
    %cst = arith.constant dense<0.000000e+00> : vector<128x128xf32>
    %4 = tpu.matmul %2, %3, %cst {dimension_numbers = #tpu.dot_dimension_numbers<[1], [0], [0], [1], [0, 0, 1, 1], [], []>} : vector<128x128xbf16>, vector<128x128xbf16>, vector<128x128xf32> -> vector<128x128xf32>
    %cst_4 = arith.constant 0.176776692 : f32
    %5 = vector.broadcast %cst_4 : f32 to vector<128x128xf32>
    %6 = arith.mulf %4, %5 : vector<128x128xf32>
    %7 = arith.truncf %6 : vector<128x128xf32> to vector<128x128xbf16>
    %c0_5 = arith.constant 0 : index
    %c0_6 = arith.constant 0 : index
    %8 = vector.load %arg3[%c0_5, %c0_6] : memref<128x128xbf16, #tpu.memory_space<vmem>>, vector<128x128xbf16>
    %cst_7 = arith.constant dense<0.000000e+00> : vector<128x128xf32>
    %9 = tpu.matmul %2, %8, %cst_7 {dimension_numbers = #tpu.dot_dimension_numbers<[1], [0], [0], [1], [0, 0, 1, 1], [], []>} : vector<128x128xbf16>, vector<128x128xbf16>, vector<128x128xf32> -> vector<128x128xf32>
    %10 = arith.truncf %9 : vector<128x128xf32> to vector<128x128xbf16>
    %c0_8 = arith.constant 0 : index
    %c0_9 = arith.constant 0 : index
    %11 = vector.load %arg4[%c0_8, %c0_9] : memref<128x128xbf16, #tpu.memory_space<vmem>>, vector<128x128xbf16>
    %cst_10 = arith.constant dense<0.000000e+00> : vector<128x128xf32>
    %12 = tpu.matmul %2, %11, %cst_10 {dimension_numbers = #tpu.dot_dimension_numbers<[1], [0], [0], [1], [0, 0, 1, 1], [], []>} : vector<128x128xbf16>, vector<128x128xbf16>, vector<128x128xf32> -> vector<128x128xf32>
    %13 = arith.truncf %12 : vector<128x128xf32> to vector<128x128xbf16>
    %14 = vector.extract_strided_slice %7 {offsets = [0, 0], sizes = [128, 32], strides = [1, 1]} : vector<128x128xbf16> to vector<128x32xbf16>
    %15 = vector.extract_strided_slice %10 {offsets = [0, 0], sizes = [128, 32], strides = [1, 1]} : vector<128x128xbf16> to vector<128x32xbf16>
    %16 = vector.extract_strided_slice %13 {offsets = [0, 0], sizes = [128, 32], strides = [1, 1]} : vector<128x128xbf16> to vector<128x32xbf16>
    %cst_11 = arith.constant dense<0.000000e+00> : vector<128x128xf32>
    %17 = tpu.matmul %14, %15, %cst_11 {dimension_numbers = #tpu.dot_dimension_numbers<[1], [1], [0], [0], [0, 0, 1, 0], [], []>} : vector<128x32xbf16>, vector<128x32xbf16>, vector<128x128xf32> -> vector<128x128xf32>
    %cst_12 = arith.constant dense<0xFF800000> : vector<128xf32>
    %18 = vector.multi_reduction <maximumf>, %17, %cst_12 [1] : vector<128x128xf32> to vector<128xf32>
    %19 = vector.shape_cast %18 : vector<128xf32> to vector<128x1xf32>
    %20 = vector.broadcast %19 : vector<128x1xf32> to vector<128x128xf32>
    %21 = arith.subf %17, %20 : vector<128x128xf32>
    %22 = math.exp %21 : vector<128x128xf32>
    %cst_13 = arith.constant dense<0.000000e+00> : vector<128xf32>
    %23 = vector.multi_reduction <add>, %22, %cst_13 [1] : vector<128x128xf32> to vector<128xf32>
    %24 = vector.shape_cast %23 : vector<128xf32> to vector<128x1xf32>
    %25 = arith.truncf %22 : vector<128x128xf32> to vector<128x128xbf16>
    %cst_14 = arith.constant dense<0.000000e+00> : vector<128x32xf32>
    %26 = tpu.matmul %25, %16, %cst_14 {dimension_numbers = #tpu.dot_dimension_numbers<[1], [0], [0], [1], [0, 0, 1, 1], [], []>} : vector<128x128xbf16>, vector<128x32xbf16>, vector<128x32xf32> -> vector<128x32xf32>
    %27 = tpu.reciprocal %24 {approx = true} : vector<128x1xf32> -> vector<128x1xf32>
    %28 = vector.broadcast %27 : vector<128x1xf32> to vector<128x32xf32>
    %29 = arith.mulf %26, %28 : vector<128x32xf32>
    %30 = arith.truncf %29 : vector<128x32xf32> to vector<128x32xbf16>
    %c0_15 = arith.constant 0 : index
    %c0_16 = arith.constant 0 : index
    %31 = vector.load %arg5[%c0_15, %c0_16] : memref<128x128xbf16, #tpu.memory_space<vmem>>, vector<32x128xbf16>
    %cst_17 = arith.constant dense<0.000000e+00> : vector<128x128xf32>
    %32 = tpu.matmul %30, %31, %cst_17 {dimension_numbers = #tpu.dot_dimension_numbers<[1], [0], [0], [1], [0, 0, 1, 1], [], []>} : vector<128x32xbf16>, vector<32x128xbf16>, vector<128x128xf32> -> vector<128x128xf32>
    %33 = vector.extract_strided_slice %7 {offsets = [0, 32], sizes = [128, 32], strides = [1, 1]} : vector<128x128xbf16> to vector<128x32xbf16>
    %34 = vector.extract_strided_slice %10 {offsets = [0, 32], sizes = [128, 32], strides = [1, 1]} : vector<128x128xbf16> to vector<128x32xbf16>
    %35 = vector.extract_strided_slice %13 {offsets = [0, 32], sizes = [128, 32], strides = [1, 1]} : vector<128x128xbf16> to vector<128x32xbf16>
    %cst_18 = arith.constant dense<0.000000e+00> : vector<128x128xf32>
    %36 = tpu.matmul %33, %34, %cst_18 {dimension_numbers = #tpu.dot_dimension_numbers<[1], [1], [0], [0], [0, 0, 1, 0], [], []>} : vector<128x32xbf16>, vector<128x32xbf16>, vector<128x128xf32> -> vector<128x128xf32>
    %cst_19 = arith.constant dense<0xFF800000> : vector<128xf32>
    %37 = vector.multi_reduction <maximumf>, %36, %cst_19 [1] : vector<128x128xf32> to vector<128xf32>
    %38 = vector.shape_cast %37 : vector<128xf32> to vector<128x1xf32>
    %39 = vector.broadcast %38 : vector<128x1xf32> to vector<128x128xf32>
    %40 = arith.subf %36, %39 : vector<128x128xf32>
    %41 = math.exp %40 : vector<128x128xf32>
    %cst_20 = arith.constant dense<0.000000e+00> : vector<128xf32>
    %42 = vector.multi_reduction <add>, %41, %cst_20 [1] : vector<128x128xf32> to vector<128xf32>
    %43 = vector.shape_cast %42 : vector<128xf32> to vector<128x1xf32>
    %44 = arith.truncf %41 : vector<128x128xf32> to vector<128x128xbf16>
    %cst_21 = arith.constant dense<0.000000e+00> : vector<128x32xf32>
    %45 = tpu.matmul %44, %35, %cst_21 {dimension_numbers = #tpu.dot_dimension_numbers<[1], [0], [0], [1], [0, 0, 1, 1], [], []>} : vector<128x128xbf16>, vector<128x32xbf16>, vector<128x32xf32> -> vector<128x32xf32>
    %46 = tpu.reciprocal %43 {approx = true} : vector<128x1xf32> -> vector<128x1xf32>
    %47 = vector.broadcast %46 : vector<128x1xf32> to vector<128x32xf32>
    %48 = arith.mulf %45, %47 : vector<128x32xf32>
    %49 = arith.truncf %48 : vector<128x32xf32> to vector<128x32xbf16>
    %c32 = arith.constant 32 : index
    %c0_22 = arith.constant 0 : index
    %50 = vector.load %arg5[%c32, %c0_22] : memref<128x128xbf16, #tpu.memory_space<vmem>>, vector<32x128xbf16>
    %cst_23 = arith.constant dense<0.000000e+00> : vector<128x128xf32>
    %51 = tpu.matmul %49, %50, %cst_23 {dimension_numbers = #tpu.dot_dimension_numbers<[1], [0], [0], [1], [0, 0, 1, 1], [], []>} : vector<128x32xbf16>, vector<32x128xbf16>, vector<128x128xf32> -> vector<128x128xf32>
    %52 = arith.addf %32, %51 : vector<128x128xf32>
    %53 = vector.extract_strided_slice %7 {offsets = [0, 64], sizes = [128, 32], strides = [1, 1]} : vector<128x128xbf16> to vector<128x32xbf16>
    %54 = vector.extract_strided_slice %10 {offsets = [0, 64], sizes = [128, 32], strides = [1, 1]} : vector<128x128xbf16> to vector<128x32xbf16>
    %55 = vector.extract_strided_slice %13 {offsets = [0, 64], sizes = [128, 32], strides = [1, 1]} : vector<128x128xbf16> to vector<128x32xbf16>
    %cst_24 = arith.constant dense<0.000000e+00> : vector<128x128xf32>
    %56 = tpu.matmul %53, %54, %cst_24 {dimension_numbers = #tpu.dot_dimension_numbers<[1], [1], [0], [0], [0, 0, 1, 0], [], []>} : vector<128x32xbf16>, vector<128x32xbf16>, vector<128x128xf32> -> vector<128x128xf32>
    %cst_25 = arith.constant dense<0xFF800000> : vector<128xf32>
    %57 = vector.multi_reduction <maximumf>, %56, %cst_25 [1] : vector<128x128xf32> to vector<128xf32>
    %58 = vector.shape_cast %57 : vector<128xf32> to vector<128x1xf32>
    %59 = vector.broadcast %58 : vector<128x1xf32> to vector<128x128xf32>
    %60 = arith.subf %56, %59 : vector<128x128xf32>
    %61 = math.exp %60 : vector<128x128xf32>
    %cst_26 = arith.constant dense<0.000000e+00> : vector<128xf32>
    %62 = vector.multi_reduction <add>, %61, %cst_26 [1] : vector<128x128xf32> to vector<128xf32>
    %63 = vector.shape_cast %62 : vector<128xf32> to vector<128x1xf32>
    %64 = arith.truncf %61 : vector<128x128xf32> to vector<128x128xbf16>
    %cst_27 = arith.constant dense<0.000000e+00> : vector<128x32xf32>
    %65 = tpu.matmul %64, %55, %cst_27 {dimension_numbers = #tpu.dot_dimension_numbers<[1], [0], [0], [1], [0, 0, 1, 1], [], []>} : vector<128x128xbf16>, vector<128x32xbf16>, vector<128x32xf32> -> vector<128x32xf32>
    %66 = tpu.reciprocal %63 {approx = true} : vector<128x1xf32> -> vector<128x1xf32>
    %67 = vector.broadcast %66 : vector<128x1xf32> to vector<128x32xf32>
    %68 = arith.mulf %65, %67 : vector<128x32xf32>
    %69 = arith.truncf %68 : vector<128x32xf32> to vector<128x32xbf16>
    %c64 = arith.constant 64 : index
    %c0_28 = arith.constant 0 : index
    %70 = vector.load %arg5[%c64, %c0_28] : memref<128x128xbf16, #tpu.memory_space<vmem>>, vector<32x128xbf16>
    %cst_29 = arith.constant dense<0.000000e+00> : vector<128x128xf32>
    %71 = tpu.matmul %69, %70, %cst_29 {dimension_numbers = #tpu.dot_dimension_numbers<[1], [0], [0], [1], [0, 0, 1, 1], [], []>} : vector<128x32xbf16>, vector<32x128xbf16>, vector<128x128xf32> -> vector<128x128xf32>
    %72 = arith.addf %52, %71 : vector<128x128xf32>
    %73 = vector.extract_strided_slice %7 {offsets = [0, 96], sizes = [128, 32], strides = [1, 1]} : vector<128x128xbf16> to vector<128x32xbf16>
    %74 = vector.extract_strided_slice %10 {offsets = [0, 96], sizes = [128, 32], strides = [1, 1]} : vector<128x128xbf16> to vector<128x32xbf16>
    %75 = vector.extract_strided_slice %13 {offsets = [0, 96], sizes = [128, 32], strides = [1, 1]} : vector<128x128xbf16> to vector<128x32xbf16>
    %cst_30 = arith.constant dense<0.000000e+00> : vector<128x128xf32>
    %76 = tpu.matmul %73, %74, %cst_30 {dimension_numbers = #tpu.dot_dimension_numbers<[1], [1], [0], [0], [0, 0, 1, 0], [], []>} : vector<128x32xbf16>, vector<128x32xbf16>, vector<128x128xf32> -> vector<128x128xf32>
    %cst_31 = arith.constant dense<0xFF800000> : vector<128xf32>
    %77 = vector.multi_reduction <maximumf>, %76, %cst_31 [1] : vector<128x128xf32> to vector<128xf32>
    %78 = vector.shape_cast %77 : vector<128xf32> to vector<128x1xf32>
    %79 = vector.broadcast %78 : vector<128x1xf32> to vector<128x128xf32>
    %80 = arith.subf %76, %79 : vector<128x128xf32>
    %81 = math.exp %80 : vector<128x128xf32>
    %cst_32 = arith.constant dense<0.000000e+00> : vector<128xf32>
    %82 = vector.multi_reduction <add>, %81, %cst_32 [1] : vector<128x128xf32> to vector<128xf32>
    %83 = vector.shape_cast %82 : vector<128xf32> to vector<128x1xf32>
    %84 = arith.truncf %81 : vector<128x128xf32> to vector<128x128xbf16>
    %cst_33 = arith.constant dense<0.000000e+00> : vector<128x32xf32>
    %85 = tpu.matmul %84, %75, %cst_33 {dimension_numbers = #tpu.dot_dimension_numbers<[1], [0], [0], [1], [0, 0, 1, 1], [], []>} : vector<128x128xbf16>, vector<128x32xbf16>, vector<128x32xf32> -> vector<128x32xf32>
    %86 = tpu.reciprocal %83 {approx = true} : vector<128x1xf32> -> vector<128x1xf32>
    %87 = vector.broadcast %86 : vector<128x1xf32> to vector<128x32xf32>
    %88 = arith.mulf %85, %87 : vector<128x32xf32>
    %89 = arith.truncf %88 : vector<128x32xf32> to vector<128x32xbf16>
    %c96 = arith.constant 96 : index
    %c0_34 = arith.constant 0 : index
    %90 = vector.load %arg5[%c96, %c0_34] : memref<128x128xbf16, #tpu.memory_space<vmem>>, vector<32x128xbf16>
    %cst_35 = arith.constant dense<0.000000e+00> : vector<128x128xf32>
    %91 = tpu.matmul %89, %90, %cst_35 {dimension_numbers = #tpu.dot_dimension_numbers<[1], [0], [0], [1], [0, 0, 1, 1], [], []>} : vector<128x32xbf16>, vector<32x128xbf16>, vector<128x128xf32> -> vector<128x128xf32>
    %92 = arith.addf %72, %91 : vector<128x128xf32>
    %93 = arith.addf %1, %92 : vector<128x128xf32>
    %c0_36 = arith.constant 0 : index
    %94 = memref.load %arg10[%c0_36] : memref<4xf32, #tpu.memory_space<smem>>
    %c1 = arith.constant 1 : index
    %95 = memref.load %arg10[%c1] : memref<4xf32, #tpu.memory_space<smem>>
    %cst_37 = arith.constant dense<0.000000e+00> : vector<128xf32>
    %96 = vector.multi_reduction <add>, %93, %cst_37 [1] : vector<128x128xf32> to vector<128xf32>
    %97 = vector.shape_cast %96 : vector<128xf32> to vector<128x1xf32>
    %cst_38 = arith.constant 1.280000e+02 : f32
    %98 = vector.broadcast %cst_38 : f32 to vector<128x1xf32>
    %99 = arith.divf %97, %98 : vector<128x1xf32>
    %100 = vector.broadcast %99 : vector<128x1xf32> to vector<128x128xf32>
    %101 = arith.subf %93, %100 : vector<128x128xf32>
    %102 = arith.mulf %101, %101 : vector<128x128xf32>
    %cst_39 = arith.constant dense<0.000000e+00> : vector<128xf32>
    %103 = vector.multi_reduction <add>, %102, %cst_39 [1] : vector<128x128xf32> to vector<128xf32>
    %104 = vector.shape_cast %103 : vector<128xf32> to vector<128x1xf32>
    %cst_40 = arith.constant 0.00787401571 : f32
    %105 = vector.broadcast %cst_40 : f32 to vector<128x1xf32>
    %106 = arith.mulf %104, %105 : vector<128x1xf32>
    %cst_41 = arith.constant 9.99999974E-6 : f32
    %107 = vector.broadcast %cst_41 : f32 to vector<128x1xf32>
    %108 = arith.addf %106, %107 : vector<128x1xf32>
    %109 = math.rsqrt %108 : vector<128x1xf32>
    %110 = vector.broadcast %94 : f32 to vector<128x1xf32>
    %111 = arith.mulf %110, %109 : vector<128x1xf32>
    %112 = vector.broadcast %99 : vector<128x1xf32> to vector<128x128xf32>
    %113 = arith.subf %93, %112 : vector<128x128xf32>
    %114 = vector.broadcast %111 : vector<128x1xf32> to vector<128x128xf32>
    %115 = arith.mulf %113, %114 : vector<128x128xf32>
    %116 = vector.broadcast %95 : f32 to vector<128x128xf32>
    %117 = arith.addf %115, %116 : vector<128x128xf32>
    %118 = arith.truncf %117 : vector<128x128xf32> to vector<128x128xbf16>
    %c0_42 = arith.constant 0 : index
    %c0_43 = arith.constant 0 : index
    %119 = vector.load %arg6[%c0_42, %c0_43] : memref<128x256xbf16, #tpu.memory_space<vmem>>, vector<128x256xbf16>
    %cst_44 = arith.constant dense<0.000000e+00> : vector<128x256xf32>
    %120 = tpu.matmul %118, %119, %cst_44 {dimension_numbers = #tpu.dot_dimension_numbers<[1], [0], [0], [1], [0, 0, 1, 1], [], []>} : vector<128x128xbf16>, vector<128x256xbf16>, vector<128x256xf32> -> vector<128x256xf32>
    %c0_45 = arith.constant 0 : index
    %c0_46 = arith.constant 0 : index
    %121 = vector.load %arg7[%c0_45, %c0_46] : memref<1x256xf32, #tpu.memory_space<vmem>>, vector<1x256xf32>
    %122 = vector.broadcast %121 : vector<1x256xf32> to vector<128x256xf32>
    %123 = arith.addf %120, %122 : vector<128x256xf32>
    %cst_47 = arith.constant 0.000000e+00 : f32
    %124 = vector.broadcast %cst_47 : f32 to vector<128x256xf32>
    %125 = arith.maximumf %123, %124 : vector<128x256xf32>
    %126 = arith.truncf %125 : vector<128x256xf32> to vector<128x256xbf16>
    %c0_48 = arith.constant 0 : index
    %c0_49 = arith.constant 0 : index
    %127 = vector.load %arg8[%c0_48, %c0_49] : memref<256x128xbf16, #tpu.memory_space<vmem>>, vector<256x128xbf16>
    %cst_50 = arith.constant dense<0.000000e+00> : vector<128x128xf32>
    %128 = tpu.matmul %126, %127, %cst_50 {dimension_numbers = #tpu.dot_dimension_numbers<[1], [0], [0], [1], [0, 0, 1, 1], [], []>} : vector<128x256xbf16>, vector<256x128xbf16>, vector<128x128xf32> -> vector<128x128xf32>
    %c0_51 = arith.constant 0 : index
    %c0_52 = arith.constant 0 : index
    %129 = vector.load %arg9[%c0_51, %c0_52] : memref<1x128xf32, #tpu.memory_space<vmem>>, vector<1x128xf32>
    %130 = vector.broadcast %129 : vector<1x128xf32> to vector<128x128xf32>
    %131 = arith.addf %128, %130 : vector<128x128xf32>
    %132 = arith.addf %117, %131 : vector<128x128xf32>
    %c2 = arith.constant 2 : index
    %133 = memref.load %arg10[%c2] : memref<4xf32, #tpu.memory_space<smem>>
    %c3 = arith.constant 3 : index
    %134 = memref.load %arg10[%c3] : memref<4xf32, #tpu.memory_space<smem>>
    %cst_53 = arith.constant dense<0.000000e+00> : vector<128xf32>
    %135 = vector.multi_reduction <add>, %132, %cst_53 [1] : vector<128x128xf32> to vector<128xf32>
    %136 = vector.shape_cast %135 : vector<128xf32> to vector<128x1xf32>
    %cst_54 = arith.constant 1.280000e+02 : f32
    %137 = vector.broadcast %cst_54 : f32 to vector<128x1xf32>
    %138 = arith.divf %136, %137 : vector<128x1xf32>
    %139 = vector.broadcast %138 : vector<128x1xf32> to vector<128x128xf32>
    %140 = arith.subf %132, %139 : vector<128x128xf32>
    %141 = arith.mulf %140, %140 : vector<128x128xf32>
    %cst_55 = arith.constant dense<0.000000e+00> : vector<128xf32>
    %142 = vector.multi_reduction <add>, %141, %cst_55 [1] : vector<128x128xf32> to vector<128xf32>
    %143 = vector.shape_cast %142 : vector<128xf32> to vector<128x1xf32>
    %cst_56 = arith.constant 0.00787401571 : f32
    %144 = vector.broadcast %cst_56 : f32 to vector<128x1xf32>
    %145 = arith.mulf %143, %144 : vector<128x1xf32>
    %cst_57 = arith.constant 9.99999974E-6 : f32
    %146 = vector.broadcast %cst_57 : f32 to vector<128x1xf32>
    %147 = arith.addf %145, %146 : vector<128x1xf32>
    %148 = math.rsqrt %147 : vector<128x1xf32>
    %149 = vector.broadcast %133 : f32 to vector<128x1xf32>
    %150 = arith.mulf %149, %148 : vector<128x1xf32>
    %151 = vector.broadcast %138 : vector<128x1xf32> to vector<128x128xf32>
    %152 = arith.subf %132, %151 : vector<128x128xf32>
    %153 = vector.broadcast %150 : vector<128x1xf32> to vector<128x128xf32>
    %154 = arith.mulf %152, %153 : vector<128x128xf32>
    %155 = vector.broadcast %134 : f32 to vector<128x128xf32>
    %156 = arith.addf %154, %155 : vector<128x128xf32>
    %c0_58 = arith.constant 0 : index
    %c0_59 = arith.constant 0 : index
    %c0_60 = arith.constant 0 : index
    %157 = vector.load %arg11[%c0_58, %c0_59, %c0_60] : memref<1x128x128xf32, #tpu.memory_space<vmem>>, vector<1x128x128xf32>
    %158 = vector.shape_cast %157 : vector<1x128x128xf32> to vector<128x128xf32>
    %159 = vector.shape_cast %156 : vector<128x128xf32> to vector<1x128x128xf32>
    tpu.vector_store %arg11[%c0_58, %c0_59, %c0_60], %159 {strides = array<i32>} : memref<1x128x128xf32, #tpu.memory_space<vmem>>, vector<1x128x128xf32>,
    return
  }
  func.func @transform_0(%arg0: i32) -> (i32, i32, i32) {
    %c0_i32 = arith.constant 0 : i32
    %c0_i32_0 = arith.constant 0 : i32
    %c0_i32_1 = arith.constant 0 : i32
    return %arg0, %c0_i32, %c0_i32_0 : i32, i32, i32
  }
  func.func @transform_1(%arg0: i32) -> (i32, i32) {
    %c0_i32 = arith.constant 0 : i32
    %c0_i32_0 = arith.constant 0 : i32
    %c0_i32_1 = arith.constant 0 : i32
    return %c0_i32, %c0_i32_0 : i32, i32
  }
  func.func @transform_2(%arg0: i32) -> (i32, i32) {
    %c0_i32 = arith.constant 0 : i32
    %c0_i32_0 = arith.constant 0 : i32
    %c0_i32_1 = arith.constant 0 : i32
    return %c0_i32, %c0_i32_0 : i32, i32
  }
  func.func @transform_3(%arg0: i32) -> (i32, i32) {
    %c0_i32 = arith.constant 0 : i32
    %c0_i32_0 = arith.constant 0 : i32
    %c0_i32_1 = arith.constant 0 : i32
    return %c0_i32, %c0_i32_0 : i32, i32
  }
  func.func @transform_4(%arg0: i32) -> (i32, i32) {
    %c0_i32 = arith.constant 0 : i32
    %c0_i32_0 = arith.constant 0 : i32
    %c0_i32_1 = arith.constant 0 : i32
    return %c0_i32, %c0_i32_0 : i32, i32
  }
  func.func @transform_5(%arg0: i32) -> (i32, i32) {
    %c0_i32 = arith.constant 0 : i32
    %c0_i32_0 = arith.constant 0 : i32
    %c0_i32_1 = arith.constant 0 : i32
    return %c0_i32, %c0_i32_0 : i32, i32
  }
  func.func @transform_6(%arg0: i32) -> (i32, i32) {
    %c0_i32 = arith.constant 0 : i32
    %c0_i32_0 = arith.constant 0 : i32
    %c0_i32_1 = arith.constant 0 : i32
    return %c0_i32, %c0_i32_0 : i32, i32
  }
  func.func @transform_7(%arg0: i32) -> (i32, i32) {
    %c0_i32 = arith.constant 0 : i32
    %c0_i32_0 = arith.constant 0 : i32
    %c0_i32_1 = arith.constant 0 : i32
    return %c0_i32, %c0_i32_0 : i32, i32
  }
  func.func @transform_8(%arg0: i32) -> (i32, i32) {
    %c0_i32 = arith.constant 0 : i32
    %c0_i32_0 = arith.constant 0 : i32
    %c0_i32_1 = arith.constant 0 : i32
    return %c0_i32, %c0_i32_0 : i32, i32
  }
  func.func @transform_9(%arg0: i32) -> i32 {
    %c0_i32 = arith.constant 0 : i32
    %c0_i32_0 = arith.constant 0 : i32
    return %c0_i32 : i32
  }
  func.func @transform_10(%arg0: i32) -> (i32, i32, i32) {
    %c0_i32 = arith.constant 0 : i32
    %c0_i32_0 = arith.constant 0 : i32
    %c0_i32_1 = arith.constant 0 : i32
    return %arg0, %c0_i32, %c0_i32_0 : i32, i32, i32
  }
}

</mosaic_0001>

<llo_original>
// kernel: tpu_custom_call.1
$region0: #{tpu_custom_call.1}
  #allocation0 [shape = 'u32[]', space=smem, size = 0x4, offset = 0x4, fixed_abs, tag = 'smem constant byte address 0x4 - core index']
  #allocation1 [shape = 'u32[144,128]{1,0:T(1,128)}', space=vmem, size = 0x12000, scoped, tag = 'internal scratch']
  %s0 = inlined_call_operand.hbm [shape: f32[4,128,128], index: 0, kind: input, shape index: {}]
  %s1 = inlined_call_operand.hbm [shape: bf16[128,128], index: 1, kind: input, shape index: {}]
  %s2 = inlined_call_operand.hbm [shape: bf16[128,128], index: 2, kind: input, shape index: {}]
  %s3 = inlined_call_operand.hbm [shape: bf16[128,128], index: 3, kind: input, shape index: {}]
  %s4 = inlined_call_operand.hbm [shape: bf16[128,128], index: 4, kind: input, shape index: {}]
  %s5 = inlined_call_operand.hbm [shape: bf16[128,256], index: 5, kind: input, shape index: {}]
  %s6 = inlined_call_operand.vmem [shape: f32[1,256], index: 6, kind: input, shape index: {}]
  %s7 = inlined_call_operand.hbm [shape: bf16[256,128], index: 7, kind: input, shape index: {}]
  %s8 = inlined_call_operand.vmem [shape: f32[1,128], index: 8, kind: input, shape index: {}]
  %s9 = inlined_call_operand.vmem [shape: f32[4], index: 9, kind: input, shape index: {}]
  %s10 = inlined_call_operand.hbm [shape: f32[4,128,128], index: 10, kind: output, shape index: {}]
  %s11 = sld [smem:[#allocation0]]
  $region105: #{tpu_custom_call.1} parent=0
    _
  %s13 = ssub.s32 1, %s11
  %s14 = scalar_select 0, %s13, %s11
  $region1: #{tpu_custom_call.1} parent=0
    #allocation2 [shape = 'u8[131072]{0}', space=vmem, size = 0x20000, scoped, tag = 'input window, operand 0']
    #allocation3 [shape = 's32[2]{0}', space=sflag, size = 0x8, scoped, tag = 'scoped memory for tpu_custom_call.1']
    #allocation4 [shape = 's32[2]{0}', space=sflag, size = 0x8, scoped, tag = 'scoped memory for tpu_custom_call.1']
    #allocation5 [shape = 's32[2]{0}', space=sflag, size = 0x8, scoped, tag = 'scoped memory for tpu_custom_call.1']
    #allocation6 [shape = 'u8[32768]{0}', space=vmem, size = 0x8000, scoped, tag = 'input window, operand 1, single buffered']
    #allocation7 [shape = 's32[1]{0}', space=sflag, size = 0x4, scoped, tag = 'scoped memory for tpu_custom_call.1']
    #allocation8 [shape = 'u8[32768]{0}', space=vmem, size = 0x8000, scoped, tag = 'input window, operand 2, single buffered']
    #allocation9 [shape = 'u8[32768]{0}', space=vmem, size = 0x8000, scoped, tag = 'input window, operand 3, single buffered']
    #allocation10 [shape = 's32[1]{0}', space=sflag, size = 0x4, scoped, tag = 'scoped memory for tpu_custom_call.1']
    #allocation11 [shape = 'u8[32768]{0}', space=vmem, size = 0x8000, scoped, tag = 'input window, operand 4, single buffered']
    #allocation12 [shape = 'u8[65536]{0}', space=vmem, size = 0x10000, scoped, tag = 'input window, operand 5, single buffered']
    #allocation13 [shape = 's32[1]{0}', space=sflag, size = 0x4, scoped, tag = 'scoped memory for tpu_custom_call.1']
    #allocation14 [shape = 'u8[65536]{0}', space=vmem, size = 0x10000, scoped, tag = 'input window, operand 7, single buffered']
    #allocation15 [shape = 'u8[512]{0}', space=smem, size = 0x200, scoped, tag = 'input window, operand 9, single buffered']
    #allocation16 [shape = 'u8[131072]{0}', space=vmem, size = 0x20000, scoped, tag = 'output window, operand 0']
    %15 = vsyncpa [#allocation3], 0
    %s16 = scalar_lea.sflag [#allocation3], 1
    %17 = vsyncpa %s16, 0
    %18 = vsyncpa [#allocation7], 0
    %19 = vsyncpa [#allocation10], 0
    %20 = vsyncpa [#allocation13], 0
    %21 = vsyncpa [#allocation5], 0
    %22 = vsyncpa [#allocation4], 0
    %s23 = scalar_lea.sflag [#allocation4], 1
    %24 = vsyncpa %s23, 0
    loop: start=0, step=1, limit=6
    $region2: #{tpu_custom_call.1} parent=1 // loop_pre_header
      _
    $region3: #{tpu_custom_call.1} parent=1 // loop_header
      %s26 = sphi 0, %s30
      %p27 = scmp.ge.s32.totalorder %s26, 6
      %s36 = sphi 0, %s38
      %s39 = sphi 0, %s36
      %s40 = sphi 0, %s39
      %s56 = sphi 0, %s40
      %s60 = sphi 0, %s60
      %s62 = sphi 0, %s60
      %s63 = sphi 0, %s62
      %s77 = sphi 0, %s63
      %s81 = sphi 0, %s81
      %s83 = sphi 0, %s81
      %s84 = sphi 0, %s83
      %s98 = sphi 0, %s84
      %s102 = sphi 0, %s102
      %s104 = sphi 0, %s102
      %s105 = sphi 0, %s104
      %s119 = sphi 0, %s105
      %s123 = sphi 0, %s123
      %s125 = sphi 0, %s123
      %s126 = sphi 0, %s125
      %s140 = sphi 0, %s126
      %s144 = sphi 0, %s144
      %s146 = sphi 0, %s144
      %s147 = sphi 0, %s146
      %s161 = sphi 0, %s147
      %s165 = sphi 0, %s165
      %s167 = sphi 0, %s165
      %s168 = sphi 0, %s167
      %s182 = sphi 0, %s168
      %s186 = sphi 0, %s186
      %s188 = sphi 0, %s186
      %s189 = sphi 0, %s188
      %s203 = sphi 0, %s189
      %s207 = sphi 0, %s207
      %s209 = sphi 0, %s207
      %s210 = sphi 0, %s209
      %s224 = sphi 0, %s210
      %s228 = sphi 0, %s228
      %s230 = sphi 0, %s228
      %s231 = sphi 0, %s230
      %s245 = sphi 0, %s231
      %s251 = sphi 0, %s253
      %s254 = sphi 0, %s251
      %s255 = sphi 0, %s254
      %s271 = sphi 0, %s255
    $region4: #{tpu_custom_call.1} parent=1 // loop_header_branch
      %29 = sbr.rel (%p27) target = $region8
    $region5: #{tpu_custom_call.1} parent=1 // loop_body
      %s31 = ssub.s32 %s26, 1
      %s32 = ssub.s32 %s26, 2
      %s33 = sadd.s32 %s26, 1
      %s34 = ssub.s32 %s26, %s33
      %p35 = scmp.eq.s32.totalorder %s34, 0
      %s37 = sadd.s32 %s36, 1
      %s38 = scalar_select %p35, %s36, %s37
      %p41 = pneg %p35
      %p42 = scmp.eq.s32.totalorder %s26, 3
      %p43 = por %p41, %p42
      %p44 = scmp.ne.s32.totalorder %s36, %s39
      %p45 = scmp.eq.s32.totalorder %s26, 0
      %p46 = por %p44, %p45
      %p47 = scmp.ne.s32.totalorder %s36, %s39
      %p48 = scmp.eq.s32.totalorder %s31, 3
      %p49 = por %p47, %p48
      %p50 = scmp.ne.s32.totalorder %s39, %s40
      %p51 = scmp.eq.s32.totalorder %s31, 0
      %p52 = por %p50, %p51
      %p53 = scmp.ne.s32.totalorder %s39, %s40
      %p54 = scmp.eq.s32.totalorder %s32, 3
      %p55 = por %p53, %p54
      %p57 = scmp.ne.s32.totalorder %s40, %s56
      %p58 = scmp.eq.s32.totalorder %s32, 0
      %p59 = por %p57, %p58
      %s61 = sadd.s32 %s60, 1
      %p64 = scmp.eq.s32.totalorder %s26, 3
      %p65 = scmp.ne.s32.totalorder %s60, %s62
      %p66 = scmp.eq.s32.totalorder %s26, 0
      %p67 = por %p65, %p66
      %p68 = scmp.ne.s32.totalorder %s60, %s62
      %p69 = scmp.eq.s32.totalorder %s31, 3
      %p70 = por %p68, %p69
      %p71 = scmp.ne.s32.totalorder %s62, %s63
      %p72 = scmp.eq.s32.totalorder %s31, 0
      %p73 = por %p71, %p72
      %p74 = scmp.ne.s32.totalorder %s62, %s63
      %p75 = scmp.eq.s32.totalorder %s32, 3
      %p76 = por %p74, %p75
      %p78 = scmp.ne.s32.totalorder %s63, %s77
      %p79 = scmp.eq.s32.totalorder %s32, 0
      %p80 = por %p78, %p79
      %s82 = sadd.s32 %s81, 1
      %p85 = scmp.eq.s32.totalorder %s26, 3
      %p86 = scmp.ne.s32.totalorder %s81, %s83
      %p87 = scmp.eq.s32.totalorder %s26, 0
      %p88 = por %p86, %p87
      %p89 = scmp.ne.s32.totalorder %s81, %s83
      %p90 = scmp.eq.s32.totalorder %s31, 3
      %p91 = por %p89, %p90
      %p92 = scmp.ne.s32.totalorder %s83, %s84
      %p93 = scmp.eq.s32.totalorder %s31, 0
      %p94 = por %p92, %p93
      %p95 = scmp.ne.s32.totalorder %s83, %s84
      %p96 = scmp.eq.s32.totalorder %s32, 3
      %p97 = por %p95, %p96
      %p99 = scmp.ne.s32.totalorder %s84, %s98
      %p100 = scmp.eq.s32.totalorder %s32, 0
      %p101 = por %p99, %p100
      %s103 = sadd.s32 %s102, 1
      %p106 = scmp.eq.s32.totalorder %s26, 3
      %p107 = scmp.ne.s32.totalorder %s102, %s104
      %p108 = scmp.eq.s32.totalorder %s26, 0
      %p109 = por %p107, %p108
      %p110 = scmp.ne.s32.totalorder %s102, %s104
      %p111 = scmp.eq.s32.totalorder %s31, 3
      %p112 = por %p110, %p111
      %p113 = scmp.ne.s32.totalorder %s104, %s105
      %p114 = scmp.eq.s32.totalorder %s31, 0
      %p115 = por %p113, %p114
      %p116 = scmp.ne.s32.totalorder %s104, %s105
      %p117 = scmp.eq.s32.totalorder %s32, 3
      %p118 = por %p116, %p117
      %p120 = scmp.ne.s32.totalorder %s105, %s119
      %p121 = scmp.eq.s32.totalorder %s32, 0
      %p122 = por %p120, %p121
      %s124 = sadd.s32 %s123, 1
      %p127 = scmp.eq.s32.totalorder %s26, 3
      %p128 = scmp.ne.s32.totalorder %s123, %s125
      %p129 = scmp.eq.s32.totalorder %s26, 0
      %p130 = por %p128, %p129
      %p131 = scmp.ne.s32.totalorder %s123, %s125
      %p132 = scmp.eq.s32.totalorder %s31, 3
      %p133 = por %p131, %p132
      %p134 = scmp.ne.s32.totalorder %s125, %s126
      %p135 = scmp.eq.s32.totalorder %s31, 0
      %p136 = por %p134, %p135
      %p137 = scmp.ne.s32.totalorder %s125, %s126
      %p138 = scmp.eq.s32.totalorder %s32, 3
      %p139 = por %p137, %p138
      %p141 = scmp.ne.s32.totalorder %s126, %s140
      %p142 = scmp.eq.s32.totalorder %s32, 0
      %p143 = por %p141, %p142
      %s145 = sadd.s32 %s144, 1
      %p148 = scmp.eq.s32.totalorder %s26, 3
      %p149 = scmp.ne.s32.totalorder %s144, %s146
      %p150 = scmp.eq.s32.totalorder %s26, 0
      %p151 = por %p149, %p150
      %p152 = scmp.ne.s32.totalorder %s144, %s146
      %p153 = scmp.eq.s32.totalorder %s31, 3
      %p154 = por %p152, %p153
      %p155 = scmp.ne.s32.totalorder %s146, %s147
      %p156 = scmp.eq.s32.totalorder %s31, 0
      %p157 = por %p155, %p156
      %p158 = scmp.ne.s32.totalorder %s146, %s147
      %p159 = scmp.eq.s32.totalorder %s32, 3
      %p160 = por %p158, %p159
      %p162 = scmp.ne.s32.totalorder %s147, %s161
      %p163 = scmp.eq.s32.totalorder %s32, 0
      %p164 = por %p162, %p163
      %s166 = sadd.s32 %s165, 1
      %p169 = scmp.eq.s32.totalorder %s26, 3
      %p170 = scmp.ne.s32.totalorder %s165, %s167
      %p171 = scmp.eq.s32.totalorder %s26, 0
      %p172 = por %p170, %p171
      %p173 = scmp.ne.s32.totalorder %s165, %s167
      %p174 = scmp.eq.s32.totalorder %s31, 3
      %p175 = por %p173, %p174
      %p176 = scmp.ne.s32.totalorder %s167, %s168
      %p177 = scmp.eq.s32.totalorder %s31, 0
      %p178 = por %p176, %p177
      %p179 = scmp.ne.s32.totalorder %s167, %s168
      %p180 = scmp.eq.s32.totalorder %s32, 3
      %p181 = por %p179, %p180
      %p183 = scmp.ne.s32.totalorder %s168, %s182
      %p184 = scmp.eq.s32.totalorder %s32, 0
      %p185 = por %p183, %p184
      %s187 = sadd.s32 %s186, 1
      %p190 = scmp.eq.s32.totalorder %s26, 3
      %p191 = scmp.ne.s32.totalorder %s186, %s188
      %p192 = scmp.eq.s32.totalorder %s26, 0
      %p193 = por %p191, %p192
      %p194 = scmp.ne.s32.totalorder %s186, %s188
      %p195 = scmp.eq.s32.totalorder %s31, 3
      %p196 = por %p194, %p195
      %p197 = scmp.ne.s32.totalorder %s188, %s189
      %p198 = scmp.eq.s32.totalorder %s31, 0
      %p199 = por %p197, %p198
      %p200 = scmp.ne.s32.totalorder %s188, %s189
      %p201 = scmp.eq.s32.totalorder %s32, 3
      %p202 = por %p200, %p201
      %p204 = scmp.ne.s32.totalorder %s189, %s203
      %p205 = scmp.eq.s32.totalorder %s32, 0
      %p206 = por %p204, %p205
      %s208 = sadd.s32 %s207, 1
      %p211 = scmp.eq.s32.totalorder %s26, 3
      %p212 = scmp.ne.s32.totalorder %s207, %s209
      %p213 = scmp.eq.s32.totalorder %s26, 0
      %p214 = por %p212, %p213
      %p215 = scmp.ne.s32.totalorder %s207, %s209
      %p216 = scmp.eq.s32.totalorder %s31, 3
      %p217 = por %p215, %p216
      %p218 = scmp.ne.s32.totalorder %s209, %s210
      %p219 = scmp.eq.s32.totalorder %s31, 0
      %p220 = por %p218, %p219
      %p221 = scmp.ne.s32.totalorder %s209, %s210
      %p222 = scmp.eq.s32.totalorder %s32, 3
      %p223 = por %p221, %p222
      %p225 = scmp.ne.s32.totalorder %s210, %s224
      %p226 = scmp.eq.s32.totalorder %s32, 0
      %p227 = por %p225, %p226
      %s229 = sadd.s32 %s228, 1
      %p232 = scmp.eq.s32.totalorder %s26, 3
      %p233 = scmp.ne.s32.totalorder %s228, %s230
      %p234 = scmp.eq.s32.totalorder %s26, 0
      %p235 = por %p233, %p234
      %p236 = scmp.ne.s32.totalorder %s228, %s230
      %p237 = scmp.eq.s32.totalorder %s31, 3
      %p238 = por %p236, %p237
      %p239 = scmp.ne.s32.totalorder %s230, %s231
      %p240 = scmp.eq.s32.totalorder %s31, 0
      %p241 = por %p239, %p240
      %p242 = scmp.ne.s32.totalorder %s230, %s231
      %p243 = scmp.eq.s32.totalorder %s32, 3
      %p244 = por %p242, %p243
      %p246 = scmp.ne.s32.totalorder %s231, %s245
      %p247 = scmp.eq.s32.totalorder %s32, 0
      %p248 = por %p246, %p247
      %s249 = ssub.s32 %s26, %s33
      %p250 = scmp.eq.s32.totalorder %s249, 0
      %s252 = sadd.s32 %s251, 1
      %s253 = scalar_select %p250, %s251, %s252
      %p256 = pneg %p250
      %p257 = scmp.eq.s32.totalorder %s26, 3
      %p258 = por %p256, %p257
      %p259 = scmp.ne.s32.totalorder %s251, %s254
      %p260 = scmp.eq.s32.totalorder %s26, 0
      %p261 = por %p259, %p260
      %p262 = scmp.ne.s32.totalorder %s251, %s254
      %p263 = scmp.eq.s32.totalorder %s31, 3
      %p264 = por %p262, %p263
      %p265 = scmp.ne.s32.totalorder %s254, %s255
      %p266 = scmp.eq.s32.totalorder %s31, 0
      %p267 = por %p265, %p266
      %p268 = scmp.ne.s32.totalorder %s254, %s255
      %p269 = scmp.eq.s32.totalorder %s32, 3
      %p270 = por %p268, %p269
      %p272 = scmp.ne.s32.totalorder %s255, %s271
      %p273 = scmp.eq.s32.totalorder %s32, 0
      %p274 = por %p272, %p273
      %p275 = scmp.le.s32.totalorder 1, %s26
      %p276 = scmp.lt.s32.totalorder %s26, 5
      %p277 = pnand %p275, %p276
      %p278 = pneg %p277
      // Predicated region
      $region9: #{tpu_custom_call.1} parent=5 // pred_check
        _
      $region10: #{tpu_custom_call.1} parent=5 // pred_check_branch
        %280 = sbr.rel (%p277) target = $region12
      $region11: #{tpu_custom_call.1} parent=5 // pred_region
        %s281 = ssub.s32 %s26, 1
        // Predicated region
        $region13: #{tpu_custom_call.1} parent=11 // pred_check
          %p282 = pneg %p73
        $region14: #{tpu_custom_call.1} parent=11 // pred_check_branch
          %284 = sbr.rel (%p282) target = $region16
        $region15: #{tpu_custom_call.1} parent=11 // pred_region
          %s286 = ssub.s32 1024, 1024
          %287 = vsyncadd [#allocation7], %s286
          %s288 = sshll.u32 [#allocation6], 4
          %s289 = int_to_ptr.vmem [resolvable:$true] %s288
          %294 = dma.hbm_to_vmem [thread:$0]  %s1, 1024, %s289, [#allocation7], 64, 64, 4
        $region16: #{tpu_custom_call.1} parent=11 // pred_fallthru
          _
        // Predicated region
        $region17: #{tpu_custom_call.1} parent=11 // pred_check
          %p295 = pneg %p94
        $region18: #{tpu_custom_call.1} parent=11 // pred_check_branch
          %297 = sbr.rel (%p295) target = $region20
        $region19: #{tpu_custom_call.1} parent=11 // pred_region
          %s299 = ssub.s32 1024, 1024
          %300 = vsyncadd [#allocation7], %s299
          %s301 = sshll.u32 [#allocation8], 4
          %s302 = int_to_ptr.vmem [resolvable:$true] %s301
          %307 = dma.hbm_to_vmem [thread:$0]  %s2, 1024, %s302, [#allocation7], 64, 64, 4
        $region20: #{tpu_custom_call.1} parent=11 // pred_fallthru
          _
        // Predicated region
        $region21: #{tpu_custom_call.1} parent=11 // pred_check
          %p308 = pneg %p115
        $region22: #{tpu_custom_call.1} parent=11 // pred_check_branch
          %310 = sbr.rel (%p308) target = $region24
        $region23: #{tpu_custom_call.1} parent=11 // pred_region
          %s312 = ssub.s32 1024, 1024
          %313 = vsyncadd [#allocation10], %s312
          %s314 = sshll.u32 [#allocation9], 4
          %s315 = int_to_ptr.vmem [resolvable:$true] %s314
          %320 = dma.hbm_to_vmem [thread:$0]  %s3, 1024, %s315, [#allocation10], 64, 64, 4
        $region24: #{tpu_custom_call.1} parent=11 // pred_fallthru
          _
        // Predicated region
        $region25: #{tpu_custom_call.1} parent=11 // pred_check
          %p321 = pneg %p136
        $region26: #{tpu_custom_call.1} parent=11 // pred_check_branch
          %323 = sbr.rel (%p321) target = $region28
        $region27: #{tpu_custom_call.1} parent=11 // pred_region
          %s325 = ssub.s32 1024, 1024
          %326 = vsyncadd [#allocation10], %s325
          %s327 = sshll.u32 [#allocation11], 4
          %s328 = int_to_ptr.vmem [resolvable:$true] %s327
          %333 = dma.hbm_to_vmem [thread:$0]  %s4, 1024, %s328, [#allocation10], 64, 64, 4
        $region28: #{tpu_custom_call.1} parent=11 // pred_fallthru
          _
        // Predicated region
        $region29: #{tpu_custom_call.1} parent=11 // pred_check
          %p334 = pneg %p157
        $region30: #{tpu_custom_call.1} parent=11 // pred_check_branch
          %336 = sbr.rel (%p334) target = $region32
        $region31: #{tpu_custom_call.1} parent=11 // pred_region
          %s338 = ssub.s32 2048, 2048
          %339 = vsyncadd [#allocation13], %s338
          %s340 = sshll.u32 [#allocation12], 4
          %s341 = int_to_ptr.vmem [resolvable:$true] %s340
          %346 = dma.hbm_to_vmem [thread:$0]  %s5, 2048, %s341, [#allocation13], 128, 128, 8
        $region32: #{tpu_custom_call.1} parent=11 // pred_fallthru
          _
        // Predicated region
        $region33: #{tpu_custom_call.1} parent=11 // pred_check
          %p347 = pneg %p178
        $region34: #{tpu_custom_call.1} parent=11 // pred_check_branch
          %349 = sbr.rel (%p347) target = $region36
        $region35: #{tpu_custom_call.1} parent=11 // pred_region
          _
        $region36: #{tpu_custom_call.1} parent=11 // pred_fallthru
          _
        // Predicated region
        $region37: #{tpu_custom_call.1} parent=11 // pred_check
          %p350 = pneg %p199
        $region38: #{tpu_custom_call.1} parent=11 // pred_check_branch
          %352 = sbr.rel (%p350) target = $region40
        $region39: #{tpu_custom_call.1} parent=11 // pred_region
          %s354 = ssub.s32 2048, 2048
          %355 = vsyncadd [#allocation13], %s354
          %s356 = sshll.u32 [#allocation14], 4
          %s357 = int_to_ptr.vmem [resolvable:$true] %s356
          %362 = dma.hbm_to_vmem [thread:$0]  %s7, 2048, %s357, [#allocation13], 64, 64, 4
        $region40: #{tpu_custom_call.1} parent=11 // pred_fallthru
          _
        // Predicated region
        $region41: #{tpu_custom_call.1} parent=11 // pred_check
          %p363 = pneg %p220
        $region42: #{tpu_custom_call.1} parent=11 // pred_check_branch
          %365 = sbr.rel (%p363) target = $region44
        $region43: #{tpu_custom_call.1} parent=11 // pred_region
          _
        $region44: #{tpu_custom_call.1} parent=11 // pred_fallthru
          _
        // Predicated region
        $region45: #{tpu_custom_call.1} parent=11 // pred_check
          %p366 = pneg %p241
        $region46: #{tpu_custom_call.1} parent=11 // pred_check_branch
          %368 = sbr.rel (%p366) target = $region48
        $region47: #{tpu_custom_call.1} parent=11 // pred_region
          %s370 = ssub.s32 16, 16
          %371 = vsyncadd [#allocation5], %s370
          %s373 = sshll.u32 %s9, 4
          %s374 = int_to_ptr.vmem [resolvable:$true] %s373
          %376 = dma.vmem_to_smem %s374, 16, [#allocation15], [#allocation5]
        $region48: #{tpu_custom_call.1} parent=11 // pred_fallthru
          _
      $region12: #{tpu_custom_call.1} parent=5 // pred_fallthru
        _
      %p377 = scmp.lt.s32.totalorder %s26, 4
      // Predicated region
      $region49: #{tpu_custom_call.1} parent=5 // pred_check
        %p378 = pneg %p377
      $region50: #{tpu_custom_call.1} parent=5 // pred_check_branch
        %380 = sbr.rel (%p378) target = $region52
      $region51: #{tpu_custom_call.1} parent=5 // pred_region
        // Predicated region
        $region53: #{tpu_custom_call.1} parent=51 // pred_check
          %p381 = pneg %p46
        $region54: #{tpu_custom_call.1} parent=51 // pred_check_branch
          %383 = sbr.rel (%p381) target = $region56
        $region55: #{tpu_custom_call.1} parent=51 // pred_region
          %s384 = sand.u32 %s36, 1
          %s385 = scalar_lea.sflag [#allocation3], %s384
          %s386 = sand.u32 %s36, 1
          %s387 = smul.addr %s386, 128
          %s388 = scalar_lea.vmem [#allocation2], %s387
          %s390 = ssub.s32 2048, 2048
          %391 = vsyncadd %s385, %s390
          %s392 = smul.addr %s26, 16
          %s393 = smul.addr %s392, 128
          %s394 = scalar_lea.hbm %s0, %s393
          %s395 = sshll.u32 %s388, 4
          %s396 = int_to_ptr.vmem [resolvable:$true] %s395
          %401 = dma.hbm_to_vmem [thread:$0]  %s394, 2048, %s396, %s385, 128, 128, 8
        $region56: #{tpu_custom_call.1} parent=51 // pred_fallthru
          _
      $region52: #{tpu_custom_call.1} parent=5 // pred_fallthru
        _
      %p402 = scmp.le.s32.totalorder 1, %s26
      %p403 = scmp.lt.s32.totalorder %s26, 5
      %p404 = pnand %p402, %p403
      %p405 = pneg %p404
      // Predicated region
      $region57: #{tpu_custom_call.1} parent=5 // pred_check
        _
      $region58: #{tpu_custom_call.1} parent=5 // pred_check_branch
        %407 = sbr.rel (%p404) target = $region60
      $region59: #{tpu_custom_call.1} parent=5 // pred_region
        %s408 = ssub.s32 %s26, 1
        %s409 = sand.u32 %s39, 1
        %s410 = scalar_lea.sflag [#allocation3], %s409
        %s411 = sand.u32 %s39, 1
        %s412 = smul.addr %s411, 128
        %s413 = scalar_lea.vmem [#allocation2], %s412
        // Predicated region
        $region61: #{tpu_custom_call.1} parent=59 // pred_check
          %p414 = pneg %p52
        $region62: #{tpu_custom_call.1} parent=59 // pred_check_branch
          %416 = sbr.rel (%p414) target = $region64
        $region63: #{tpu_custom_call.1} parent=59 // pred_region
          %417 = dma.done %s410, 2048
        $region64: #{tpu_custom_call.1} parent=59 // pred_fallthru
          _
        // Predicated region
        $region65: #{tpu_custom_call.1} parent=59 // pred_check
          %p418 = pneg %p73
        $region66: #{tpu_custom_call.1} parent=59 // pred_check_branch
          %420 = sbr.rel (%p418) target = $region68
        $region67: #{tpu_custom_call.1} parent=59 // pred_region
          %421 = dma.done [#allocation7], 1024
        $region68: #{tpu_custom_call.1} parent=59 // pred_fallthru
          _
        // Predicated region
        $region69: #{tpu_custom_call.1} parent=59 // pred_check
          %p422 = pneg %p94
        $region70: #{tpu_custom_call.1} parent=59 // pred_check_branch
          %424 = sbr.rel (%p422) target = $region72
        $region71: #{tpu_custom_call.1} parent=59 // pred_region
          %425 = dma.done [#allocation7], 1024
        $region72: #{tpu_custom_call.1} parent=59 // pred_fallthru
          _
        // Predicated region
        $region73: #{tpu_custom_call.1} parent=59 // pred_check
          %p426 = pneg %p115
        $region74: #{tpu_custom_call.1} parent=59 // pred_check_branch
          %428 = sbr.rel (%p426) target = $region76
        $region75: #{tpu_custom_call.1} parent=59 // pred_region
          %429 = dma.done [#allocation10], 1024
        $region76: #{tpu_custom_call.1} parent=59 // pred_fallthru
          _
        // Predicated region
        $region77: #{tpu_custom_call.1} parent=59 // pred_check
          %p430 = pneg %p136
        $region78: #{tpu_custom_call.1} parent=59 // pred_check_branch
          %432 = sbr.rel (%p430) target = $region80
        $region79: #{tpu_custom_call.1} parent=59 // pred_region
          %433 = dma.done [#allocation10], 1024
        $region80: #{tpu_custom_call.1} parent=59 // pred_fallthru
          _
        // Predicated region
        $region81: #{tpu_custom_call.1} parent=59 // pred_check
          %p434 = pneg %p157
        $region82: #{tpu_custom_call.1} parent=59 // pred_check_branch
          %436 = sbr.rel (%p434) target = $region84
        $region83: #{tpu_custom_call.1} parent=59 // pred_region
          %437 = dma.done [#allocation13], 2048
        $region84: #{tpu_custom_call.1} parent=59 // pred_fallthru
          _
        // Predicated region
        $region85: #{tpu_custom_call.1} parent=59 // pred_check
          %p438 = pneg %p199
        $region86: #{tpu_custom_call.1} parent=59 // pred_check_branch
          %440 = sbr.rel (%p438) target = $region88
        $region87: #{tpu_custom_call.1} parent=59 // pred_region
          %441 = dma.done [#allocation13], 2048
        $region88: #{tpu_custom_call.1} parent=59 // pred_fallthru
          _
        // Predicated region
        $region89: #{tpu_custom_call.1} parent=59 // pred_check
          %p442 = pneg %p241
        $region90: #{tpu_custom_call.1} parent=59 // pred_check_branch
          %444 = sbr.rel (%p442) target = $region92
        $region91: #{tpu_custom_call.1} parent=59 // pred_region
          %445 = dma.done [#allocation5], 16
        $region92: #{tpu_custom_call.1} parent=59 // pred_fallthru
          _
        %446 = sfence
        %s447 = sand.u32 %s39, 1
        %s448 = scalar_lea.sflag [#allocation3], %s447
        %s449 = sand.u32 %s39, 1
        %s450 = smul.addr %s449, 128
        %s451 = scalar_lea.vmem [#allocation2], %s450
        %p452 = pneg %p52
        %p453 = pneg %p49
        %p454 = pneg %p73
        %p455 = pneg %p70
        %p456 = pneg %p94
        %p457 = pneg %p91
        %p458 = pneg %p115
        %p459 = pneg %p112
        %p460 = pneg %p136
        %p461 = pneg %p133
        %p462 = pneg %p157
        %p463 = pneg %p154
        %p464 = pneg %p178
        %p465 = pneg %p175
        %p466 = pneg %p199
        %p467 = pneg %p196
        %p468 = pneg %p220
        %p469 = pneg %p217
        %p470 = pneg %p241
        %p471 = pneg %p238
        %p472 = pneg %p267
        %p473 = pneg %p264
        %s474 = sand.u32 %s254, 1
        %s475 = scalar_lea.sflag [#allocation4], %s474
        %s476 = sand.u32 %s254, 1
        %s477 = smul.addr %s476, 128
        %s478 = scalar_lea.vmem [#allocation16], %s477
        %v480 = vld [vmem:[%s413] sm:$0xff]
        %v481 = vld [vmem:[%s413 + $0x8] sm:$0xff]
        %v482 = vld [vmem:[%s413 + $0x10] sm:$0xff]
        %v483 = vld [vmem:[%s413 + $0x18] sm:$0xff]
        %v484 = vld [vmem:[%s413 + $0x20] sm:$0xff]
        %v485 = vld [vmem:[%s413 + $0x28] sm:$0xff]
        %v486 = vld [vmem:[%s413 + $0x30] sm:$0xff]
        %v487 = vld [vmem:[%s413 + $0x38] sm:$0xff]
        %v488 = vld [vmem:[%s413 + $0x40] sm:$0xff]
        %v489 = vld [vmem:[%s413 + $0x48] sm:$0xff]
        %v490 = vld [vmem:[%s413 + $0x50] sm:$0xff]
        %v491 = vld [vmem:[%s413 + $0x58] sm:$0xff]
        %v492 = vld [vmem:[%s413 + $0x60] sm:$0xff]
        %v493 = vld [vmem:[%s413 + $0x68] sm:$0xff]
        %v494 = vld [vmem:[%s413 + $0x70] sm:$0xff]
        %v495 = vld [vmem:[%s413 + $0x78] sm:$0xff]
        %v496 = vpack.c.bf16 %v481, %v480
        %v497 = vpack.c.bf16 %v483, %v482
        %v498 = vpack.c.bf16 %v485, %v484
        %v499 = vpack.c.bf16 %v487, %v486
        %v500 = vpack.c.bf16 %v489, %v488
        %v501 = vpack.c.bf16 %v491, %v490
        %v502 = vpack.c.bf16 %v493, %v492
        %v503 = vpack.c.bf16 %v495, %v494
        %v504 = vld [vmem:[#allocation6] sm:$0xf]
        %v505 = vld [vmem:[#allocation6 + $0x4] sm:$0xf]
        %v506 = vld [vmem:[#allocation6 + $0x8] sm:$0xf]
        %v507 = vld [vmem:[#allocation6 + $0xc] sm:$0xf]
        %v508 = vld [vmem:[#allocation6 + $0x10] sm:$0xf]
        %v509 = vld [vmem:[#allocation6 + $0x14] sm:$0xf]
        %v510 = vld [vmem:[#allocation6 + $0x18] sm:$0xf]
        %v511 = vld [vmem:[#allocation6 + $0x1c] sm:$0xf]
        %v512 = vld [vmem:[#allocation6 + $0x20] sm:$0xf]
        %v513 = vld [vmem:[#allocation6 + $0x24] sm:$0xf]
        %v514 = vld [vmem:[#allocation6 + $0x28] sm:$0xf]
        %v515 = vld [vmem:[#allocation6 + $0x2c] sm:$0xf]
        %v516 = vld [vmem:[#allocation6 + $0x30] sm:$0xf]
        %v517 = vld [vmem:[#allocation6 + $0x34] sm:$0xf]
        %v518 = vld [vmem:[#allocation6 + $0x38] sm:$0xf]
        %v519 = vld [vmem:[#allocation6 + $0x3c] sm:$0xf]
        %v536 = vunpack.c.l.b16 %v504
        %v537 = vunpack.c.l.b16 %v505
        %v538 = vunpack.c.l.b16 %v506
        %v539 = vunpack.c.l.b16 %v507
        %v540 = vunpack.c.l.b16 %v508
        %v541 = vunpack.c.l.b16 %v509
        %v542 = vunpack.c.l.b16 %v510
        %v543 = vunpack.c.l.b16 %v511
        %v544 = vunpack.c.l.b16 %v512
        %v545 = vunpack.c.l.b16 %v513
        %v546 = vunpack.c.l.b16 %v514
        %v547 = vunpack.c.l.b16 %v515
        %v548 = vunpack.c.l.b16 %v516
        %v549 = vunpack.c.l.b16 %v517
        %v550 = vunpack.c.l.b16 %v518
        %v551 = vunpack.c.l.b16 %v519
        %v552 = vpack.c.b16 %v537, %v536
        %v553 = vpack.c.b16 %v539, %v538
        %v554 = vpack.c.b16 %v541, %v540
        %v555 = vpack.c.b16 %v543, %v542
        %v556 = vpack.c.b16 %v545, %v544
        %v557 = vpack.c.b16 %v547, %v546
        %v558 = vpack.c.b16 %v549, %v548
        %v559 = vpack.c.b16 %v551, %v550
        %568 = vmatprep.subr.bf16.mxu0 0
        %569 = vmatpush1.bf16.msra.mxu0 %v552
        %570 = vmatprep.subr.bf16.mxu0 0
        %571 = vmatpush1.bf16.msra.mxu0 %v553
        %572 = vmatprep.subr.bf16.mxu0 0
        %573 = vmatpush1.bf16.msra.mxu0 %v554
        %574 = vmatprep.subr.bf16.mxu0 0
        %575 = vmatpush1.bf16.msra.mxu0 %v555
        %576 = vmatprep.subr.bf16.mxu0 0
        %577 = vmatpush1.bf16.msra.mxu0 %v556
        %578 = vmatprep.subr.bf16.mxu0 0
        %579 = vmatpush1.bf16.msra.mxu0 %v557
        %580 = vmatprep.subr.bf16.mxu0 0
        %581 = vmatpush1.bf16.msra.mxu0 %v558
        %582 = vmatprep.subr.bf16.mxu0 0
        %583 = vmatpush1.bf16.msra.mxu0 %v559
        %584 = vmatprep.subr.bf16.mxu0 0
        %585 = vmatpush1.bf16.msra.mxu0 0
        %586 = vmatprep.subr.bf16.mxu0 0
        %587 = vmatpush1.bf16.msra.mxu0 0
        %588 = vmatprep.subr.bf16.mxu0 0
        %589 = vmatpush1.bf16.msra.mxu0 0
        %590 = vmatprep.subr.bf16.mxu0 0
        %591 = vmatpush1.bf16.msra.mxu0 0
        %592 = vmatprep.subr.bf16.mxu0 0
        %593 = vmatpush1.bf16.msra.mxu0 0
        %594 = vmatprep.subr.bf16.mxu0 0
        %595 = vmatpush1.bf16.msra.mxu0 0
        %596 = vmatprep.subr.bf16.mxu0 0
        %597 = vmatpush1.bf16.msra.mxu0 0
        %598 = vmatprep.subr.bf16.mxu0 0
        %599 = vmatpush1.bf16.msra.mxu0 0
        %600 = vmatprep.mubr.bf16.mxu0 0
        %601 = vmatmul.mubr.bf16.gmra.mrb[0].mxu0 %v496
        %v602 = vpop.f32.mrb[0].mxu0
        %v603 = vadd.f32 0.0, %v602
        %v604 = vpop.f32.mrb[0].mxu0
        %v605 = vpop.f32.mrb[0].mxu0
        %v606 = vadd.f32 0.0, %v605
        %v607 = vpop.f32.mrb[0].mxu0
        %608 = vmatprep.mubr.bf16.mxu0 0
        %609 = vmatmul.mubr.bf16.gmra.mrb[0].mxu0 %v497
        %v610 = vpop.f32.mrb[0].mxu0
        %v611 = vadd.f32 0.0, %v610
        %v612 = vpop.f32.mrb[0].mxu0
        %v613 = vpop.f32.mrb[0].mxu0
        %v614 = vadd.f32 0.0, %v613
        %v615 = vpop.f32.mrb[0].mxu0
        %616 = vmatprep.mubr.bf16.mxu0 0
        %617 = vmatmul.mubr.bf16.gmra.mrb[0].mxu0 %v498
        %v618 = vpop.f32.mrb[0].mxu0
        %v619 = vadd.f32 0.0, %v618
        %v620 = vpop.f32.mrb[0].mxu0
        %v621 = vpop.f32.mrb[0].mxu0
        %v622 = vadd.f32 0.0, %v621
        %v623 = vpop.f32.mrb[0].mxu0
        %624 = vmatprep.mubr.bf16.mxu0 0
        %625 = vmatmul.mubr.bf16.gmra.mrb[0].mxu0 %v499
        %v626 = vpop.f32.mrb[0].mxu0
        %v627 = vadd.f32 0.0, %v626
        %v628 = vpop.f32.mrb[0].mxu0
        %v629 = vpop.f32.mrb[0].mxu0
        %v630 = vadd.f32 0.0, %v629
        %v631 = vpop.f32.mrb[0].mxu0
        %632 = vmatprep.mubr.bf16.mxu0 0
        %633 = vmatmul.mubr.bf16.gmra.mrb[0].mxu0 %v500
        %v634 = vpop.f32.mrb[0].mxu0
        %v635 = vadd.f32 0.0, %v634
        %v636 = vpop.f32.mrb[0].mxu0
        %v637 = vpop.f32.mrb[0].mxu0
        %v638 = vadd.f32 0.0, %v637
        %v639 = vpop.f32.mrb[0].mxu0
        %640 = vmatprep.mubr.bf16.mxu0 0
        %641 = vmatmul.mubr.bf16.gmra.mrb[0].mxu0 %v501
        %v642 = vpop.f32.mrb[0].mxu0
        %v643 = vadd.f32 0.0, %v642
        %v644 = vpop.f32.mrb[0].mxu0
        %v645 = vpop.f32.mrb[0].mxu0
        %v646 = vadd.f32 0.0, %v645
        %v647 = vpop.f32.mrb[0].mxu0
        %648 = vmatprep.mubr.bf16.mxu0 0
        %649 = vmatmul.mubr.bf16.gmra.mrb[0].mxu0 %v502
        %v650 = vpop.f32.mrb[0].mxu0
        %v651 = vadd.f32 0.0, %v650
        %v652 = vpop.f32.mrb[0].mxu0
        %v653 = vpop.f32.mrb[0].mxu0
        %v654 = vadd.f32 0.0, %v653
        %v655 = vpop.f32.mrb[0].mxu0
        %656 = vmatprep.mubr.bf16.mxu0 0
        %657 = vmatmul.mubr.bf16.gmra.mrb[0].mxu0 %v503
        %v658 = vpop.f32.mrb[0].mxu0
        %v659 = vadd.f32 0.0, %v658
        %v660 = vpop.f32.mrb[0].mxu0
        %v661 = vpop.f32.mrb[0].mxu0
        %v662 = vadd.f32 0.0, %v661
        %v663 = vpop.f32.mrb[0].mxu0
        %664 = vdwg.mxu0
        %v665 = vmul.f32 %v603, 0.17677669
        %v666 = vmul.f32 %v606, 0.17677669
        %v667 = vmul.f32 %v611, 0.17677669
        %v668 = vmul.f32 %v614, 0.17677669
        %v669 = vmul.f32 %v619, 0.17677669
        %v670 = vmul.f32 %v622, 0.17677669
        %v671 = vmul.f32 %v627, 0.17677669
        %v672 = vmul.f32 %v630, 0.17677669
        %v673 = vmul.f32 %v635, 0.17677669
        %v674 = vmul.f32 %v638, 0.17677669
        %v675 = vmul.f32 %v643, 0.17677669
        %v676 = vmul.f32 %v646, 0.17677669
        %v677 = vmul.f32 %v651, 0.17677669
        %v678 = vmul.f32 %v654, 0.17677669
        %v679 = vmul.f32 %v659, 0.17677669
        %v680 = vmul.f32 %v662, 0.17677669
        %v681 = vpack.c.bf16 %v666, %v665
        %v682 = vpack.c.bf16 %v668, %v667
        %v683 = vpack.c.bf16 %v670, %v669
        %v684 = vpack.c.bf16 %v672, %v671
        %v685 = vpack.c.bf16 %v674, %v673
        %v686 = vpack.c.bf16 %v676, %v675
        %v687 = vpack.c.bf16 %v678, %v677
        %v688 = vpack.c.bf16 %v680, %v679
        %v689 = vld [vmem:[#allocation8] sm:$0xf]
        %v690 = vld [vmem:[#allocation8 + $0x4] sm:$0xf]
        %v691 = vld [vmem:[#allocation8 + $0x8] sm:$0xf]
        %v692 = vld [vmem:[#allocation8 + $0xc] sm:$0xf]
        %v693 = vld [vmem:[#allocation8 + $0x10] sm:$0xf]
        %v694 = vld [vmem:[#allocation8 + $0x14] sm:$0xf]
        %v695 = vld [vmem:[#allocation8 + $0x18] sm:$0xf]
        %v696 = vld [vmem:[#allocation8 + $0x1c] sm:$0xf]
        %v697 = vld [vmem:[#allocation8 + $0x20] sm:$0xf]
        %v698 = vld [vmem:[#allocation8 + $0x24] sm:$0xf]
        %v699 = vld [vmem:[#allocation8 + $0x28] sm:$0xf]
        %v700 = vld [vmem:[#allocation8 + $0x2c] sm:$0xf]
        %v701 = vld [vmem:[#allocation8 + $0x30] sm:$0xf]
        %v702 = vld [vmem:[#allocation8 + $0x34] sm:$0xf]
        %v703 = vld [vmem:[#allocation8 + $0x38] sm:$0xf]
        %v704 = vld [vmem:[#allocation8 + $0x3c] sm:$0xf]
        %v721 = vunpack.c.l.b16 %v689
        %v722 = vunpack.c.l.b16 %v690
        %v723 = vunpack.c.l.b16 %v691
        %v724 = vunpack.c.l.b16 %v692
        %v725 = vunpack.c.l.b16 %v693
        %v726 = vunpack.c.l.b16 %v694
        %v727 = vunpack.c.l.b16 %v695
        %v728 = vunpack.c.l.b16 %v696
        %v729 = vunpack.c.l.b16 %v697
        %v730 = vunpack.c.l.b16 %v698
        %v731 = vunpack.c.l.b16 %v699
        %v732 = vunpack.c.l.b16 %v700
        %v733 = vunpack.c.l.b16 %v701
        %v734 = vunpack.c.l.b16 %v702
        %v735 = vunpack.c.l.b16 %v703
        %v736 = vunpack.c.l.b16 %v704
        %v737 = vpack.c.b16 %v722, %v721
        %v738 = vpack.c.b16 %v724, %v723
        %v739 = vpack.c.b16 %v726, %v725
        %v740 = vpack.c.b16 %v728, %v727
        %v741 = vpack.c.b16 %v730, %v729
        %v742 = vpack.c.b16 %v732, %v731
        %v743 = vpack.c.b16 %v734, %v733
        %v744 = vpack.c.b16 %v736, %v735
        %753 = vmatprep.subr.bf16.mxu0 0
        %754 = vmatpush1.bf16.msra.mxu0 %v737
        %755 = vmatprep.subr.bf16.mxu0 0
        %756 = vmatpush1.bf16.msra.mxu0 %v738
        %757 = vmatprep.subr.bf16.mxu0 0
        %758 = vmatpush1.bf16.msra.mxu0 %v739
        %759 = vmatprep.subr.bf16.mxu0 0
        %760 = vmatpush1.bf16.msra.mxu0 %v740
        %761 = vmatprep.subr.bf16.mxu0 0
        %762 = vmatpush1.bf16.msra.mxu0 %v741
        %763 = vmatprep.subr.bf16.mxu0 0
        %764 = vmatpush1.bf16.msra.mxu0 %v742
        %765 = vmatprep.subr.bf16.mxu0 0
        %766 = vmatpush1.bf16.msra.mxu0 %v743
        %767 = vmatprep.subr.bf16.mxu0 0
        %768 = vmatpush1.bf16.msra.mxu0 %v744
        %769 = vmatprep.subr.bf16.mxu0 0
        %770 = vmatpush1.bf16.msra.mxu0 0
        %771 = vmatprep.subr.bf16.mxu0 0
        %772 = vmatpush1.bf16.msra.mxu0 0
        %773 = vmatprep.subr.bf16.mxu0 0
        %774 = vmatpush1.bf16.msra.mxu0 0
        %775 = vmatprep.subr.bf16.mxu0 0
        %776 = vmatpush1.bf16.msra.mxu0 0
        %777 = vmatprep.subr.bf16.mxu0 0
        %778 = vmatpush1.bf16.msra.mxu0 0
        %779 = vmatprep.subr.bf16.mxu0 0
        %780 = vmatpush1.bf16.msra.mxu0 0
        %781 = vmatprep.subr.bf16.mxu0 0
        %782 = vmatpush1.bf16.msra.mxu0 0
        %783 = vmatprep.subr.bf16.mxu0 0
        %784 = vmatpush1.bf16.msra.mxu0 0
        %785 = vmatprep.mubr.bf16.mxu0 0
        %786 = vmatmul.mubr.bf16.gmra.mrb[0].mxu0 %v496
        %v787 = vpop.f32.mrb[0].mxu0
        %v788 = vadd.f32 0.0, %v787
        %v789 = vpop.f32.mrb[0].mxu0
        %v790 = vpop.f32.mrb[0].mxu0
        %v791 = vadd.f32 0.0, %v790
        %v792 = vpop.f32.mrb[0].mxu0
        %793 = vmatprep.mubr.bf16.mxu0 0
        %794 = vmatmul.mubr.bf16.gmra.mrb[0].mxu0 %v497
        %v795 = vpop.f32.mrb[0].mxu0
        %v796 = vadd.f32 0.0, %v795
        %v797 = vpop.f32.mrb[0].mxu0
        %v798 = vpop.f32.mrb[0].mxu0
        %v799 = vadd.f32 0.0, %v798
        %v800 = vpop.f32.mrb[0].mxu0
        %801 = vmatprep.mubr.bf16.mxu0 0
        %802 = vmatmul.mubr.bf16.gmra.mrb[0].mxu0 %v498
        %v803 = vpop.f32.mrb[0].mxu0
        %v804 = vadd.f32 0.0, %v803
        %v805 = vpop.f32.mrb[0].mxu0
        %v806 = vpop.f32.mrb[0].mxu0
        %v807 = vadd.f32 0.0, %v806
        %v808 = vpop.f32.mrb[0].mxu0
        %809 = vmatprep.mubr.bf16.mxu0 0
        %810 = vmatmul.mubr.bf16.gmra.mrb[0].mxu0 %v499
        %v811 = vpop.f32.mrb[0].mxu0
        %v812 = vadd.f32 0.0, %v811
        %v813 = vpop.f32.mrb[0].mxu0
        %v814 = vpop.f32.mrb[0].mxu0
        %v815 = vadd.f32 0.0, %v814
        %v816 = vpop.f32.mrb[0].mxu0
        %817 = vmatprep.mubr.bf16.mxu0 0
        %818 = vmatmul.mubr.bf16.gmra.mrb[0].mxu0 %v500
        %v819 = vpop.f32.mrb[0].mxu0
        %v820 = vadd.f32 0.0, %v819
        %v821 = vpop.f32.mrb[0].mxu0
        %v822 = vpop.f32.mrb[0].mxu0
        %v823 = vadd.f32 0.0, %v822
        %v824 = vpop.f32.mrb[0].mxu0
        %825 = vmatprep.mubr.bf16.mxu0 0
        %826 = vmatmul.mubr.bf16.gmra.mrb[0].mxu0 %v501
        %v827 = vpop.f32.mrb[0].mxu0
        %v828 = vadd.f32 0.0, %v827
        %v829 = vpop.f32.mrb[0].mxu0
        %v830 = vpop.f32.mrb[0].mxu0
        %v831 = vadd.f32 0.0, %v830
        %v832 = vpop.f32.mrb[0].mxu0
        %833 = vmatprep.mubr.bf16.mxu0 0
        %834 = vmatmul.mubr.bf16.gmra.mrb[0].mxu0 %v502
        %v835 = vpop.f32.mrb[0].mxu0
        %v836 = vadd.f32 0.0, %v835
        %v837 = vpop.f32.mrb[0].mxu0
        %v838 = vpop.f32.mrb[0].mxu0
        %v839 = vadd.f32 0.0, %v838
        %v840 = vpop.f32.mrb[0].mxu0
        %841 = vmatprep.mubr.bf16.mxu0 0
        %842 = vmatmul.mubr.bf16.gmra.mrb[0].mxu0 %v503
        %v843 = vpop.f32.mrb[0].mxu0
        %v844 = vadd.f32 0.0, %v843
        %v845 = vpop.f32.mrb[0].mxu0
        %v846 = vpop.f32.mrb[0].mxu0
        %v847 = vadd.f32 0.0, %v846
        %v848 = vpop.f32.mrb[0].mxu0
        %849 = vdwg.mxu0
        %v850 = vpack.c.bf16 %v791, %v788
        %v851 = vpack.c.bf16 %v799, %v796
        %v852 = vpack.c.bf16 %v807, %v804
        %v853 = vpack.c.bf16 %v815, %v812
        %v854 = vpack.c.bf16 %v823, %v820
        %v855 = vpack.c.bf16 %v831, %v828
        %v856 = vpack.c.bf16 %v839, %v836
        %v857 = vpack.c.bf16 %v847, %v844
        %v858 = vld [vmem:[#allocation9] sm:$0xf]
        %v859 = vld [vmem:[#allocation9 + $0x4] sm:$0xf]
        %v860 = vld [vmem:[#allocation9 + $0x8] sm:$0xf]
        %v861 = vld [vmem:[#allocation9 + $0xc] sm:$0xf]
        %v862 = vld [vmem:[#allocation9 + $0x10] sm:$0xf]
        %v863 = vld [vmem:[#allocation9 + $0x14] sm:$0xf]
        %v864 = vld [vmem:[#allocation9 + $0x18] sm:$0xf]
        %v865 = vld [vmem:[#allocation9 + $0x1c] sm:$0xf]
        %v866 = vld [vmem:[#allocation9 + $0x20] sm:$0xf]
        %v867 = vld [vmem:[#allocation9 + $0x24] sm:$0xf]
        %v868 = vld [vmem:[#allocation9 + $0x28] sm:$0xf]
        %v869 = vld [vmem:[#allocation9 + $0x2c] sm:$0xf]
        %v870 = vld [vmem:[#allocation9 + $0x30] sm:$0xf]
        %v871 = vld [vmem:[#allocation9 + $0x34] sm:$0xf]
        %v872 = vld [vmem:[#allocation9 + $0x38] sm:$0xf]
        %v873 = vld [vmem:[#allocation9 + $0x3c] sm:$0xf]
        %v890 = vunpack.c.l.b16 %v858
        %v891 = vunpack.c.l.b16 %v859
        %v892 = vunpack.c.l.b16 %v860
        %v893 = vunpack.c.l.b16 %v861
        %v894 = vunpack.c.l.b16 %v862
        %v895 = vunpack.c.l.b16 %v863
        %v896 = vunpack.c.l.b16 %v864
        %v897 = vunpack.c.l.b16 %v865
        %v898 = vunpack.c.l.b16 %v866
        %v899 = vunpack.c.l.b16 %v867
        %v900 = vunpack.c.l.b16 %v868
        %v901 = vunpack.c.l.b16 %v869
        %v902 = vunpack.c.l.b16 %v870
        %v903 = vunpack.c.l.b16 %v871
        %v904 = vunpack.c.l.b16 %v872
        %v905 = vunpack.c.l.b16 %v873
        %v906 = vpack.c.b16 %v891, %v890
        %v907 = vpack.c.b16 %v893, %v892
        %v908 = vpack.c.b16 %v895, %v894
        %v909 = vpack.c.b16 %v897, %v896
        %v910 = vpack.c.b16 %v899, %v898
        %v911 = vpack.c.b16 %v901, %v900
        %v912 = vpack.c.b16 %v903, %v902
        %v913 = vpack.c.b16 %v905, %v904
        %922 = vmatprep.subr.bf16.mxu0 0
        %923 = vmatpush1.bf16.msra.mxu0 %v906
        %924 = vmatprep.subr.bf16.mxu0 0
        %925 = vmatpush1.bf16.msra.mxu0 %v907
        %926 = vmatprep.subr.bf16.mxu0 0
        %927 = vmatpush1.bf16.msra.mxu0 %v908
        %928 = vmatprep.subr.bf16.mxu0 0
        %929 = vmatpush1.bf16.msra.mxu0 %v909
        %930 = vmatprep.subr.bf16.mxu0 0
        %931 = vmatpush1.bf16.msra.mxu0 %v910
        %932 = vmatprep.subr.bf16.mxu0 0
        %933 = vmatpush1.bf16.msra.mxu0 %v911
        %934 = vmatprep.subr.bf16.mxu0 0
        %935 = vmatpush1.bf16.msra.mxu0 %v912
        %936 = vmatprep.subr.bf16.mxu0 0
        %937 = vmatpush1.bf16.msra.mxu0 %v913
        %938 = vmatprep.subr.bf16.mxu0 0
        %939 = vmatpush1.bf16.msra.mxu0 0
        %940 = vmatprep.subr.bf16.mxu0 0
        %941 = vmatpush1.bf16.msra.mxu0 0
        %942 = vmatprep.subr.bf16.mxu0 0
        %943 = vmatpush1.bf16.msra.mxu0 0
        %944 = vmatprep.subr.bf16.mxu0 0
        %945 = vmatpush1.bf16.msra.mxu0 0
        %946 = vmatprep.subr.bf16.mxu0 0
        %947 = vmatpush1.bf16.msra.mxu0 0
        %948 = vmatprep.subr.bf16.mxu0 0
        %949 = vmatpush1.bf16.msra.mxu0 0
        %950 = vmatprep.subr.bf16.mxu0 0
        %951 = vmatpush1.bf16.msra.mxu0 0
        %952 = vmatprep.subr.bf16.mxu0 0
        %953 = vmatpush1.bf16.msra.mxu0 0
        %954 = vmatprep.mubr.bf16.mxu0 0
        %955 = vmatmul.mubr.bf16.gmra.mrb[0].mxu0 %v496
        %v956 = vpop.f32.mrb[0].mxu0
        %v957 = vadd.f32 0.0, %v956
        %v958 = vpop.f32.mrb[0].mxu0
        %v959 = vpop.f32.mrb[0].mxu0
        %v960 = vadd.f32 0.0, %v959
        %v961 = vpop.f32.mrb[0].mxu0
        %962 = vmatprep.mubr.bf16.mxu0 0
        %963 = vmatmul.mubr.bf16.gmra.mrb[0].mxu0 %v497
        %v964 = vpop.f32.mrb[0].mxu0
        %v965 = vadd.f32 0.0, %v964
        %v966 = vpop.f32.mrb[0].mxu0
        %v967 = vpop.f32.mrb[0].mxu0
        %v968 = vadd.f32 0.0, %v967
        %v969 = vpop.f32.mrb[0].mxu0
        %970 = vmatprep.mubr.bf16.mxu0 0
        %971 = vmatmul.mubr.bf16.gmra.mrb[0].mxu0 %v498
        %v972 = vpop.f32.mrb[0].mxu0
        %v973 = vadd.f32 0.0, %v972
        %v974 = vpop.f32.mrb[0].mxu0
        %v975 = vpop.f32.mrb[0].mxu0
        %v976 = vadd.f32 0.0, %v975
        %v977 = vpop.f32.mrb[0].mxu0
        %978 = vmatprep.mubr.bf16.mxu0 0
        %979 = vmatmul.mubr.bf16.gmra.mrb[0].mxu0 %v499
        %v980 = vpop.f32.mrb[0].mxu0
        %v981 = vadd.f32 0.0, %v980
        %v982 = vpop.f32.mrb[0].mxu0
        %v983 = vpop.f32.mrb[0].mxu0
        %v984 = vadd.f32 0.0, %v983
        %v985 = vpop.f32.mrb[0].mxu0
        %986 = vmatprep.mubr.bf16.mxu0 0
        %987 = vmatmul.mubr.bf16.gmra.mrb[0].mxu0 %v500
        %v988 = vpop.f32.mrb[0].mxu0
        %v989 = vadd.f32 0.0, %v988
        %v990 = vpop.f32.mrb[0].mxu0
        %v991 = vpop.f32.mrb[0].mxu0
        %v992 = vadd.f32 0.0, %v991
        %v993 = vpop.f32.mrb[0].mxu0
        %994 = vmatprep.mubr.bf16.mxu0 0
        %995 = vmatmul.mubr.bf16.gmra.mrb[0].mxu0 %v501
        %v996 = vpop.f32.mrb[0].mxu0
        %v997 = vadd.f32 0.0, %v996
        %v998 = vpop.f32.mrb[0].mxu0
        %v999 = vpop.f32.mrb[0].mxu0
        %v1000 = vadd.f32 0.0, %v999
        %v1001 = vpop.f32.mrb[0].mxu0
        %1002 = vmatprep.mubr.bf16.mxu0 0
        %1003 = vmatmul.mubr.bf16.gmra.mrb[0].mxu0 %v502
        %v1004 = vpop.f32.mrb[0].mxu0
        %v1005 = vadd.f32 0.0, %v1004
        %v1006 = vpop.f32.mrb[0].mxu0
        %v1007 = vpop.f32.mrb[0].mxu0
        %v1008 = vadd.f32 0.0, %v1007
        %v1009 = vpop.f32.mrb[0].mxu0
        %1010 = vmatprep.mubr.bf16.mxu0 0
        %1011 = vmatmul.mubr.bf16.gmra.mrb[0].mxu0 %v503
        %v1012 = vpop.f32.mrb[0].mxu0
        %v1013 = vadd.f32 0.0, %v1012
        %v1014 = vpop.f32.mrb[0].mxu0
        %v1015 = vpop.f32.mrb[0].mxu0
        %v1016 = vadd.f32 0.0, %v1015
        %v1017 = vpop.f32.mrb[0].mxu0
        %1018 = vdwg.mxu0
        %v1019 = vpack.c.bf16 %v960, %v957
        %v1020 = vpack.c.bf16 %v968, %v965
        %v1021 = vpack.c.bf16 %v976, %v973
        %v1022 = vpack.c.bf16 %v984, %v981
        %v1023 = vpack.c.bf16 %v992, %v989
        %v1024 = vpack.c.bf16 %v1000, %v997
        %v1025 = vpack.c.bf16 %v1008, %v1005
        %v1026 = vpack.c.bf16 %v1016, %v1013
        %vm1027 = vcmask 261120
        %v1029 = vsel %vm1027, %v681, 0
        %v1032 = vsel %vm1027, %v682, 0
        %v1035 = vsel %vm1027, %v683, 0
        %v1038 = vsel %vm1027, %v684, 0
        %v1041 = vsel %vm1027, %v685, 0
        %v1044 = vsel %vm1027, %v686, 0
        %v1047 = vsel %vm1027, %v687, 0
        %v1050 = vsel %vm1027, %v688, 0
        %v1053 = vsel %vm1027, %v850, 0
        %v1056 = vsel %vm1027, %v851, 0
        %v1059 = vsel %vm1027, %v852, 0
        %v1062 = vsel %vm1027, %v853, 0
        %v1065 = vsel %vm1027, %v854, 0
        %v1068 = vsel %vm1027, %v855, 0
        %v1071 = vsel %vm1027, %v856, 0
        %v1074 = vsel %vm1027, %v857, 0
        %1076 = vmatprep.subr.bf16.mxu0 0
        %1077 = vmatpush1.bf16.xpose.msra.mxu0 %v1053
        %1078 = vmatprep.subr.bf16.mxu0 0
        %1079 = vmatpush1.bf16.xpose.msra.mxu0 %v1056
        %1080 = vmatprep.subr.bf16.mxu0 0
        %1081 = vmatpush1.bf16.xpose.msra.mxu0 %v1059
        %1082 = vmatprep.subr.bf16.mxu0 0
        %1083 = vmatpush1.bf16.xpose.msra.mxu0 %v1062
        %1084 = vmatprep.subr.bf16.mxu0 0
        %1085 = vmatpush1.bf16.xpose.msra.mxu0 %v1065
        %1086 = vmatprep.subr.bf16.mxu0 0
        %1087 = vmatpush1.bf16.xpose.msra.mxu0 %v1068
        %1088 = vmatprep.subr.bf16.mxu0 0
        %1089 = vmatpush1.bf16.xpose.msra.mxu0 %v1071
        %1090 = vmatprep.subr.bf16.mxu0 0
        %1091 = vmatpush1.bf16.xpose.msra.mxu0 %v1074
        %1092 = vmatprep.subr.bf16.mxu0 0
        %1093 = vmatpush1.bf16.xpose.msra.mxu0 0
        %1094 = vmatprep.subr.bf16.mxu0 0
        %1095 = vmatpush1.bf16.xpose.msra.mxu0 0
        %1096 = vmatprep.subr.bf16.mxu0 0
        %1097 = vmatpush1.bf16.xpose.msra.mxu0 0
        %1098 = vmatprep.subr.bf16.mxu0 0
        %1099 = vmatpush1.bf16.xpose.msra.mxu0 0
        %1100 = vmatprep.subr.bf16.mxu0 0
        %1101 = vmatpush1.bf16.xpose.msra.mxu0 0
        %1102 = vmatprep.subr.bf16.mxu0 0
        %1103 = vmatpush1.bf16.xpose.msra.mxu0 0
        %1104 = vmatprep.subr.bf16.mxu0 0
        %1105 = vmatpush1.bf16.xpose.msra.mxu0 0
        %1106 = vmatprep.subr.bf16.mxu0 0
        %1107 = vmatpush1.bf16.xpose.msra.mxu0 0
        %1108 = vmatprep.mubr.bf16.mxu0 0
        %1109 = vmatmul.mubr.bf16.gmra.mrb[0].mxu0 %v1029
        %v1110 = vpop.f32.mrb[0].mxu0
        %v1111 = vadd.f32 0.0, %v1110
        %v1112 = vpop.f32.mrb[0].mxu0
        %v1113 = vpop.f32.mrb[0].mxu0
        %v1114 = vadd.f32 0.0, %v1113
        %v1115 = vpop.f32.mrb[0].mxu0
        %1116 = vmatprep.mubr.bf16.mxu0 0
        %1117 = vmatmul.mubr.bf16.gmra.mrb[0].mxu0 %v1032
        %v1118 = vpop.f32.mrb[0].mxu0
        %v1119 = vadd.f32 0.0, %v1118
        %v1120 = vpop.f32.mrb[0].mxu0
        %v1121 = vpop.f32.mrb[0].mxu0
        %v1122 = vadd.f32 0.0, %v1121
        %v1123 = vpop.f32.mrb[0].mxu0
        %1124 = vmatprep.mubr.bf16.mxu0 0
        %1125 = vmatmul.mubr.bf16.gmra.mrb[0].mxu0 %v1035
        %v1126 = vpop.f32.mrb[0].mxu0
        %v1127 = vadd.f32 0.0, %v1126
        %v1128 = vpop.f32.mrb[0].mxu0
        %v1129 = vpop.f32.mrb[0].mxu0
        %v1130 = vadd.f32 0.0, %v1129
        %v1131 = vpop.f32.mrb[0].mxu0
        %1132 = vmatprep.mubr.bf16.mxu0 0
        %1133 = vmatmul.mubr.bf16.gmra.mrb[0].mxu0 %v1038
        %v1134 = vpop.f32.mrb[0].mxu0
        %v1135 = vadd.f32 0.0, %v1134
        %v1136 = vpop.f32.mrb[0].mxu0
        %v1137 = vpop.f32.mrb[0].mxu0
        %v1138 = vadd.f32 0.0, %v1137
        %v1139 = vpop.f32.mrb[0].mxu0
        %1140 = vmatprep.mubr.bf16.mxu0 0
        %1141 = vmatmul.mubr.bf16.gmra.mrb[0].mxu0 %v1041
        %v1142 = vpop.f32.mrb[0].mxu0
        %v1143 = vadd.f32 0.0, %v1142
        %v1144 = vpop.f32.mrb[0].mxu0
        %v1145 = vpop.f32.mrb[0].mxu0
        %v1146 = vadd.f32 0.0, %v1145
        %v1147 = vpop.f32.mrb[0].mxu0
        %1148 = vmatprep.mubr.bf16.mxu0 0
        %1149 = vmatmul.mubr.bf16.gmra.mrb[0].mxu0 %v1044
        %v1150 = vpop.f32.mrb[0].mxu0
        %v1151 = vadd.f32 0.0, %v1150
        %v1152 = vpop.f32.mrb[0].mxu0
        %v1153 = vpop.f32.mrb[0].mxu0
        %v1154 = vadd.f32 0.0, %v1153
        %v1155 = vpop.f32.mrb[0].mxu0
        %1156 = vmatprep.mubr.bf16.mxu0 0
        %1157 = vmatmul.mubr.bf16.gmra.mrb[0].mxu0 %v1047
        %v1158 = vpop.f32.mrb[0].mxu0
        %v1159 = vadd.f32 0.0, %v1158
        %v1160 = vpop.f32.mrb[0].mxu0
        %v1161 = vpop.f32.mrb[0].mxu0
        %v1162 = vadd.f32 0.0, %v1161
        %v1163 = vpop.f32.mrb[0].mxu0
        %1164 = vmatprep.mubr.bf16.mxu0 0
        %1165 = vmatmul.mubr.bf16.gmra.mrb[0].mxu0 %v1050
        %v1166 = vpop.f32.mrb[0].mxu0
        %v1167 = vadd.f32 0.0, %v1166
        %v1168 = vpop.f32.mrb[0].mxu0
        %v1169 = vpop.f32.mrb[0].mxu0
        %v1170 = vadd.f32 0.0, %v1169
        %v1171 = vpop.f32.mrb[0].mxu0
        %1172 = vdwg.mxu0
        %1173 = vmax.xlane.f32.xlu0 %v1111
        %v1174 = vpop.xlane.xlu0 %1173
        %1175 = vmax.xlane.f32.xlu0 %v1114
        %v1176 = vpop.xlane.xlu0 %1175
        %1177 = vmax.xlane.f32.xlu0 %v1119
        %v1178 = vpop.xlane.xlu0 %1177
        %1179 = vmax.xlane.f32.xlu0 %v1122
        %v1180 = vpop.xlane.xlu0 %1179
        %1181 = vmax.xlane.f32.xlu0 %v1127
        %v1182 = vpop.xlane.xlu0 %1181
        %1183 = vmax.xlane.f32.xlu0 %v1130
        %v1184 = vpop.xlane.xlu0 %1183
        %1185 = vmax.xlane.f32.xlu0 %v1135
        %v1186 = vpop.xlane.xlu0 %1185
        %1187 = vmax.xlane.f32.xlu0 %v1138
        %v1188 = vpop.xlane.xlu0 %1187
        %1189 = vmax.xlane.f32.xlu0 %v1143
        %v1190 = vpop.xlane.xlu0 %1189
        %1191 = vmax.xlane.f32.xlu0 %v1146
        %v1192 = vpop.xlane.xlu0 %1191
        %1193 = vmax.xlane.f32.xlu0 %v1151
        %v1194 = vpop.xlane.xlu0 %1193
        %1195 = vmax.xlane.f32.xlu0 %v1154
        %v1196 = vpop.xlane.xlu0 %1195
        %1197 = vmax.xlane.f32.xlu0 %v1159
        %v1198 = vpop.xlane.xlu0 %1197
        %1199 = vmax.xlane.f32.xlu0 %v1162
        %v1200 = vpop.xlane.xlu0 %1199
        %1201 = vmax.xlane.f32.xlu0 %v1167
        %v1202 = vpop.xlane.xlu0 %1201
        %1203 = vmax.xlane.f32.xlu0 %v1170
        %v1204 = vpop.xlane.xlu0 %1203
        %v1205 = vsub.f32 %v1111, %v1174
        %v1206 = vsub.f32 %v1114, %v1176
        %v1207 = vsub.f32 %v1119, %v1178
        %v1208 = vsub.f32 %v1122, %v1180
        %v1209 = vsub.f32 %v1127, %v1182
        %v1210 = vsub.f32 %v1130, %v1184
        %v1211 = vsub.f32 %v1135, %v1186
        %v1212 = vsub.f32 %v1138, %v1188
        %v1213 = vsub.f32 %v1143, %v1190
        %v1214 = vsub.f32 %v1146, %v1192
        %v1215 = vsub.f32 %v1151, %v1194
        %v1216 = vsub.f32 %v1154, %v1196
        %v1217 = vsub.f32 %v1159, %v1198
        %v1218 = vsub.f32 %v1162, %v1200
        %v1219 = vsub.f32 %v1167, %v1202
        %v1220 = vsub.f32 %v1170, %v1204
        %v1221 = vmul.f32 %v1205, 1.442695
        %v1222 = vpow.pop %v1221
        %v1223 = vmul.f32 %v1206, 1.442695
        %v1224 = vpow.pop %v1223
        %v1225 = vmul.f32 %v1207, 1.442695
        %v1226 = vpow.pop %v1225
        %v1227 = vmul.f32 %v1208, 1.442695
        %v1228 = vpow.pop %v1227
        %v1229 = vmul.f32 %v1209, 1.442695
        %v1230 = vpow.pop %v1229
        %v1231 = vmul.f32 %v1210, 1.442695
        %v1232 = vpow.pop %v1231
        %v1233 = vmul.f32 %v1211, 1.442695
        %v1234 = vpow.pop %v1233
        %v1235 = vmul.f32 %v1212, 1.442695
        %v1236 = vpow.pop %v1235
        %v1237 = vmul.f32 %v1213, 1.442695
        %v1238 = vpow.pop %v1237
        %v1239 = vmul.f32 %v1214, 1.442695
        %v1240 = vpow.pop %v1239
        %v1241 = vmul.f32 %v1215, 1.442695
        %v1242 = vpow.pop %v1241
        %v1243 = vmul.f32 %v1216, 1.442695
        %v1244 = vpow.pop %v1243
        %v1245 = vmul.f32 %v1217, 1.442695
        %v1246 = vpow.pop %v1245
        %v1247 = vmul.f32 %v1218, 1.442695
        %v1248 = vpow.pop %v1247
        %v1249 = vmul.f32 %v1219, 1.442695
        %v1250 = vpow.pop %v1249
        %v1251 = vmul.f32 %v1220, 1.442695
        %v1252 = vpow.pop %v1251
        %1253 = vadd.xlane.f32.xlu0 %v1222
        %v1254 = vpop.xlane.xlu0 %1253
        %1255 = vadd.xlane.f32.xlu0 %v1224
        %v1256 = vpop.xlane.xlu0 %1255
        %1257 = vadd.xlane.f32.xlu0 %v1226
        %v1258 = vpop.xlane.xlu0 %1257
        %1259 = vadd.xlane.f32.xlu0 %v1228
        %v1260 = vpop.xlane.xlu0 %1259
        %1261 = vadd.xlane.f32.xlu0 %v1230
        %v1262 = vpop.xlane.xlu0 %1261
        %1263 = vadd.xlane.f32.xlu0 %v1232
        %v1264 = vpop.xlane.xlu0 %1263
        %1265 = vadd.xlane.f32.xlu0 %v1234
        %v1266 = vpop.xlane.xlu0 %1265
        %1267 = vadd.xlane.f32.xlu0 %v1236
        %v1268 = vpop.xlane.xlu0 %1267
        %1269 = vadd.xlane.f32.xlu0 %v1238
        %v1270 = vpop.xlane.xlu0 %1269
        %1271 = vadd.xlane.f32.xlu0 %v1240
        %v1272 = vpop.xlane.xlu0 %1271
        %1273 = vadd.xlane.f32.xlu0 %v1242
        %v1274 = vpop.xlane.xlu0 %1273
        %1275 = vadd.xlane.f32.xlu0 %v1244
        %v1276 = vpop.xlane.xlu0 %1275
        %1277 = vadd.xlane.f32.xlu0 %v1246
        %v1278 = vpop.xlane.xlu0 %1277
        %1279 = vadd.xlane.f32.xlu0 %v1248
        %v1280 = vpop.xlane.xlu0 %1279
        %1281 = vadd.xlane.f32.xlu0 %v1250
        %v1282 = vpop.xlane.xlu0 %1281
        %1283 = vadd.xlane.f32.xlu0 %v1252
        %v1284 = vpop.xlane.xlu0 %1283
        %v1285 = vpack.c.bf16 %v1224, %v1222
        %v1286 = vpack.c.bf16 %v1228, %v1226
        %v1287 = vpack.c.bf16 %v1232, %v1230
        %v1288 = vpack.c.bf16 %v1236, %v1234
        %v1289 = vpack.c.bf16 %v1240, %v1238
        %v1290 = vpack.c.bf16 %v1244, %v1242
        %v1291 = vpack.c.bf16 %v1248, %v1246
        %v1292 = vpack.c.bf16 %v1252, %v1250
        %1293 = vmatprep.subr.bf16.mxu0 0
        %1294 = vmatpush1.bf16.msra.mxu0 %v1019
        %1295 = vmatprep.subr.bf16.mxu0 0
        %1296 = vmatpush1.bf16.msra.mxu0 %v1020
        %1297 = vmatprep.subr.bf16.mxu0 0
        %1298 = vmatpush1.bf16.msra.mxu0 %v1021
        %1299 = vmatprep.subr.bf16.mxu0 0
        %1300 = vmatpush1.bf16.msra.mxu0 %v1022
        %1301 = vmatprep.subr.bf16.mxu0 0
        %1302 = vmatpush1.bf16.msra.mxu0 %v1023
        %1303 = vmatprep.subr.bf16.mxu0 0
        %1304 = vmatpush1.bf16.msra.mxu0 %v1024
        %1305 = vmatprep.subr.bf16.mxu0 0
        %1306 = vmatpush1.bf16.msra.mxu0 %v1025
        %1307 = vmatprep.subr.bf16.mxu0 0
        %1308 = vmatpush1.bf16.msra.mxu0 %v1026
        %1309 = vmatprep.subr.bf16.mxu0 0
        %1310 = vmatpush1.bf16.msra.mxu0 0
        %1311 = vmatprep.subr.bf16.mxu0 0
        %1312 = vmatpush1.bf16.msra.mxu0 0
        %1313 = vmatprep.subr.bf16.mxu0 0
        %1314 = vmatpush1.bf16.msra.mxu0 0
        %1315 = vmatprep.subr.bf16.mxu0 0
        %1316 = vmatpush1.bf16.msra.mxu0 0
        %1317 = vmatprep.subr.bf16.mxu0 0
        %1318 = vmatpush1.bf16.msra.mxu0 0
        %1319 = vmatprep.subr.bf16.mxu0 0
        %1320 = vmatpush1.bf16.msra.mxu0 0
        %1321 = vmatprep.subr.bf16.mxu0 0
        %1322 = vmatpush1.bf16.msra.mxu0 0
        %1323 = vmatprep.subr.bf16.mxu0 0
        %1324 = vmatpush1.bf16.msra.mxu0 0
        %1325 = vmatprep.mubr.bf16.mxu0 0
        %1326 = vmatmul.mubr.bf16.gmra.mrb[0].mxu0 %v1285
        %v1327 = vpop.f32.mrb[0].mxu0
        %v1328 = vadd.f32 0.0, %v1327
        %v1329 = vpop.f32.mrb[0].mxu0
        %v1330 = vpop.f32.mrb[0].mxu0
        %v1331 = vadd.f32 0.0, %v1330
        %v1332 = vpop.f32.mrb[0].mxu0
        %1333 = vmatprep.mubr.bf16.mxu0 0
        %1334 = vmatmul.mubr.bf16.gmra.mrb[0].mxu0 %v1286
        %v1335 = vpop.f32.mrb[0].mxu0
        %v1336 = vadd.f32 0.0, %v1335
        %v1337 = vpop.f32.mrb[0].mxu0
        %v1338 = vpop.f32.mrb[0].mxu0
        %v1339 = vadd.f32 0.0, %v1338
        %v1340 = vpop.f32.mrb[0].mxu0
        %1341 = vmatprep.mubr.bf16.mxu0 0
        %1342 = vmatmul.mubr.bf16.gmra.mrb[0].mxu0 %v1287
        %v1343 = vpop.f32.mrb[0].mxu0
        %v1344 = vadd.f32 0.0, %v1343
        %v1345 = vpop.f32.mrb[0].mxu0
        %v1346 = vpop.f32.mrb[0].mxu0
        %v1347 = vadd.f32 0.0, %v1346
        %v1348 = vpop.f32.mrb[0].mxu0
        %1349 = vmatprep.mubr.bf16.mxu0 0
        %1350 = vmatmul.mubr.bf16.gmra.mrb[0].mxu0 %v1288
        %v1351 = vpop.f32.mrb[0].mxu0
        %v1352 = vadd.f32 0.0, %v1351
        %v1353 = vpop.f32.mrb[0].mxu0
        %v1354 = vpop.f32.mrb[0].mxu0
        %v1355 = vadd.f32 0.0, %v1354
        %v1356 = vpop.f32.mrb[0].mxu0
        %1357 = vmatprep.mubr.bf16.mxu0 0
        %1358 = vmatmul.mubr.bf16.gmra.mrb[0].mxu0 %v1289
        %v1359 = vpop.f32.mrb[0].mxu0
        %v1360 = vadd.f32 0.0, %v1359
        %v1361 = vpop.f32.mrb[0].mxu0
        %v1362 = vpop.f32.mrb[0].mxu0
        %v1363 = vadd.f32 0.0, %v1362
        %v1364 = vpop.f32.mrb[0].mxu0
        %1365 = vmatprep.mubr.bf16.mxu0 0
        %1366 = vmatmul.mubr.bf16.gmra.mrb[0].mxu0 %v1290
        %v1367 = vpop.f32.mrb[0].mxu0
        %v1368 = vadd.f32 0.0, %v1367
        %v1369 = vpop.f32.mrb[0].mxu0
        %v1370 = vpop.f32.mrb[0].mxu0
        %v1371 = vadd.f32 0.0, %v1370
        %v1372 = vpop.f32.mrb[0].mxu0
        %1373 = vmatprep.mubr.bf16.mxu0 0
        %1374 = vmatmul.mubr.bf16.gmra.mrb[0].mxu0 %v1291
        %v1375 = vpop.f32.mrb[0].mxu0
        %v1376 = vadd.f32 0.0, %v1375
        %v1377 = vpop.f32.mrb[0].mxu0
        %v1378 = vpop.f32.mrb[0].mxu0
        %v1379 = vadd.f32 0.0, %v1378
        %v1380 = vpop.f32.mrb[0].mxu0
        %1381 = vmatprep.mubr.bf16.mxu0 0
        %1382 = vmatmul.mubr.bf16.gmra.mrb[0].mxu0 %v1292
        %v1383 = vpop.f32.mrb[0].mxu0
        %v1384 = vadd.f32 0.0, %v1383
        %v1385 = vpop.f32.mrb[0].mxu0
        %v1386 = vpop.f32.mrb[0].mxu0
        %v1387 = vadd.f32 0.0, %v1386
        %v1388 = vpop.f32.mrb[0].mxu0
        %1389 = vdwg.mxu0
        %v1390 = vrcp.pop %v1254
        %v1391 = vrcp.pop %v1256
        %v1392 = vrcp.pop %v1258
        %v1393 = vrcp.pop %v1260
        %v1394 = vrcp.pop %v1262
        %v1395 = vrcp.pop %v1264
        %v1396 = vrcp.pop %v1266
        %v1397 = vrcp.pop %v1268
        %v1398 = vrcp.pop %v1270
        %v1399 = vrcp.pop %v1272
        %v1400 = vrcp.pop %v1274
        %v1401 = vrcp.pop %v1276
        %v1402 = vrcp.pop %v1278
        %v1403 = vrcp.pop %v1280
        %v1404 = vrcp.pop %v1282
        %v1405 = vrcp.pop %v1284
        %v1406 = vmul.f32 %v1328, %v1390
        %v1407 = vmul.f32 %v1331, %v1391
        %v1408 = vmul.f32 %v1336, %v1392
        %v1409 = vmul.f32 %v1339, %v1393
        %v1410 = vmul.f32 %v1344, %v1394
        %v1411 = vmul.f32 %v1347, %v1395
        %v1412 = vmul.f32 %v1352, %v1396
        %v1413 = vmul.f32 %v1355, %v1397
        %v1414 = vmul.f32 %v1360, %v1398
        %v1415 = vmul.f32 %v1363, %v1399
        %v1416 = vmul.f32 %v1368, %v1400
        %v1417 = vmul.f32 %v1371, %v1401
        %v1418 = vmul.f32 %v1376, %v1402
        %v1419 = vmul.f32 %v1379, %v1403
        %v1420 = vmul.f32 %v1384, %v1404
        %v1421 = vmul.f32 %v1387, %v1405
        %v1422 = vpack.c.bf16 %v1407, %v1406
        %v1423 = vpack.c.bf16 %v1409, %v1408
        %v1424 = vpack.c.bf16 %v1411, %v1410
        %v1425 = vpack.c.bf16 %v1413, %v1412
        %v1426 = vpack.c.bf16 %v1415, %v1414
        %v1427 = vpack.c.bf16 %v1417, %v1416
        %v1428 = vpack.c.bf16 %v1419, %v1418
        %v1429 = vpack.c.bf16 %v1421, %v1420
        %v1430 = vld [vmem:[#allocation11] sm:$0xf]
        %v1431 = vld [vmem:[#allocation11 + $0x4] sm:$0xf]
        %v1432 = vld [vmem:[#allocation11 + $0x8] sm:$0xf]
        %v1433 = vld [vmem:[#allocation11 + $0xc] sm:$0xf]
        %1442 = vrot.lane.b32.xlu0 %v681, 96
        %v1443 = vpop.permute.xlu0 %1442
        %1444 = vrot.lane.b32.xlu0 %v682, 96
        %v1445 = vpop.permute.xlu0 %1444
        %1446 = vrot.lane.b32.xlu0 %v683, 96
        %v1447 = vpop.permute.xlu0 %1446
        %1448 = vrot.lane.b32.xlu0 %v684, 96
        %v1449 = vpop.permute.xlu0 %1448
        %1450 = vrot.lane.b32.xlu0 %v685, 96
        %v1451 = vpop.permute.xlu0 %1450
        %1452 = vrot.lane.b32.xlu0 %v686, 96
        %v1453 = vpop.permute.xlu0 %1452
        %1454 = vrot.lane.b32.xlu0 %v687, 96
        %v1455 = vpop.permute.xlu0 %1454
        %1456 = vrot.lane.b32.xlu0 %v688, 96
        %v1457 = vpop.permute.xlu0 %1456
        %1466 = vrot.lane.b32.xlu0 %v850, 96
        %v1467 = vpop.permute.xlu0 %1466
        %1468 = vrot.lane.b32.xlu0 %v851, 96
        %v1469 = vpop.permute.xlu0 %1468
        %1470 = vrot.lane.b32.xlu0 %v852, 96
        %v1471 = vpop.permute.xlu0 %1470
        %1472 = vrot.lane.b32.xlu0 %v853, 96
        %v1473 = vpop.permute.xlu0 %1472
        %1474 = vrot.lane.b32.xlu0 %v854, 96
        %v1475 = vpop.permute.xlu0 %1474
        %1476 = vrot.lane.b32.xlu0 %v855, 96
        %v1477 = vpop.permute.xlu0 %1476
        %1478 = vrot.lane.b32.xlu0 %v856, 96
        %v1479 = vpop.permute.xlu0 %1478
        %1480 = vrot.lane.b32.xlu0 %v857, 96
        %v1481 = vpop.permute.xlu0 %1480
        %v1483 = vsel %vm1027, %v1443, 0
        %v1486 = vsel %vm1027, %v1445, 0
        %v1489 = vsel %vm1027, %v1447, 0
        %v1492 = vsel %vm1027, %v1449, 0
        %v1495 = vsel %vm1027, %v1451, 0
        %v1498 = vsel %vm1027, %v1453, 0
        %v1501 = vsel %vm1027, %v1455, 0
        %v1504 = vsel %vm1027, %v1457, 0
        %v1507 = vsel %vm1027, %v1467, 0
        %v1510 = vsel %vm1027, %v1469, 0
        %v1513 = vsel %vm1027, %v1471, 0
        %v1516 = vsel %vm1027, %v1473, 0
        %v1519 = vsel %vm1027, %v1475, 0
        %v1522 = vsel %vm1027, %v1477, 0
        %v1525 = vsel %vm1027, %v1479, 0
        %v1528 = vsel %vm1027, %v1481, 0
        %1530 = vmatprep.subr.bf16.mxu0 0
        %1531 = vmatpush1.bf16.xpose.msra.mxu0 %v1507
        %1532 = vmatprep.subr.bf16.mxu0 0
        %1533 = vmatpush1.bf16.xpose.msra.mxu0 %v1510
        %1534 = vmatprep.subr.bf16.mxu0 0
        %1535 = vmatpush1.bf16.xpose.msra.mxu0 %v1513
        %1536 = vmatprep.subr.bf16.mxu0 0
        %1537 = vmatpush1.bf16.xpose.msra.mxu0 %v1516
        %1538 = vmatprep.subr.bf16.mxu0 0
        %1539 = vmatpush1.bf16.xpose.msra.mxu0 %v1519
        %1540 = vmatprep.subr.bf16.mxu0 0
        %1541 = vmatpush1.bf16.xpose.msra.mxu0 %v1522
        %1542 = vmatprep.subr.bf16.mxu0 0
        %1543 = vmatpush1.bf16.xpose.msra.mxu0 %v1525
        %1544 = vmatprep.subr.bf16.mxu0 0
        %1545 = vmatpush1.bf16.xpose.msra.mxu0 %v1528
        %1546 = vmatprep.subr.bf16.mxu0 0
        %1547 = vmatpush1.bf16.xpose.msra.mxu0 0
        %1548 = vmatprep.subr.bf16.mxu0 0
        %1549 = vmatpush1.bf16.xpose.msra.mxu0 0
        %1550 = vmatprep.subr.bf16.mxu0 0
        %1551 = vmatpush1.bf16.xpose.msra.mxu0 0
        %1552 = vmatprep.subr.bf16.mxu0 0
        %1553 = vmatpush1.bf16.xpose.msra.mxu0 0
        %1554 = vmatprep.subr.bf16.mxu0 0
        %1555 = vmatpush1.bf16.xpose.msra.mxu0 0
        %1556 = vmatprep.subr.bf16.mxu0 0
        %1557 = vmatpush1.bf16.xpose.msra.mxu0 0
        %1558 = vmatprep.subr.bf16.mxu0 0
        %1559 = vmatpush1.bf16.xpose.msra.mxu0 0
        %1560 = vmatprep.subr.bf16.mxu0 0
        %1561 = vmatpush1.bf16.xpose.msra.mxu0 0
        %1562 = vmatprep.mubr.bf16.mxu0 0
        %1563 = vmatmul.mubr.bf16.gmra.mrb[0].mxu0 %v1483
        %v1564 = vpop.f32.mrb[0].mxu0
        %v1565 = vadd.f32 0.0, %v1564
        %v1566 = vpop.f32.mrb[0].mxu0
        %v1567 = vpop.f32.mrb[0].mxu0
        %v1568 = vadd.f32 0.0, %v1567
        %v1569 = vpop.f32.mrb[0].mxu0
        %1570 = vmatprep.mubr.bf16.mxu0 0
        %1571 = vmatmul.mubr.bf16.gmra.mrb[0].mxu0 %v1486
        %v1572 = vpop.f32.mrb[0].mxu0
        %v1573 = vadd.f32 0.0, %v1572
        %v1574 = vpop.f32.mrb[0].mxu0
        %v1575 = vpop.f32.mrb[0].mxu0
        %v1576 = vadd.f32 0.0, %v1575
        %v1577 = vpop.f32.mrb[0].mxu0
        %1578 = vmatprep.mubr.bf16.mxu0 0
        %1579 = vmatmul.mubr.bf16.gmra.mrb[0].mxu0 %v1489
        %v1580 = vpop.f32.mrb[0].mxu0
        %v1581 = vadd.f32 0.0, %v1580
        %v1582 = vpop.f32.mrb[0].mxu0
        %v1583 = vpop.f32.mrb[0].mxu0
        %v1584 = vadd.f32 0.0, %v1583
        %v1585 = vpop.f32.mrb[0].mxu0
        %1586 = vmatprep.mubr.bf16.mxu0 0
        %1587 = vmatmul.mubr.bf16.gmra.mrb[0].mxu0 %v1492
        %v1588 = vpop.f32.mrb[0].mxu0
        %v1589 = vadd.f32 0.0, %v1588
        %v1590 = vpop.f32.mrb[0].mxu0
        %v1591 = vpop.f32.mrb[0].mxu0
        %v1592 = vadd.f32 0.0, %v1591
        %v1593 = vpop.f32.mrb[0].mxu0
        %1594 = vmatprep.mubr.bf16.mxu0 0
        %1595 = vmatmul.mubr.bf16.gmra.mrb[0].mxu0 %v1495
        %v1596 = vpop.f32.mrb[0].mxu0
        %v1597 = vadd.f32 0.0, %v1596
        %v1598 = vpop.f32.mrb[0].mxu0
        %v1599 = vpop.f32.mrb[0].mxu0
        %v1600 = vadd.f32 0.0, %v1599
        %v1601 = vpop.f32.mrb[0].mxu0
        %1602 = vmatprep.mubr.bf16.mxu0 0
        %1603 = vmatmul.mubr.bf16.gmra.mrb[0].mxu0 %v1498
        %v1604 = vpop.f32.mrb[0].mxu0
        %v1605 = vadd.f32 0.0, %v1604
        %v1606 = vpop.f32.mrb[0].mxu0
        %v1607 = vpop.f32.mrb[0].mxu0
        %v1608 = vadd.f32 0.0, %v1607
        %v1609 = vpop.f32.mrb[0].mxu0
        %1610 = vmatprep.mubr.bf16.mxu0 0
        %1611 = vmatmul.mubr.bf16.gmra.mrb[0].mxu0 %v1501
        %v1612 = vpop.f32.mrb[0].mxu0
        %v1613 = vadd.f32 0.0, %v1612
        %v1614 = vpop.f32.mrb[0].mxu0
        %v1615 = vpop.f32.mrb[0].mxu0
        %v1616 = vadd.f32 0.0, %v1615
        %v1617 = vpop.f32.mrb[0].mxu0
        %1618 = vmatprep.mubr.bf16.mxu0 0
        %1619 = vmatmul.mubr.bf16.gmra.mrb[0].mxu0 %v1504
        %v1620 = vpop.f32.mrb[0].mxu0
        %v1621 = vadd.f32 0.0, %v1620
        %v1622 = vpop.f32.mrb[0].mxu0
        %v1623 = vpop.f32.mrb[0].mxu0
        %v1624 = vadd.f32 0.0, %v1623
        %v1625 = vpop.f32.mrb[0].mxu0
        %1626 = vdwg.mxu0
        %1627 = vmax.xlane.f32.xlu0 %v1565
        %v1628 = vpop.xlane.xlu0 %1627
        %1629 = vmax.xlane.f32.xlu0 %v1568
        %v1630 = vpop.xlane.xlu0 %1629
        %1631 = vmax.xlane.f32.xlu0 %v1573
        %v1632 = vpop.xlane.xlu0 %1631
        %1633 = vmax.xlane.f32.xlu0 %v1576
        %v1634 = vpop.xlane.xlu0 %1633
        %1635 = vmax.xlane.f32.xlu0 %v1581
        %v1636 = vpop.xlane.xlu0 %1635
        %1637 = vmax.xlane.f32.xlu0 %v1584
        %v1638 = vpop.xlane.xlu0 %1637
        %1639 = vmax.xlane.f32.xlu0 %v1589
        %v1640 = vpop.xlane.xlu0 %1639
        %1641 = vmax.xlane.f32.xlu0 %v1592
        %v1642 = vpop.xlane.xlu0 %1641
        %1643 = vmax.xlane.f32.xlu0 %v1597
        %v1644 = vpop.xlane.xlu0 %1643
        %1645 = vmax.xlane.f32.xlu0 %v1600
        %v1646 = vpop.xlane.xlu0 %1645
        %1647 = vmax.xlane.f32.xlu0 %v1605
        %v1648 = vpop.xlane.xlu0 %1647
        %1649 = vmax.xlane.f32.xlu0 %v1608
        %v1650 = vpop.xlane.xlu0 %1649
        %1651 = vmax.xlane.f32.xlu0 %v1613
        %v1652 = vpop.xlane.xlu0 %1651
        %1653 = vmax.xlane.f32.xlu0 %v1616
        %v1654 = vpop.xlane.xlu0 %1653
        %1655 = vmax.xlane.f32.xlu0 %v1621
        %v1656 = vpop.xlane.xlu0 %1655
        %1657 = vmax.xlane.f32.xlu0 %v1624
        %v1658 = vpop.xlane.xlu0 %1657
        %v1659 = vsub.f32 %v1565, %v1628
        %v1660 = vsub.f32 %v1568, %v1630
        %v1661 = vsub.f32 %v1573, %v1632
        %v1662 = vsub.f32 %v1576, %v1634
        %v1663 = vsub.f32 %v1581, %v1636
        %v1664 = vsub.f32 %v1584, %v1638
        %v1665 = vsub.f32 %v1589, %v1640
        %v1666 = vsub.f32 %v1592, %v1642
        %v1667 = vsub.f32 %v1597, %v1644
        %v1668 = vsub.f32 %v1600, %v1646
        %v1669 = vsub.f32 %v1605, %v1648
        %v1670 = vsub.f32 %v1608, %v1650
        %v1671 = vsub.f32 %v1613, %v1652
        %v1672 = vsub.f32 %v1616, %v1654
        %v1673 = vsub.f32 %v1621, %v1656
        %v1674 = vsub.f32 %v1624, %v1658
        %v1675 = vmul.f32 %v1659, 1.442695
        %v1676 = vpow.pop %v1675
        %v1677 = vmul.f32 %v1660, 1.442695
        %v1678 = vpow.pop %v1677
        %v1679 = vmul.f32 %v1661, 1.442695
        %v1680 = vpow.pop %v1679
        %v1681 = vmul.f32 %v1662, 1.442695
        %v1682 = vpow.pop %v1681
        %v1683 = vmul.f32 %v1663, 1.442695
        %v1684 = vpow.pop %v1683
        %v1685 = vmul.f32 %v1664, 1.442695
        %v1686 = vpow.pop %v1685
        %v1687 = vmul.f32 %v1665, 1.442695
        %v1688 = vpow.pop %v1687
        %v1689 = vmul.f32 %v1666, 1.442695
        %v1690 = vpow.pop %v1689
        %v1691 = vmul.f32 %v1667, 1.442695
        %v1692 = vpow.pop %v1691
        %v1693 = vmul.f32 %v1668, 1.442695
        %v1694 = vpow.pop %v1693
        %v1695 = vmul.f32 %v1669, 1.442695
        %v1696 = vpow.pop %v1695
        %v1697 = vmul.f32 %v1670, 1.442695
        %v1698 = vpow.pop %v1697
        %v1699 = vmul.f32 %v1671, 1.442695
        %v1700 = vpow.pop %v1699
        %v1701 = vmul.f32 %v1672, 1.442695
        %v1702 = vpow.pop %v1701
        %v1703 = vmul.f32 %v1673, 1.442695
        %v1704 = vpow.pop %v1703
        %v1705 = vmul.f32 %v1674, 1.442695
        %v1706 = vpow.pop %v1705
        %1707 = vadd.xlane.f32.xlu0 %v1676
        %v1708 = vpop.xlane.xlu0 %1707
        %1709 = vadd.xlane.f32.xlu0 %v1678
        %v1710 = vpop.xlane.xlu0 %1709
        %1711 = vadd.xlane.f32.xlu0 %v1680
        %v1712 = vpop.xlane.xlu0 %1711
        %1713 = vadd.xlane.f32.xlu0 %v1682
        %v1714 = vpop.xlane.xlu0 %1713
        %1715 = vadd.xlane.f32.xlu0 %v1684
        %v1716 = vpop.xlane.xlu0 %1715
        %1717 = vadd.xlane.f32.xlu0 %v1686
        %v1718 = vpop.xlane.xlu0 %1717
        %1719 = vadd.xlane.f32.xlu0 %v1688
        %v1720 = vpop.xlane.xlu0 %1719
        %1721 = vadd.xlane.f32.xlu0 %v1690
        %v1722 = vpop.xlane.xlu0 %1721
        %1723 = vadd.xlane.f32.xlu0 %v1692
        %v1724 = vpop.xlane.xlu0 %1723
        %1725 = vadd.xlane.f32.xlu0 %v1694
        %v1726 = vpop.xlane.xlu0 %1725
        %1727 = vadd.xlane.f32.xlu0 %v1696
        %v1728 = vpop.xlane.xlu0 %1727
        %1729 = vadd.xlane.f32.xlu0 %v1698
        %v1730 = vpop.xlane.xlu0 %1729
        %1731 = vadd.xlane.f32.xlu0 %v1700
        %v1732 = vpop.xlane.xlu0 %1731
        %1733 = vadd.xlane.f32.xlu0 %v1702
        %v1734 = vpop.xlane.xlu0 %1733
        %1735 = vadd.xlane.f32.xlu0 %v1704
        %v1736 = vpop.xlane.xlu0 %1735
        %1737 = vadd.xlane.f32.xlu0 %v1706
        %v1738 = vpop.xlane.xlu0 %1737
        %v1739 = vpack.c.bf16 %v1678, %v1676
        %v1740 = vpack.c.bf16 %v1682, %v1680
        %v1741 = vpack.c.bf16 %v1686, %v1684
        %v1742 = vpack.c.bf16 %v1690, %v1688
        %v1743 = vpack.c.bf16 %v1694, %v1692
        %v1744 = vpack.c.bf16 %v1698, %v1696
        %v1745 = vpack.c.bf16 %v1702, %v1700
        %v1746 = vpack.c.bf16 %v1706, %v1704
        %1755 = vrot.lane.b32.xlu0 %v1019, 96
        %v1756 = vpop.permute.xlu0 %1755
        %1757 = vrot.lane.b32.xlu0 %v1020, 96
        %v1758 = vpop.permute.xlu0 %1757
        %1759 = vrot.lane.b32.xlu0 %v1021, 96
        %v1760 = vpop.permute.xlu0 %1759
        %1761 = vrot.lane.b32.xlu0 %v1022, 96
        %v1762 = vpop.permute.xlu0 %1761
        %1763 = vrot.lane.b32.xlu0 %v1023, 96
        %v1764 = vpop.permute.xlu0 %1763
        %1765 = vrot.lane.b32.xlu0 %v1024, 96
        %v1766 = vpop.permute.xlu0 %1765
        %1767 = vrot.lane.b32.xlu0 %v1025, 96
        %v1768 = vpop.permute.xlu0 %1767
        %1769 = vrot.lane.b32.xlu0 %v1026, 96
        %v1770 = vpop.permute.xlu0 %1769
        %1779 = vmatprep.subr.bf16.mxu0 0
        %1780 = vmatpush1.bf16.msra.mxu0 %v1756
        %1781 = vmatprep.subr.bf16.mxu0 0
        %1782 = vmatpush1.bf16.msra.mxu0 %v1758
        %1783 = vmatprep.subr.bf16.mxu0 0
        %1784 = vmatpush1.bf16.msra.mxu0 %v1760
        %1785 = vmatprep.subr.bf16.mxu0 0
        %1786 = vmatpush1.bf16.msra.mxu0 %v1762
        %1787 = vmatprep.subr.bf16.mxu0 0
        %1788 = vmatpush1.bf16.msra.mxu0 %v1764
        %1789 = vmatprep.subr.bf16.mxu0 0
        %1790 = vmatpush1.bf16.msra.mxu0 %v1766
        %1791 = vmatprep.subr.bf16.mxu0 0
        %1792 = vmatpush1.bf16.msra.mxu0 %v1768
        %1793 = vmatprep.subr.bf16.mxu0 0
        %1794 = vmatpush1.bf16.msra.mxu0 %v1770
        %1795 = vmatprep.subr.bf16.mxu0 0
        %1796 = vmatpush1.bf16.msra.mxu0 0
        %1797 = vmatprep.subr.bf16.mxu0 0
        %1798 = vmatpush1.bf16.msra.mxu0 0
        %1799 = vmatprep.subr.bf16.mxu0 0
        %1800 = vmatpush1.bf16.msra.mxu0 0
        %1801 = vmatprep.subr.bf16.mxu0 0
        %1802 = vmatpush1.bf16.msra.mxu0 0
        %1803 = vmatprep.subr.bf16.mxu0 0
        %1804 = vmatpush1.bf16.msra.mxu0 0
        %1805 = vmatprep.subr.bf16.mxu0 0
        %1806 = vmatpush1.bf16.msra.mxu0 0
        %1807 = vmatprep.subr.bf16.mxu0 0
        %1808 = vmatpush1.bf16.msra.mxu0 0
        %1809 = vmatprep.subr.bf16.mxu0 0
        %1810 = vmatpush1.bf16.msra.mxu0 0
        %1811 = vmatprep.mubr.bf16.mxu0 0
        %1812 = vmatmul.mubr.bf16.gmra.mrb[0].mxu0 %v1739
        %v1813 = vpop.f32.mrb[0].mxu0
        %v1814 = vadd.f32 0.0, %v1813
        %v1815 = vpop.f32.mrb[0].mxu0
        %v1816 = vpop.f32.mrb[0].mxu0
        %v1817 = vadd.f32 0.0, %v1816
        %v1818 = vpop.f32.mrb[0].mxu0
        %1819 = vmatprep.mubr.bf16.mxu0 0
        %1820 = vmatmul.mubr.bf16.gmra.mrb[0].mxu0 %v1740
        %v1821 = vpop.f32.mrb[0].mxu0
        %v1822 = vadd.f32 0.0, %v1821
        %v1823 = vpop.f32.mrb[0].mxu0
        %v1824 = vpop.f32.mrb[0].mxu0
        %v1825 = vadd.f32 0.0, %v1824
        %v1826 = vpop.f32.mrb[0].mxu0
        %1827 = vmatprep.mubr.bf16.mxu0 0
        %1828 = vmatmul.mubr.bf16.gmra.mrb[0].mxu0 %v1741
        %v1829 = vpop.f32.mrb[0].mxu0
        %v1830 = vadd.f32 0.0, %v1829
        %v1831 = vpop.f32.mrb[0].mxu0
        %v1832 = vpop.f32.mrb[0].mxu0
        %v1833 = vadd.f32 0.0, %v1832
        %v1834 = vpop.f32.mrb[0].mxu0
        %1835 = vmatprep.mubr.bf16.mxu0 0
        %1836 = vmatmul.mubr.bf16.gmra.mrb[0].mxu0 %v1742
        %v1837 = vpop.f32.mrb[0].mxu0
        %v1838 = vadd.f32 0.0, %v1837
        %v1839 = vpop.f32.mrb[0].mxu0
        %v1840 = vpop.f32.mrb[0].mxu0
        %v1841 = vadd.f32 0.0, %v1840
        %v1842 = vpop.f32.mrb[0].mxu0
        %1843 = vmatprep.mubr.bf16.mxu0 0
        %1844 = vmatmul.mubr.bf16.gmra.mrb[0].mxu0 %v1743
        %v1845 = vpop.f32.mrb[0].mxu0
        %v1846 = vadd.f32 0.0, %v1845
        %v1847 = vpop.f32.mrb[0].mxu0
        %v1848 = vpop.f32.mrb[0].mxu0
        %v1849 = vadd.f32 0.0, %v1848
        %v1850 = vpop.f32.mrb[0].mxu0
        %1851 = vmatprep.mubr.bf16.mxu0 0
        %1852 = vmatmul.mubr.bf16.gmra.mrb[0].mxu0 %v1744
        %v1853 = vpop.f32.mrb[0].mxu0
        %v1854 = vadd.f32 0.0, %v1853
        %v1855 = vpop.f32.mrb[0].mxu0
        %v1856 = vpop.f32.mrb[0].mxu0
        %v1857 = vadd.f32 0.0, %v1856
        %v1858 = vpop.f32.mrb[0].mxu0
        %1859 = vmatprep.mubr.bf16.mxu0 0
        %1860 = vmatmul.mubr.bf16.gmra.mrb[0].mxu0 %v1745
        %v1861 = vpop.f32.mrb[0].mxu0
        %v1862 = vadd.f32 0.0, %v1861
        %v1863 = vpop.f32.mrb[0].mxu0
        %v1864 = vpop.f32.mrb[0].mxu0
        %v1865 = vadd.f32 0.0, %v1864
        %v1866 = vpop.f32.mrb[0].mxu0
        %1867 = vmatprep.mubr.bf16.mxu0 0
        %1868 = vmatmul.mubr.bf16.gmra.mrb[0].mxu0 %v1746
        %v1869 = vpop.f32.mrb[0].mxu0
        %v1870 = vadd.f32 0.0, %v1869
        %v1871 = vpop.f32.mrb[0].mxu0
        %v1872 = vpop.f32.mrb[0].mxu0
        %v1873 = vadd.f32 0.0, %v1872
        %v1874 = vpop.f32.mrb[0].mxu0
        %1875 = vdwg.mxu0
        %v1876 = vrcp.pop %v1708
        %v1877 = vrcp.pop %v1710
        %v1878 = vrcp.pop %v1712
        %v1879 = vrcp.pop %v1714
        %v1880 = vrcp.pop %v1716
        %v1881 = vrcp.pop %v1718
        %v1882 = vrcp.pop %v1720
        %v1883 = vrcp.pop %v1722
        %v1884 = vrcp.pop %v1724
        %v1885 = vrcp.pop %v1726
        %v1886 = vrcp.pop %v1728
        %v1887 = vrcp.pop %v1730
        %v1888 = vrcp.pop %v1732
        %v1889 = vrcp.pop %v1734
        %v1890 = vrcp.pop %v1736
        %v1891 = vrcp.pop %v1738
        %v1892 = vmul.f32 %v1814, %v1876
        %v1893 = vmul.f32 %v1817, %v1877
        %v1894 = vmul.f32 %v1822, %v1878
        %v1895 = vmul.f32 %v1825, %v1879
        %v1896 = vmul.f32 %v1830, %v1880
        %v1897 = vmul.f32 %v1833, %v1881
        %v1898 = vmul.f32 %v1838, %v1882
        %v1899 = vmul.f32 %v1841, %v1883
        %v1900 = vmul.f32 %v1846, %v1884
        %v1901 = vmul.f32 %v1849, %v1885
        %v1902 = vmul.f32 %v1854, %v1886
        %v1903 = vmul.f32 %v1857, %v1887
        %v1904 = vmul.f32 %v1862, %v1888
        %v1905 = vmul.f32 %v1865, %v1889
        %v1906 = vmul.f32 %v1870, %v1890
        %v1907 = vmul.f32 %v1873, %v1891
        %v1908 = vpack.c.bf16 %v1893, %v1892
        %v1909 = vpack.c.bf16 %v1895, %v1894
        %v1910 = vpack.c.bf16 %v1897, %v1896
        %v1911 = vpack.c.bf16 %v1899, %v1898
        %v1912 = vpack.c.bf16 %v1901, %v1900
        %v1913 = vpack.c.bf16 %v1903, %v1902
        %v1914 = vpack.c.bf16 %v1905, %v1904
        %v1915 = vpack.c.bf16 %v1907, %v1906
        %v1916 = vld [vmem:[#allocation11 + $0x10] sm:$0xf]
        %v1917 = vld [vmem:[#allocation11 + $0x14] sm:$0xf]
        %v1918 = vld [vmem:[#allocation11 + $0x18] sm:$0xf]
        %v1919 = vld [vmem:[#allocation11 + $0x1c] sm:$0xf]
        %v1924 = vunpack.c.l.b16 %v1916
        %v1925 = vunpack.c.l.b16 %v1917
        %v1926 = vunpack.c.l.b16 %v1918
        %v1927 = vunpack.c.l.b16 %v1919
        %v1928 = vpack.c.b16 %v1925, %v1924
        %v1929 = vpack.c.b16 %v1927, %v1926
        %v1933 = vsel %vm1027, %v1908, 0
        %v1936 = vsel %vm1027, %v1909, 0
        %v1939 = vsel %vm1027, %v1910, 0
        %v1942 = vsel %vm1027, %v1911, 0
        %v1945 = vsel %vm1027, %v1912, 0
        %v1948 = vsel %vm1027, %v1913, 0
        %v1951 = vsel %vm1027, %v1914, 0
        %v1954 = vsel %vm1027, %v1915, 0
        %1956 = vmatprep.subr.bf16.mxu0 0
        %1957 = vmatpush1.bf16.msra.mxu0 %v1928
        %1958 = vmatprep.subr.bf16.mxu0 0
        %1959 = vmatpush1.bf16.msra.mxu0 %v1929
        %1960 = vmatprep.subr.bf16.mxu0 0
        %1961 = vmatpush1.bf16.msra.mxu0 0
        %1962 = vmatprep.subr.bf16.mxu0 0
        %1963 = vmatpush1.bf16.msra.mxu0 0
        %1964 = vmatprep.subr.bf16.mxu0 0
        %1965 = vmatpush1.bf16.msra.mxu0 0
        %1966 = vmatprep.subr.bf16.mxu0 0
        %1967 = vmatpush1.bf16.msra.mxu0 0
        %1968 = vmatprep.subr.bf16.mxu0 0
        %1969 = vmatpush1.bf16.msra.mxu0 0
        %1970 = vmatprep.subr.bf16.mxu0 0
        %1971 = vmatpush1.bf16.msra.mxu0 0
        %1972 = vmatprep.subr.bf16.mxu0 0
        %1973 = vmatpush1.bf16.msra.mxu0 0
        %1974 = vmatprep.subr.bf16.mxu0 0
        %1975 = vmatpush1.bf16.msra.mxu0 0
        %1976 = vmatprep.subr.bf16.mxu0 0
        %1977 = vmatpush1.bf16.msra.mxu0 0
        %1978 = vmatprep.subr.bf16.mxu0 0
        %1979 = vmatpush1.bf16.msra.mxu0 0
        %1980 = vmatprep.subr.bf16.mxu0 0
        %1981 = vmatpush1.bf16.msra.mxu0 0
        %1982 = vmatprep.subr.bf16.mxu0 0
        %1983 = vmatpush1.bf16.msra.mxu0 0
        %1984 = vmatprep.subr.bf16.mxu0 0
        %1985 = vmatpush1.bf16.msra.mxu0 0
        %1986 = vmatprep.subr.bf16.mxu0 0
        %1987 = vmatpush1.bf16.msra.mxu0 0
        %1988 = vmatprep.mubr.bf16.mxu0 0
        %1989 = vmatmul.mubr.bf16.gmra.mrb[0].mxu0 %v1933
        %v1990 = vpop.f32.mrb[0].mxu0
        %v1991 = vadd.f32 0.0, %v1990
        %v1992 = vpop.f32.mrb[0].mxu0
        %v1993 = vpop.f32.mrb[0].mxu0
        %v1994 = vadd.f32 0.0, %v1993
        %v1995 = vpop.f32.mrb[0].mxu0
        %1996 = vmatprep.mubr.bf16.mxu0 0
        %1997 = vmatmul.mubr.bf16.gmra.mrb[0].mxu0 %v1936
        %v1998 = vpop.f32.mrb[0].mxu0
        %v1999 = vadd.f32 0.0, %v1998
        %v2000 = vpop.f32.mrb[0].mxu0
        %v2001 = vpop.f32.mrb[0].mxu0
        %v2002 = vadd.f32 0.0, %v2001
        %v2003 = vpop.f32.mrb[0].mxu0
        %2004 = vmatprep.mubr.bf16.mxu0 0
        %2005 = vmatmul.mubr.bf16.gmra.mrb[0].mxu0 %v1939
        %v2006 = vpop.f32.mrb[0].mxu0
        %v2007 = vadd.f32 0.0, %v2006
        %v2008 = vpop.f32.mrb[0].mxu0
        %v2009 = vpop.f32.mrb[0].mxu0
        %v2010 = vadd.f32 0.0, %v2009
        %v2011 = vpop.f32.mrb[0].mxu0
        %2012 = vmatprep.mubr.bf16.mxu0 0
        %2013 = vmatmul.mubr.bf16.gmra.mrb[0].mxu0 %v1942
        %v2014 = vpop.f32.mrb[0].mxu0
        %v2015 = vadd.f32 0.0, %v2014
        %v2016 = vpop.f32.mrb[0].mxu0
        %v2017 = vpop.f32.mrb[0].mxu0
        %v2018 = vadd.f32 0.0, %v2017
        %v2019 = vpop.f32.mrb[0].mxu0
        %2020 = vmatprep.mubr.bf16.mxu0 0
        %2021 = vmatmul.mubr.bf16.gmra.mrb[0].mxu0 %v1945
        %v2022 = vpop.f32.mrb[0].mxu0
        %v2023 = vadd.f32 0.0, %v2022
        %v2024 = vpop.f32.mrb[0].mxu0
        %v2025 = vpop.f32.mrb[0].mxu0
        %v2026 = vadd.f32 0.0, %v2025
        %v2027 = vpop.f32.mrb[0].mxu0
        %2028 = vmatprep.mubr.bf16.mxu0 0
        %2029 = vmatmul.mubr.bf16.gmra.mrb[0].mxu0 %v1948
        %v2030 = vpop.f32.mrb[0].mxu0
        %v2031 = vadd.f32 0.0, %v2030
        %v2032 = vpop.f32.mrb[0].mxu0
        %v2033 = vpop.f32.mrb[0].mxu0
        %v2034 = vadd.f32 0.0, %v2033
        %v2035 = vpop.f32.mrb[0].mxu0
        %2036 = vmatprep.mubr.bf16.mxu0 0
        %2037 = vmatmul.mubr.bf16.gmra.mrb[0].mxu0 %v1951
        %v2038 = vpop.f32.mrb[0].mxu0
        %v2039 = vadd.f32 0.0, %v2038
        %v2040 = vpop.f32.mrb[0].mxu0
        %v2041 = vpop.f32.mrb[0].mxu0
        %v2042 = vadd.f32 0.0, %v2041
        %v2043 = vpop.f32.mrb[0].mxu0
        %2044 = vmatprep.mubr.bf16.mxu0 0
        %2045 = vmatmul.mubr.bf16.gmra.mrb[0].mxu0 %v1954
        %v2046 = vpop.f32.mrb[0].mxu0
        %v2047 = vadd.f32 0.0, %v2046
        %v2048 = vpop.f32.mrb[0].mxu0
        %v2049 = vpop.f32.mrb[0].mxu0
        %v2050 = vadd.f32 0.0, %v2049
        %v2051 = vpop.f32.mrb[0].mxu0
        %2052 = vdwg.mxu0
        %v2057 = vunpack.c.l.b16 %v1430
        %v2058 = vunpack.c.l.b16 %v1431
        %v2059 = vunpack.c.l.b16 %v1432
        %v2060 = vunpack.c.l.b16 %v1433
        %v2061 = vpack.c.b16 %v2058, %v2057
        %v2062 = vpack.c.b16 %v2060, %v2059
        %v2066 = vsel %vm1027, %v1422, 0
        %v2069 = vsel %vm1027, %v1423, 0
        %v2072 = vsel %vm1027, %v1424, 0
        %v2075 = vsel %vm1027, %v1425, 0
        %v2078 = vsel %vm1027, %v1426, 0
        %v2081 = vsel %vm1027, %v1427, 0
        %v2084 = vsel %vm1027, %v1428, 0
        %v2087 = vsel %vm1027, %v1429, 0
        %2089 = vmatprep.subr.bf16.mxu0 0
        %2090 = vmatpush1.bf16.msra.mxu0 %v2061
        %2091 = vmatprep.subr.bf16.mxu0 0
        %2092 = vmatpush1.bf16.msra.mxu0 %v2062
        %2093 = vmatprep.subr.bf16.mxu0 0
        %2094 = vmatpush1.bf16.msra.mxu0 0
        %2095 = vmatprep.subr.bf16.mxu0 0
        %2096 = vmatpush1.bf16.msra.mxu0 0
        %2097 = vmatprep.subr.bf16.mxu0 0
        %2098 = vmatpush1.bf16.msra.mxu0 0
        %2099 = vmatprep.subr.bf16.mxu0 0
        %2100 = vmatpush1.bf16.msra.mxu0 0
        %2101 = vmatprep.subr.bf16.mxu0 0
        %2102 = vmatpush1.bf16.msra.mxu0 0
        %2103 = vmatprep.subr.bf16.mxu0 0
        %2104 = vmatpush1.bf16.msra.mxu0 0
        %2105 = vmatprep.subr.bf16.mxu0 0
        %2106 = vmatpush1.bf16.msra.mxu0 0
        %2107 = vmatprep.subr.bf16.mxu0 0
        %2108 = vmatpush1.bf16.msra.mxu0 0
        %2109 = vmatprep.subr.bf16.mxu0 0
        %2110 = vmatpush1.bf16.msra.mxu0 0
        %2111 = vmatprep.subr.bf16.mxu0 0
        %2112 = vmatpush1.bf16.msra.mxu0 0
        %2113 = vmatprep.subr.bf16.mxu0 0
        %2114 = vmatpush1.bf16.msra.mxu0 0
        %2115 = vmatprep.subr.bf16.mxu0 0
        %2116 = vmatpush1.bf16.msra.mxu0 0
        %2117 = vmatprep.subr.bf16.mxu0 0
        %2118 = vmatpush1.bf16.msra.mxu0 0
        %2119 = vmatprep.subr.bf16.mxu0 0
        %2120 = vmatpush1.bf16.msra.mxu0 0
        %2121 = vmatprep.mubr.bf16.mxu0 0
        %2122 = vmatmul.mubr.bf16.gmra.mrb[0].mxu0 %v2066
        %v2123 = vpop.f32.mrb[0].mxu0
        %v2124 = vadd.f32 %v1991, %v2123
        %v2125 = vpop.f32.mrb[0].mxu0
        %v2126 = vpop.f32.mrb[0].mxu0
        %v2127 = vadd.f32 %v1994, %v2126
        %v2128 = vpop.f32.mrb[0].mxu0
        %2129 = vmatprep.mubr.bf16.mxu0 0
        %2130 = vmatmul.mubr.bf16.gmra.mrb[0].mxu0 %v2069
        %v2131 = vpop.f32.mrb[0].mxu0
        %v2132 = vadd.f32 %v1999, %v2131
        %v2133 = vpop.f32.mrb[0].mxu0
        %v2134 = vpop.f32.mrb[0].mxu0
        %v2135 = vadd.f32 %v2002, %v2134
        %v2136 = vpop.f32.mrb[0].mxu0
        %2137 = vmatprep.mubr.bf16.mxu0 0
        %2138 = vmatmul.mubr.bf16.gmra.mrb[0].mxu0 %v2072
        %v2139 = vpop.f32.mrb[0].mxu0
        %v2140 = vadd.f32 %v2007, %v2139
        %v2141 = vpop.f32.mrb[0].mxu0
        %v2142 = vpop.f32.mrb[0].mxu0
        %v2143 = vadd.f32 %v2010, %v2142
        %v2144 = vpop.f32.mrb[0].mxu0
        %2145 = vmatprep.mubr.bf16.mxu0 0
        %2146 = vmatmul.mubr.bf16.gmra.mrb[0].mxu0 %v2075
        %v2147 = vpop.f32.mrb[0].mxu0
        %v2148 = vadd.f32 %v2015, %v2147
        %v2149 = vpop.f32.mrb[0].mxu0
        %v2150 = vpop.f32.mrb[0].mxu0
        %v2151 = vadd.f32 %v2018, %v2150
        %v2152 = vpop.f32.mrb[0].mxu0
        %2153 = vmatprep.mubr.bf16.mxu0 0
        %2154 = vmatmul.mubr.bf16.gmra.mrb[0].mxu0 %v2078
        %v2155 = vpop.f32.mrb[0].mxu0
        %v2156 = vadd.f32 %v2023, %v2155
        %v2157 = vpop.f32.mrb[0].mxu0
        %v2158 = vpop.f32.mrb[0].mxu0
        %v2159 = vadd.f32 %v2026, %v2158
        %v2160 = vpop.f32.mrb[0].mxu0
        %2161 = vmatprep.mubr.bf16.mxu0 0
        %2162 = vmatmul.mubr.bf16.gmra.mrb[0].mxu0 %v2081
        %v2163 = vpop.f32.mrb[0].mxu0
        %v2164 = vadd.f32 %v2031, %v2163
        %v2165 = vpop.f32.mrb[0].mxu0
        %v2166 = vpop.f32.mrb[0].mxu0
        %v2167 = vadd.f32 %v2034, %v2166
        %v2168 = vpop.f32.mrb[0].mxu0
        %2169 = vmatprep.mubr.bf16.mxu0 0
        %2170 = vmatmul.mubr.bf16.gmra.mrb[0].mxu0 %v2084
        %v2171 = vpop.f32.mrb[0].mxu0
        %v2172 = vadd.f32 %v2039, %v2171
        %v2173 = vpop.f32.mrb[0].mxu0
        %v2174 = vpop.f32.mrb[0].mxu0
        %v2175 = vadd.f32 %v2042, %v2174
        %v2176 = vpop.f32.mrb[0].mxu0
        %2177 = vmatprep.mubr.bf16.mxu0 0
        %2178 = vmatmul.mubr.bf16.gmra.mrb[0].mxu0 %v2087
        %v2179 = vpop.f32.mrb[0].mxu0
        %v2180 = vadd.f32 %v2047, %v2179
        %v2181 = vpop.f32.mrb[0].mxu0
        %v2182 = vpop.f32.mrb[0].mxu0
        %v2183 = vadd.f32 %v2050, %v2182
        %v2184 = vpop.f32.mrb[0].mxu0
        %2185 = vdwg.mxu0
        %2186 = vrot.lane.b32.xlu0 %v681, 64
        %v2187 = vpop.permute.xlu0 %2186
        %2188 = vrot.lane.b32.xlu0 %v682, 64
        %v2189 = vpop.permute.xlu0 %2188
        %2190 = vrot.lane.b32.xlu0 %v683, 64
        %v2191 = vpop.permute.xlu0 %2190
        %2192 = vrot.lane.b32.xlu0 %v684, 64
        %v2193 = vpop.permute.xlu0 %2192
        %2194 = vrot.lane.b32.xlu0 %v685, 64
        %v2195 = vpop.permute.xlu0 %2194
        %2196 = vrot.lane.b32.xlu0 %v686, 64
        %v2197 = vpop.permute.xlu0 %2196
        %2198 = vrot.lane.b32.xlu0 %v687, 64
        %v2199 = vpop.permute.xlu0 %2198
        %2200 = vrot.lane.b32.xlu0 %v688, 64
        %v2201 = vpop.permute.xlu0 %2200
        %2202 = vrot.lane.b32.xlu0 %v850, 64
        %v2203 = vpop.permute.xlu0 %2202
        %2204 = vrot.lane.b32.xlu0 %v851, 64
        %v2205 = vpop.permute.xlu0 %2204
        %2206 = vrot.lane.b32.xlu0 %v852, 64
        %v2207 = vpop.permute.xlu0 %2206
        %2208 = vrot.lane.b32.xlu0 %v853, 64
        %v2209 = vpop.permute.xlu0 %2208
        %2210 = vrot.lane.b32.xlu0 %v854, 64
        %v2211 = vpop.permute.xlu0 %2210
        %2212 = vrot.lane.b32.xlu0 %v855, 64
        %v2213 = vpop.permute.xlu0 %2212
        %2214 = vrot.lane.b32.xlu0 %v856, 64
        %v2215 = vpop.permute.xlu0 %2214
        %2216 = vrot.lane.b32.xlu0 %v857, 64
        %v2217 = vpop.permute.xlu0 %2216
        %v2219 = vsel %vm1027, %v2187, 0
        %v2222 = vsel %vm1027, %v2189, 0
        %v2225 = vsel %vm1027, %v2191, 0
        %v2228 = vsel %vm1027, %v2193, 0
        %v2231 = vsel %vm1027, %v2195, 0
        %v2234 = vsel %vm1027, %v2197, 0
        %v2237 = vsel %vm1027, %v2199, 0
        %v2240 = vsel %vm1027, %v2201, 0
        %v2243 = vsel %vm1027, %v2203, 0
        %v2246 = vsel %vm1027, %v2205, 0
        %v2249 = vsel %vm1027, %v2207, 0
        %v2252 = vsel %vm1027, %v2209, 0
        %v2255 = vsel %vm1027, %v2211, 0
        %v2258 = vsel %vm1027, %v2213, 0
        %v2261 = vsel %vm1027, %v2215, 0
        %v2264 = vsel %vm1027, %v2217, 0
        %2266 = vmatprep.subr.bf16.mxu0 0
        %2267 = vmatpush1.bf16.xpose.msra.mxu0 %v2243
        %2268 = vmatprep.subr.bf16.mxu0 0
        %2269 = vmatpush1.bf16.xpose.msra.mxu0 %v2246
        %2270 = vmatprep.subr.bf16.mxu0 0
        %2271 = vmatpush1.bf16.xpose.msra.mxu0 %v2249
        %2272 = vmatprep.subr.bf16.mxu0 0
        %2273 = vmatpush1.bf16.xpose.msra.mxu0 %v2252
        %2274 = vmatprep.subr.bf16.mxu0 0
        %2275 = vmatpush1.bf16.xpose.msra.mxu0 %v2255
        %2276 = vmatprep.subr.bf16.mxu0 0
        %2277 = vmatpush1.bf16.xpose.msra.mxu0 %v2258
        %2278 = vmatprep.subr.bf16.mxu0 0
        %2279 = vmatpush1.bf16.xpose.msra.mxu0 %v2261
        %2280 = vmatprep.subr.bf16.mxu0 0
        %2281 = vmatpush1.bf16.xpose.msra.mxu0 %v2264
        %2282 = vmatprep.subr.bf16.mxu0 0
        %2283 = vmatpush1.bf16.xpose.msra.mxu0 0
        %2284 = vmatprep.subr.bf16.mxu0 0
        %2285 = vmatpush1.bf16.xpose.msra.mxu0 0
        %2286 = vmatprep.subr.bf16.mxu0 0
        %2287 = vmatpush1.bf16.xpose.msra.mxu0 0
        %2288 = vmatprep.subr.bf16.mxu0 0
        %2289 = vmatpush1.bf16.xpose.msra.mxu0 0
        %2290 = vmatprep.subr.bf16.mxu0 0
        %2291 = vmatpush1.bf16.xpose.msra.mxu0 0
        %2292 = vmatprep.subr.bf16.mxu0 0
        %2293 = vmatpush1.bf16.xpose.msra.mxu0 0
        %2294 = vmatprep.subr.bf16.mxu0 0
        %2295 = vmatpush1.bf16.xpose.msra.mxu0 0
        %2296 = vmatprep.subr.bf16.mxu0 0
        %2297 = vmatpush1.bf16.xpose.msra.mxu0 0
        %2298 = vmatprep.mubr.bf16.mxu0 0
        %2299 = vmatmul.mubr.bf16.gmra.mrb[0].mxu0 %v2219
        %v2300 = vpop.f32.mrb[0].mxu0
        %v2301 = vadd.f32 0.0, %v2300
        %v2302 = vpop.f32.mrb[0].mxu0
        %v2303 = vpop.f32.mrb[0].mxu0
        %v2304 = vadd.f32 0.0, %v2303
        %v2305 = vpop.f32.mrb[0].mxu0
        %2306 = vmatprep.mubr.bf16.mxu0 0
        %2307 = vmatmul.mubr.bf16.gmra.mrb[0].mxu0 %v2222
        %v2308 = vpop.f32.mrb[0].mxu0
        %v2309 = vadd.f32 0.0, %v2308
        %v2310 = vpop.f32.mrb[0].mxu0
        %v2311 = vpop.f32.mrb[0].mxu0
        %v2312 = vadd.f32 0.0, %v2311
        %v2313 = vpop.f32.mrb[0].mxu0
        %2314 = vmatprep.mubr.bf16.mxu0 0
        %2315 = vmatmul.mubr.bf16.gmra.mrb[0].mxu0 %v2225
        %v2316 = vpop.f32.mrb[0].mxu0
        %v2317 = vadd.f32 0.0, %v2316
        %v2318 = vpop.f32.mrb[0].mxu0
        %v2319 = vpop.f32.mrb[0].mxu0
        %v2320 = vadd.f32 0.0, %v2319
        %v2321 = vpop.f32.mrb[0].mxu0
        %2322 = vmatprep.mubr.bf16.mxu0 0
        %2323 = vmatmul.mubr.bf16.gmra.mrb[0].mxu0 %v2228
        %v2324 = vpop.f32.mrb[0].mxu0
        %v2325 = vadd.f32 0.0, %v2324
        %v2326 = vpop.f32.mrb[0].mxu0
        %v2327 = vpop.f32.mrb[0].mxu0
        %v2328 = vadd.f32 0.0, %v2327
        %v2329 = vpop.f32.mrb[0].mxu0
        %2330 = vmatprep.mubr.bf16.mxu0 0
        %2331 = vmatmul.mubr.bf16.gmra.mrb[0].mxu0 %v2231
        %v2332 = vpop.f32.mrb[0].mxu0
        %v2333 = vadd.f32 0.0, %v2332
        %v2334 = vpop.f32.mrb[0].mxu0
        %v2335 = vpop.f32.mrb[0].mxu0
        %v2336 = vadd.f32 0.0, %v2335
        %v2337 = vpop.f32.mrb[0].mxu0
        %2338 = vmatprep.mubr.bf16.mxu0 0
        %2339 = vmatmul.mubr.bf16.gmra.mrb[0].mxu0 %v2234
        %v2340 = vpop.f32.mrb[0].mxu0
        %v2341 = vadd.f32 0.0, %v2340
        %v2342 = vpop.f32.mrb[0].mxu0
        %v2343 = vpop.f32.mrb[0].mxu0
        %v2344 = vadd.f32 0.0, %v2343
        %v2345 = vpop.f32.mrb[0].mxu0
        %2346 = vmatprep.mubr.bf16.mxu0 0
        %2347 = vmatmul.mubr.bf16.gmra.mrb[0].mxu0 %v2237
        %v2348 = vpop.f32.mrb[0].mxu0
        %v2349 = vadd.f32 0.0, %v2348
        %v2350 = vpop.f32.mrb[0].mxu0
        %v2351 = vpop.f32.mrb[0].mxu0
        %v2352 = vadd.f32 0.0, %v2351
        %v2353 = vpop.f32.mrb[0].mxu0
        %2354 = vmatprep.mubr.bf16.mxu0 0
        %2355 = vmatmul.mubr.bf16.gmra.mrb[0].mxu0 %v2240
        %v2356 = vpop.f32.mrb[0].mxu0
        %v2357 = vadd.f32 0.0, %v2356
        %v2358 = vpop.f32.mrb[0].mxu0
        %v2359 = vpop.f32.mrb[0].mxu0
        %v2360 = vadd.f32 0.0, %v2359
        %v2361 = vpop.f32.mrb[0].mxu0
        %2362 = vdwg.mxu0
        %2363 = vmax.xlane.f32.xlu0 %v2301
        %v2364 = vpop.xlane.xlu0 %2363
        %2365 = vmax.xlane.f32.xlu0 %v2304
        %v2366 = vpop.xlane.xlu0 %2365
        %2367 = vmax.xlane.f32.xlu0 %v2309
        %v2368 = vpop.xlane.xlu0 %2367
        %2369 = vmax.xlane.f32.xlu0 %v2312
        %v2370 = vpop.xlane.xlu0 %2369
        %2371 = vmax.xlane.f32.xlu0 %v2317
        %v2372 = vpop.xlane.xlu0 %2371
        %2373 = vmax.xlane.f32.xlu0 %v2320
        %v2374 = vpop.xlane.xlu0 %2373
        %2375 = vmax.xlane.f32.xlu0 %v2325
        %v2376 = vpop.xlane.xlu0 %2375
        %2377 = vmax.xlane.f32.xlu0 %v2328
        %v2378 = vpop.xlane.xlu0 %2377
        %2379 = vmax.xlane.f32.xlu0 %v2333
        %v2380 = vpop.xlane.xlu0 %2379
        %2381 = vmax.xlane.f32.xlu0 %v2336
        %v2382 = vpop.xlane.xlu0 %2381
        %2383 = vmax.xlane.f32.xlu0 %v2341
        %v2384 = vpop.xlane.xlu0 %2383
        %2385 = vmax.xlane.f32.xlu0 %v2344
        %v2386 = vpop.xlane.xlu0 %2385
        %2387 = vmax.xlane.f32.xlu0 %v2349
        %v2388 = vpop.xlane.xlu0 %2387
        %2389 = vmax.xlane.f32.xlu0 %v2352
        %v2390 = vpop.xlane.xlu0 %2389
        %2391 = vmax.xlane.f32.xlu0 %v2357
        %v2392 = vpop.xlane.xlu0 %2391
        %2393 = vmax.xlane.f32.xlu0 %v2360
        %v2394 = vpop.xlane.xlu0 %2393
        %v2395 = vsub.f32 %v2301, %v2364
        %v2396 = vsub.f32 %v2304, %v2366
        %v2397 = vsub.f32 %v2309, %v2368
        %v2398 = vsub.f32 %v2312, %v2370
        %v2399 = vsub.f32 %v2317, %v2372
        %v2400 = vsub.f32 %v2320, %v2374
        %v2401 = vsub.f32 %v2325, %v2376
        %v2402 = vsub.f32 %v2328, %v2378
        %v2403 = vsub.f32 %v2333, %v2380
        %v2404 = vsub.f32 %v2336, %v2382
        %v2405 = vsub.f32 %v2341, %v2384
        %v2406 = vsub.f32 %v2344, %v2386
        %v2407 = vsub.f32 %v2349, %v2388
        %v2408 = vsub.f32 %v2352, %v2390
        %v2409 = vsub.f32 %v2357, %v2392
        %v2410 = vsub.f32 %v2360, %v2394
        %v2411 = vmul.f32 %v2395, 1.442695
        %v2412 = vpow.pop %v2411
        %v2413 = vmul.f32 %v2396, 1.442695
        %v2414 = vpow.pop %v2413
        %v2415 = vmul.f32 %v2397, 1.442695
        %v2416 = vpow.pop %v2415
        %v2417 = vmul.f32 %v2398, 1.442695
        %v2418 = vpow.pop %v2417
        %v2419 = vmul.f32 %v2399, 1.442695
        %v2420 = vpow.pop %v2419
        %v2421 = vmul.f32 %v2400, 1.442695
        %v2422 = vpow.pop %v2421
        %v2423 = vmul.f32 %v2401, 1.442695
        %v2424 = vpow.pop %v2423
        %v2425 = vmul.f32 %v2402, 1.442695
        %v2426 = vpow.pop %v2425
        %v2427 = vmul.f32 %v2403, 1.442695
        %v2428 = vpow.pop %v2427
        %v2429 = vmul.f32 %v2404, 1.442695
        %v2430 = vpow.pop %v2429
        %v2431 = vmul.f32 %v2405, 1.442695
        %v2432 = vpow.pop %v2431
        %v2433 = vmul.f32 %v2406, 1.442695
        %v2434 = vpow.pop %v2433
        %v2435 = vmul.f32 %v2407, 1.442695
        %v2436 = vpow.pop %v2435
        %v2437 = vmul.f32 %v2408, 1.442695
        %v2438 = vpow.pop %v2437
        %v2439 = vmul.f32 %v2409, 1.442695
        %v2440 = vpow.pop %v2439
        %v2441 = vmul.f32 %v2410, 1.442695
        %v2442 = vpow.pop %v2441
        %2443 = vadd.xlane.f32.xlu0 %v2412
        %v2444 = vpop.xlane.xlu0 %2443
        %2445 = vadd.xlane.f32.xlu0 %v2414
        %v2446 = vpop.xlane.xlu0 %2445
        %2447 = vadd.xlane.f32.xlu0 %v2416
        %v2448 = vpop.xlane.xlu0 %2447
        %2449 = vadd.xlane.f32.xlu0 %v2418
        %v2450 = vpop.xlane.xlu0 %2449
        %2451 = vadd.xlane.f32.xlu0 %v2420
        %v2452 = vpop.xlane.xlu0 %2451
        %2453 = vadd.xlane.f32.xlu0 %v2422
        %v2454 = vpop.xlane.xlu0 %2453
        %2455 = vadd.xlane.f32.xlu0 %v2424
        %v2456 = vpop.xlane.xlu0 %2455
        %2457 = vadd.xlane.f32.xlu0 %v2426
        %v2458 = vpop.xlane.xlu0 %2457
        %2459 = vadd.xlane.f32.xlu0 %v2428
        %v2460 = vpop.xlane.xlu0 %2459
        %2461 = vadd.xlane.f32.xlu0 %v2430
        %v2462 = vpop.xlane.xlu0 %2461
        %2463 = vadd.xlane.f32.xlu0 %v2432
        %v2464 = vpop.xlane.xlu0 %2463
        %2465 = vadd.xlane.f32.xlu0 %v2434
        %v2466 = vpop.xlane.xlu0 %2465
        %2467 = vadd.xlane.f32.xlu0 %v2436
        %v2468 = vpop.xlane.xlu0 %2467
        %2469 = vadd.xlane.f32.xlu0 %v2438
        %v2470 = vpop.xlane.xlu0 %2469
        %2471 = vadd.xlane.f32.xlu0 %v2440
        %v2472 = vpop.xlane.xlu0 %2471
        %2473 = vadd.xlane.f32.xlu0 %v2442
        %v2474 = vpop.xlane.xlu0 %2473
        %v2475 = vpack.c.bf16 %v2414, %v2412
        %v2476 = vpack.c.bf16 %v2418, %v2416
        %v2477 = vpack.c.bf16 %v2422, %v2420
        %v2478 = vpack.c.bf16 %v2426, %v2424
        %v2479 = vpack.c.bf16 %v2430, %v2428
        %v2480 = vpack.c.bf16 %v2434, %v2432
        %v2481 = vpack.c.bf16 %v2438, %v2436
        %v2482 = vpack.c.bf16 %v2442, %v2440
        %2483 = vrot.lane.b32.xlu0 %v1019, 64
        %v2484 = vpop.permute.xlu0 %2483
        %2485 = vrot.lane.b32.xlu0 %v1020, 64
        %v2486 = vpop.permute.xlu0 %2485
        %2487 = vrot.lane.b32.xlu0 %v1021, 64
        %v2488 = vpop.permute.xlu0 %2487
        %2489 = vrot.lane.b32.xlu0 %v1022, 64
        %v2490 = vpop.permute.xlu0 %2489
        %2491 = vrot.lane.b32.xlu0 %v1023, 64
        %v2492 = vpop.permute.xlu0 %2491
        %2493 = vrot.lane.b32.xlu0 %v1024, 64
        %v2494 = vpop.permute.xlu0 %2493
        %2495 = vrot.lane.b32.xlu0 %v1025, 64
        %v2496 = vpop.permute.xlu0 %2495
        %2497 = vrot.lane.b32.xlu0 %v1026, 64
        %v2498 = vpop.permute.xlu0 %2497
        %2507 = vmatprep.subr.bf16.mxu0 0
        %2508 = vmatpush1.bf16.msra.mxu0 %v2484
        %2509 = vmatprep.subr.bf16.mxu0 0
        %2510 = vmatpush1.bf16.msra.mxu0 %v2486
        %2511 = vmatprep.subr.bf16.mxu0 0
        %2512 = vmatpush1.bf16.msra.mxu0 %v2488
        %2513 = vmatprep.subr.bf16.mxu0 0
        %2514 = vmatpush1.bf16.msra.mxu0 %v2490
        %2515 = vmatprep.subr.bf16.mxu0 0
        %2516 = vmatpush1.bf16.msra.mxu0 %v2492
        %2517 = vmatprep.subr.bf16.mxu0 0
        %2518 = vmatpush1.bf16.msra.mxu0 %v2494
        %2519 = vmatprep.subr.bf16.mxu0 0
        %2520 = vmatpush1.bf16.msra.mxu0 %v2496
        %2521 = vmatprep.subr.bf16.mxu0 0
        %2522 = vmatpush1.bf16.msra.mxu0 %v2498
        %2523 = vmatprep.subr.bf16.mxu0 0
        %2524 = vmatpush1.bf16.msra.mxu0 0
        %2525 = vmatprep.subr.bf16.mxu0 0
        %2526 = vmatpush1.bf16.msra.mxu0 0
        %2527 = vmatprep.subr.bf16.mxu0 0
        %2528 = vmatpush1.bf16.msra.mxu0 0
        %2529 = vmatprep.subr.bf16.mxu0 0
        %2530 = vmatpush1.bf16.msra.mxu0 0
        %2531 = vmatprep.subr.bf16.mxu0 0
        %2532 = vmatpush1.bf16.msra.mxu0 0
        %2533 = vmatprep.subr.bf16.mxu0 0
        %2534 = vmatpush1.bf16.msra.mxu0 0
        %2535 = vmatprep.subr.bf16.mxu0 0
        %2536 = vmatpush1.bf16.msra.mxu0 0
        %2537 = vmatprep.subr.bf16.mxu0 0
        %2538 = vmatpush1.bf16.msra.mxu0 0
        %2539 = vmatprep.mubr.bf16.mxu0 0
        %2540 = vmatmul.mubr.bf16.gmra.mrb[0].mxu0 %v2475
        %v2541 = vpop.f32.mrb[0].mxu0
        %v2542 = vadd.f32 0.0, %v2541
        %v2543 = vpop.f32.mrb[0].mxu0
        %v2544 = vpop.f32.mrb[0].mxu0
        %v2545 = vadd.f32 0.0, %v2544
        %v2546 = vpop.f32.mrb[0].mxu0
        %2547 = vmatprep.mubr.bf16.mxu0 0
        %2548 = vmatmul.mubr.bf16.gmra.mrb[0].mxu0 %v2476
        %v2549 = vpop.f32.mrb[0].mxu0
        %v2550 = vadd.f32 0.0, %v2549
        %v2551 = vpop.f32.mrb[0].mxu0
        %v2552 = vpop.f32.mrb[0].mxu0
        %v2553 = vadd.f32 0.0, %v2552
        %v2554 = vpop.f32.mrb[0].mxu0
        %2555 = vmatprep.mubr.bf16.mxu0 0
        %2556 = vmatmul.mubr.bf16.gmra.mrb[0].mxu0 %v2477
        %v2557 = vpop.f32.mrb[0].mxu0
        %v2558 = vadd.f32 0.0, %v2557
        %v2559 = vpop.f32.mrb[0].mxu0
        %v2560 = vpop.f32.mrb[0].mxu0
        %v2561 = vadd.f32 0.0, %v2560
        %v2562 = vpop.f32.mrb[0].mxu0
        %2563 = vmatprep.mubr.bf16.mxu0 0
        %2564 = vmatmul.mubr.bf16.gmra.mrb[0].mxu0 %v2478
        %v2565 = vpop.f32.mrb[0].mxu0
        %v2566 = vadd.f32 0.0, %v2565
        %v2567 = vpop.f32.mrb[0].mxu0
        %v2568 = vpop.f32.mrb[0].mxu0
        %v2569 = vadd.f32 0.0, %v2568
        %v2570 = vpop.f32.mrb[0].mxu0
        %2571 = vmatprep.mubr.bf16.mxu0 0
        %2572 = vmatmul.mubr.bf16.gmra.mrb[0].mxu0 %v2479
        %v2573 = vpop.f32.mrb[0].mxu0
        %v2574 = vadd.f32 0.0, %v2573
        %v2575 = vpop.f32.mrb[0].mxu0
        %v2576 = vpop.f32.mrb[0].mxu0
        %v2577 = vadd.f32 0.0, %v2576
        %v2578 = vpop.f32.mrb[0].mxu0
        %2579 = vmatprep.mubr.bf16.mxu0 0
        %2580 = vmatmul.mubr.bf16.gmra.mrb[0].mxu0 %v2480
        %v2581 = vpop.f32.mrb[0].mxu0
        %v2582 = vadd.f32 0.0, %v2581
        %v2583 = vpop.f32.mrb[0].mxu0
        %v2584 = vpop.f32.mrb[0].mxu0
        %v2585 = vadd.f32 0.0, %v2584
        %v2586 = vpop.f32.mrb[0].mxu0
        %2587 = vmatprep.mubr.bf16.mxu0 0
        %2588 = vmatmul.mubr.bf16.gmra.mrb[0].mxu0 %v2481
        %v2589 = vpop.f32.mrb[0].mxu0
        %v2590 = vadd.f32 0.0, %v2589
        %v2591 = vpop.f32.mrb[0].mxu0
        %v2592 = vpop.f32.mrb[0].mxu0
        %v2593 = vadd.f32 0.0, %v2592
        %v2594 = vpop.f32.mrb[0].mxu0
        %2595 = vmatprep.mubr.bf16.mxu0 0
        %2596 = vmatmul.mubr.bf16.gmra.mrb[0].mxu0 %v2482
        %v2597 = vpop.f32.mrb[0].mxu0
        %v2598 = vadd.f32 0.0, %v2597
        %v2599 = vpop.f32.mrb[0].mxu0
        %v2600 = vpop.f32.mrb[0].mxu0
        %v2601 = vadd.f32 0.0, %v2600
        %v2602 = vpop.f32.mrb[0].mxu0
        %2603 = vdwg.mxu0
        %v2604 = vrcp.pop %v2444
        %v2605 = vrcp.pop %v2446
        %v2606 = vrcp.pop %v2448
        %v2607 = vrcp.pop %v2450
        %v2608 = vrcp.pop %v2452
        %v2609 = vrcp.pop %v2454
        %v2610 = vrcp.pop %v2456
        %v2611 = vrcp.pop %v2458
        %v2612 = vrcp.pop %v2460
        %v2613 = vrcp.pop %v2462
        %v2614 = vrcp.pop %v2464
        %v2615 = vrcp.pop %v2466
        %v2616 = vrcp.pop %v2468
        %v2617 = vrcp.pop %v2470
        %v2618 = vrcp.pop %v2472
        %v2619 = vrcp.pop %v2474
        %v2620 = vmul.f32 %v2542, %v2604
        %v2621 = vmul.f32 %v2545, %v2605
        %v2622 = vmul.f32 %v2550, %v2606
        %v2623 = vmul.f32 %v2553, %v2607
        %v2624 = vmul.f32 %v2558, %v2608
        %v2625 = vmul.f32 %v2561, %v2609
        %v2626 = vmul.f32 %v2566, %v2610
        %v2627 = vmul.f32 %v2569, %v2611
        %v2628 = vmul.f32 %v2574, %v2612
        %v2629 = vmul.f32 %v2577, %v2613
        %v2630 = vmul.f32 %v2582, %v2614
        %v2631 = vmul.f32 %v2585, %v2615
        %v2632 = vmul.f32 %v2590, %v2616
        %v2633 = vmul.f32 %v2593, %v2617
        %v2634 = vmul.f32 %v2598, %v2618
        %v2635 = vmul.f32 %v2601, %v2619
        %v2636 = vpack.c.bf16 %v2621, %v2620
        %v2637 = vpack.c.bf16 %v2623, %v2622
        %v2638 = vpack.c.bf16 %v2625, %v2624
        %v2639 = vpack.c.bf16 %v2627, %v2626
        %v2640 = vpack.c.bf16 %v2629, %v2628
        %v2641 = vpack.c.bf16 %v2631, %v2630
        %v2642 = vpack.c.bf16 %v2633, %v2632
        %v2643 = vpack.c.bf16 %v2635, %v2634
        %v2644 = vld [vmem:[#allocation11 + $0x20] sm:$0xf]
        %v2645 = vld [vmem:[#allocation11 + $0x24] sm:$0xf]
        %v2646 = vld [vmem:[#allocation11 + $0x28] sm:$0xf]
        %v2647 = vld [vmem:[#allocation11 + $0x2c] sm:$0xf]
        %v2652 = vunpack.c.l.b16 %v2644
        %v2653 = vunpack.c.l.b16 %v2645
        %v2654 = vunpack.c.l.b16 %v2646
        %v2655 = vunpack.c.l.b16 %v2647
        %v2656 = vpack.c.b16 %v2653, %v2652
        %v2657 = vpack.c.b16 %v2655, %v2654
        %v2661 = vsel %vm1027, %v2636, 0
        %v2664 = vsel %vm1027, %v2637, 0
        %v2667 = vsel %vm1027, %v2638, 0
        %v2670 = vsel %vm1027, %v2639, 0
        %v2673 = vsel %vm1027, %v2640, 0
        %v2676 = vsel %vm1027, %v2641, 0
        %v2679 = vsel %vm1027, %v2642, 0
        %v2682 = vsel %vm1027, %v2643, 0
        %2684 = vmatprep.subr.bf16.mxu0 0
        %2685 = vmatpush1.bf16.msra.mxu0 %v2656
        %2686 = vmatprep.subr.bf16.mxu0 0
        %2687 = vmatpush1.bf16.msra.mxu0 %v2657
        %2688 = vmatprep.subr.bf16.mxu0 0
        %2689 = vmatpush1.bf16.msra.mxu0 0
        %2690 = vmatprep.subr.bf16.mxu0 0
        %2691 = vmatpush1.bf16.msra.mxu0 0
        %2692 = vmatprep.subr.bf16.mxu0 0
        %2693 = vmatpush1.bf16.msra.mxu0 0
        %2694 = vmatprep.subr.bf16.mxu0 0
        %2695 = vmatpush1.bf16.msra.mxu0 0
        %2696 = vmatprep.subr.bf16.mxu0 0
        %2697 = vmatpush1.bf16.msra.mxu0 0
        %2698 = vmatprep.subr.bf16.mxu0 0
        %2699 = vmatpush1.bf16.msra.mxu0 0
        %2700 = vmatprep.subr.bf16.mxu0 0
        %2701 = vmatpush1.bf16.msra.mxu0 0
        %2702 = vmatprep.subr.bf16.mxu0 0
        %2703 = vmatpush1.bf16.msra.mxu0 0
        %2704 = vmatprep.subr.bf16.mxu0 0
        %2705 = vmatpush1.bf16.msra.mxu0 0
        %2706 = vmatprep.subr.bf16.mxu0 0
        %2707 = vmatpush1.bf16.msra.mxu0 0
        %2708 = vmatprep.subr.bf16.mxu0 0
        %2709 = vmatpush1.bf16.msra.mxu0 0
        %2710 = vmatprep.subr.bf16.mxu0 0
        %2711 = vmatpush1.bf16.msra.mxu0 0
        %2712 = vmatprep.subr.bf16.mxu0 0
        %2713 = vmatpush1.bf16.msra.mxu0 0
        %2714 = vmatprep.subr.bf16.mxu0 0
        %2715 = vmatpush1.bf16.msra.mxu0 0
        %2716 = vmatprep.mubr.bf16.mxu0 0
        %2717 = vmatmul.mubr.bf16.gmra.mrb[0].mxu0 %v2661
        %v2718 = vpop.f32.mrb[0].mxu0
        %v2719 = vadd.f32 0.0, %v2718
        %v2720 = vpop.f32.mrb[0].mxu0
        %v2721 = vpop.f32.mrb[0].mxu0
        %v2722 = vadd.f32 0.0, %v2721
        %v2723 = vpop.f32.mrb[0].mxu0
        %2724 = vmatprep.mubr.bf16.mxu0 0
        %2725 = vmatmul.mubr.bf16.gmra.mrb[0].mxu0 %v2664
        %v2726 = vpop.f32.mrb[0].mxu0
        %v2727 = vadd.f32 0.0, %v2726
        %v2728 = vpop.f32.mrb[0].mxu0
        %v2729 = vpop.f32.mrb[0].mxu0
        %v2730 = vadd.f32 0.0, %v2729
        %v2731 = vpop.f32.mrb[0].mxu0
        %2732 = vmatprep.mubr.bf16.mxu0 0
        %2733 = vmatmul.mubr.bf16.gmra.mrb[0].mxu0 %v2667
        %v2734 = vpop.f32.mrb[0].mxu0
        %v2735 = vadd.f32 0.0, %v2734
        %v2736 = vpop.f32.mrb[0].mxu0
        %v2737 = vpop.f32.mrb[0].mxu0
        %v2738 = vadd.f32 0.0, %v2737
        %v2739 = vpop.f32.mrb[0].mxu0
        %2740 = vmatprep.mubr.bf16.mxu0 0
        %2741 = vmatmul.mubr.bf16.gmra.mrb[0].mxu0 %v2670
        %v2742 = vpop.f32.mrb[0].mxu0
        %v2743 = vadd.f32 0.0, %v2742
        %v2744 = vpop.f32.mrb[0].mxu0
        %v2745 = vpop.f32.mrb[0].mxu0
        %v2746 = vadd.f32 0.0, %v2745
        %v2747 = vpop.f32.mrb[0].mxu0
        %2748 = vmatprep.mubr.bf16.mxu0 0
        %2749 = vmatmul.mubr.bf16.gmra.mrb[0].mxu0 %v2673
        %v2750 = vpop.f32.mrb[0].mxu0
        %v2751 = vadd.f32 0.0, %v2750
        %v2752 = vpop.f32.mrb[0].mxu0
        %v2753 = vpop.f32.mrb[0].mxu0
        %v2754 = vadd.f32 0.0, %v2753
        %v2755 = vpop.f32.mrb[0].mxu0
        %2756 = vmatprep.mubr.bf16.mxu0 0
        %2757 = vmatmul.mubr.bf16.gmra.mrb[0].mxu0 %v2676
        %v2758 = vpop.f32.mrb[0].mxu0
        %v2759 = vadd.f32 0.0, %v2758
        %v2760 = vpop.f32.mrb[0].mxu0
        %v2761 = vpop.f32.mrb[0].mxu0
        %v2762 = vadd.f32 0.0, %v2761
        %v2763 = vpop.f32.mrb[0].mxu0
        %2764 = vmatprep.mubr.bf16.mxu0 0
        %2765 = vmatmul.mubr.bf16.gmra.mrb[0].mxu0 %v2679
        %v2766 = vpop.f32.mrb[0].mxu0
        %v2767 = vadd.f32 0.0, %v2766
        %v2768 = vpop.f32.mrb[0].mxu0
        %v2769 = vpop.f32.mrb[0].mxu0
        %v2770 = vadd.f32 0.0, %v2769
        %v2771 = vpop.f32.mrb[0].mxu0
        %2772 = vmatprep.mubr.bf16.mxu0 0
        %2773 = vmatmul.mubr.bf16.gmra.mrb[0].mxu0 %v2682
        %v2774 = vpop.f32.mrb[0].mxu0
        %v2775 = vadd.f32 0.0, %v2774
        %v2776 = vpop.f32.mrb[0].mxu0
        %v2777 = vpop.f32.mrb[0].mxu0
        %v2778 = vadd.f32 0.0, %v2777
        %v2779 = vpop.f32.mrb[0].mxu0
        %2780 = vdwg.mxu0
        %v2781 = vadd.f32 %v2124, %v2719
        %v2782 = vadd.f32 %v2127, %v2722
        %v2783 = vadd.f32 %v2132, %v2727
        %v2784 = vadd.f32 %v2135, %v2730
        %v2785 = vadd.f32 %v2140, %v2735
        %v2786 = vadd.f32 %v2143, %v2738
        %v2787 = vadd.f32 %v2148, %v2743
        %v2788 = vadd.f32 %v2151, %v2746
        %v2789 = vadd.f32 %v2156, %v2751
        %v2790 = vadd.f32 %v2159, %v2754
        %v2791 = vadd.f32 %v2164, %v2759
        %v2792 = vadd.f32 %v2167, %v2762
        %v2793 = vadd.f32 %v2172, %v2767
        %v2794 = vadd.f32 %v2175, %v2770
        %v2795 = vadd.f32 %v2180, %v2775
        %v2796 = vadd.f32 %v2183, %v2778
        %2797 = vrot.lane.b32.xlu0 %v681, 32
        %v2798 = vpop.permute.xlu0 %2797
        %2799 = vrot.lane.b32.xlu0 %v682, 32
        %v2800 = vpop.permute.xlu0 %2799
        %2801 = vrot.lane.b32.xlu0 %v683, 32
        %v2802 = vpop.permute.xlu0 %2801
        %2803 = vrot.lane.b32.xlu0 %v684, 32
        %v2804 = vpop.permute.xlu0 %2803
        %2805 = vrot.lane.b32.xlu0 %v685, 32
        %v2806 = vpop.permute.xlu0 %2805
        %2807 = vrot.lane.b32.xlu0 %v686, 32
        %v2808 = vpop.permute.xlu0 %2807
        %2809 = vrot.lane.b32.xlu0 %v687, 32
        %v2810 = vpop.permute.xlu0 %2809
        %2811 = vrot.lane.b32.xlu0 %v688, 32
        %v2812 = vpop.permute.xlu0 %2811
        %2813 = vrot.lane.b32.xlu0 %v850, 32
        %v2814 = vpop.permute.xlu0 %2813
        %2815 = vrot.lane.b32.xlu0 %v851, 32
        %v2816 = vpop.permute.xlu0 %2815
        %2817 = vrot.lane.b32.xlu0 %v852, 32
        %v2818 = vpop.permute.xlu0 %2817
        %2819 = vrot.lane.b32.xlu0 %v853, 32
        %v2820 = vpop.permute.xlu0 %2819
        %2821 = vrot.lane.b32.xlu0 %v854, 32
        %v2822 = vpop.permute.xlu0 %2821
        %2823 = vrot.lane.b32.xlu0 %v855, 32
        %v2824 = vpop.permute.xlu0 %2823
        %2825 = vrot.lane.b32.xlu0 %v856, 32
        %v2826 = vpop.permute.xlu0 %2825
        %2827 = vrot.lane.b32.xlu0 %v857, 32
        %v2828 = vpop.permute.xlu0 %2827
        %v2830 = vsel %vm1027, %v2798, 0
        %v2833 = vsel %vm1027, %v2800, 0
        %v2836 = vsel %vm1027, %v2802, 0
        %v2839 = vsel %vm1027, %v2804, 0
        %v2842 = vsel %vm1027, %v2806, 0
        %v2845 = vsel %vm1027, %v2808, 0
        %v2848 = vsel %vm1027, %v2810, 0
        %v2851 = vsel %vm1027, %v2812, 0
        %v2854 = vsel %vm1027, %v2814, 0
        %v2857 = vsel %vm1027, %v2816, 0
        %v2860 = vsel %vm1027, %v2818, 0
        %v2863 = vsel %vm1027, %v2820, 0
        %v2866 = vsel %vm1027, %v2822, 0
        %v2869 = vsel %vm1027, %v2824, 0
        %v2872 = vsel %vm1027, %v2826, 0
        %v2875 = vsel %vm1027, %v2828, 0
        %2877 = vmatprep.subr.bf16.mxu0 0
        %2878 = vmatpush1.bf16.xpose.msra.mxu0 %v2854
        %2879 = vmatprep.subr.bf16.mxu0 0
        %2880 = vmatpush1.bf16.xpose.msra.mxu0 %v2857
        %2881 = vmatprep.subr.bf16.mxu0 0
        %2882 = vmatpush1.bf16.xpose.msra.mxu0 %v2860
        %2883 = vmatprep.subr.bf16.mxu0 0
        %2884 = vmatpush1.bf16.xpose.msra.mxu0 %v2863
        %2885 = vmatprep.subr.bf16.mxu0 0
        %2886 = vmatpush1.bf16.xpose.msra.mxu0 %v2866
        %2887 = vmatprep.subr.bf16.mxu0 0
        %2888 = vmatpush1.bf16.xpose.msra.mxu0 %v2869
        %2889 = vmatprep.subr.bf16.mxu0 0
        %2890 = vmatpush1.bf16.xpose.msra.mxu0 %v2872
        %2891 = vmatprep.subr.bf16.mxu0 0
        %2892 = vmatpush1.bf16.xpose.msra.mxu0 %v2875
        %2893 = vmatprep.subr.bf16.mxu0 0
        %2894 = vmatpush1.bf16.xpose.msra.mxu0 0
        %2895 = vmatprep.subr.bf16.mxu0 0
        %2896 = vmatpush1.bf16.xpose.msra.mxu0 0
        %2897 = vmatprep.subr.bf16.mxu0 0
        %2898 = vmatpush1.bf16.xpose.msra.mxu0 0
        %2899 = vmatprep.subr.bf16.mxu0 0
        %2900 = vmatpush1.bf16.xpose.msra.mxu0 0
        %2901 = vmatprep.subr.bf16.mxu0 0
        %2902 = vmatpush1.bf16.xpose.msra.mxu0 0
        %2903 = vmatprep.subr.bf16.mxu0 0
        %2904 = vmatpush1.bf16.xpose.msra.mxu0 0
        %2905 = vmatprep.subr.bf16.mxu0 0
        %2906 = vmatpush1.bf16.xpose.msra.mxu0 0
        %2907 = vmatprep.subr.bf16.mxu0 0
        %2908 = vmatpush1.bf16.xpose.msra.mxu0 0
        %2909 = vmatprep.mubr.bf16.mxu0 0
        %2910 = vmatmul.mubr.bf16.gmra.mrb[0].mxu0 %v2830
        %v2911 = vpop.f32.mrb[0].mxu0
        %v2912 = vadd.f32 0.0, %v2911
        %v2913 = vpop.f32.mrb[0].mxu0
        %v2914 = vpop.f32.mrb[0].mxu0
        %v2915 = vadd.f32 0.0, %v2914
        %v2916 = vpop.f32.mrb[0].mxu0
        %2917 = vmatprep.mubr.bf16.mxu0 0
        %2918 = vmatmul.mubr.bf16.gmra.mrb[0].mxu0 %v2833
        %v2919 = vpop.f32.mrb[0].mxu0
        %v2920 = vadd.f32 0.0, %v2919
        %v2921 = vpop.f32.mrb[0].mxu0
        %v2922 = vpop.f32.mrb[0].mxu0
        %v2923 = vadd.f32 0.0, %v2922
        %v2924 = vpop.f32.mrb[0].mxu0
        %2925 = vmatprep.mubr.bf16.mxu0 0
        %2926 = vmatmul.mubr.bf16.gmra.mrb[0].mxu0 %v2836
        %v2927 = vpop.f32.mrb[0].mxu0
        %v2928 = vadd.f32 0.0, %v2927
        %v2929 = vpop.f32.mrb[0].mxu0
        %v2930 = vpop.f32.mrb[0].mxu0
        %v2931 = vadd.f32 0.0, %v2930
        %v2932 = vpop.f32.mrb[0].mxu0
        %2933 = vmatprep.mubr.bf16.mxu0 0
        %2934 = vmatmul.mubr.bf16.gmra.mrb[0].mxu0 %v2839
        %v2935 = vpop.f32.mrb[0].mxu0
        %v2936 = vadd.f32 0.0, %v2935
        %v2937 = vpop.f32.mrb[0].mxu0
        %v2938 = vpop.f32.mrb[0].mxu0
        %v2939 = vadd.f32 0.0, %v2938
        %v2940 = vpop.f32.mrb[0].mxu0
        %2941 = vmatprep.mubr.bf16.mxu0 0
        %2942 = vmatmul.mubr.bf16.gmra.mrb[0].mxu0 %v2842
        %v2943 = vpop.f32.mrb[0].mxu0
        %v2944 = vadd.f32 0.0, %v2943
        %v2945 = vpop.f32.mrb[0].mxu0
        %v2946 = vpop.f32.mrb[0].mxu0
        %v2947 = vadd.f32 0.0, %v2946
        %v2948 = vpop.f32.mrb[0].mxu0
        %2949 = vmatprep.mubr.bf16.mxu0 0
        %2950 = vmatmul.mubr.bf16.gmra.mrb[0].mxu0 %v2845
        %v2951 = vpop.f32.mrb[0].mxu0
        %v2952 = vadd.f32 0.0, %v2951
        %v2953 = vpop.f32.mrb[0].mxu0
        %v2954 = vpop.f32.mrb[0].mxu0
        %v2955 = vadd.f32 0.0, %v2954
        %v2956 = vpop.f32.mrb[0].mxu0
        %2957 = vmatprep.mubr.bf16.mxu0 0
        %2958 = vmatmul.mubr.bf16.gmra.mrb[0].mxu0 %v2848
        %v2959 = vpop.f32.mrb[0].mxu0
        %v2960 = vadd.f32 0.0, %v2959
        %v2961 = vpop.f32.mrb[0].mxu0
        %v2962 = vpop.f32.mrb[0].mxu0
        %v2963 = vadd.f32 0.0, %v2962
        %v2964 = vpop.f32.mrb[0].mxu0
        %2965 = vmatprep.mubr.bf16.mxu0 0
        %2966 = vmatmul.mubr.bf16.gmra.mrb[0].mxu0 %v2851
        %v2967 = vpop.f32.mrb[0].mxu0
        %v2968 = vadd.f32 0.0, %v2967
        %v2969 = vpop.f32.mrb[0].mxu0
        %v2970 = vpop.f32.mrb[0].mxu0
        %v2971 = vadd.f32 0.0, %v2970
        %v2972 = vpop.f32.mrb[0].mxu0
        %2973 = vdwg.mxu0
        %2974 = vmax.xlane.f32.xlu0 %v2912
        %v2975 = vpop.xlane.xlu0 %2974
        %2976 = vmax.xlane.f32.xlu0 %v2915
        %v2977 = vpop.xlane.xlu0 %2976
        %2978 = vmax.xlane.f32.xlu0 %v2920
        %v2979 = vpop.xlane.xlu0 %2978
        %2980 = vmax.xlane.f32.xlu0 %v2923
        %v2981 = vpop.xlane.xlu0 %2980
        %2982 = vmax.xlane.f32.xlu0 %v2928
        %v2983 = vpop.xlane.xlu0 %2982
        %2984 = vmax.xlane.f32.xlu0 %v2931
        %v2985 = vpop.xlane.xlu0 %2984
        %2986 = vmax.xlane.f32.xlu0 %v2936
        %v2987 = vpop.xlane.xlu0 %2986
        %2988 = vmax.xlane.f32.xlu0 %v2939
        %v2989 = vpop.xlane.xlu0 %2988
        %2990 = vmax.xlane.f32.xlu0 %v2944
        %v2991 = vpop.xlane.xlu0 %2990
        %2992 = vmax.xlane.f32.xlu0 %v2947
        %v2993 = vpop.xlane.xlu0 %2992
        %2994 = vmax.xlane.f32.xlu0 %v2952
        %v2995 = vpop.xlane.xlu0 %2994
        %2996 = vmax.xlane.f32.xlu0 %v2955
        %v2997 = vpop.xlane.xlu0 %2996
        %2998 = vmax.xlane.f32.xlu0 %v2960
        %v2999 = vpop.xlane.xlu0 %2998
        %3000 = vmax.xlane.f32.xlu0 %v2963
        %v3001 = vpop.xlane.xlu0 %3000
        %3002 = vmax.xlane.f32.xlu0 %v2968
        %v3003 = vpop.xlane.xlu0 %3002
        %3004 = vmax.xlane.f32.xlu0 %v2971
        %v3005 = vpop.xlane.xlu0 %3004
        %v3006 = vsub.f32 %v2912, %v2975
        %v3007 = vsub.f32 %v2915, %v2977
        %v3008 = vsub.f32 %v2920, %v2979
        %v3009 = vsub.f32 %v2923, %v2981
        %v3010 = vsub.f32 %v2928, %v2983
        %v3011 = vsub.f32 %v2931, %v2985
        %v3012 = vsub.f32 %v2936, %v2987
        %v3013 = vsub.f32 %v2939, %v2989
        %v3014 = vsub.f32 %v2944, %v2991
        %v3015 = vsub.f32 %v2947, %v2993
        %v3016 = vsub.f32 %v2952, %v2995
        %v3017 = vsub.f32 %v2955, %v2997
        %v3018 = vsub.f32 %v2960, %v2999
        %v3019 = vsub.f32 %v2963, %v3001
        %v3020 = vsub.f32 %v2968, %v3003
        %v3021 = vsub.f32 %v2971, %v3005
        %v3022 = vmul.f32 %v3006, 1.442695
        %v3023 = vpow.pop %v3022
        %v3024 = vmul.f32 %v3007, 1.442695
        %v3025 = vpow.pop %v3024
        %v3026 = vmul.f32 %v3008, 1.442695
        %v3027 = vpow.pop %v3026
        %v3028 = vmul.f32 %v3009, 1.442695
        %v3029 = vpow.pop %v3028
        %v3030 = vmul.f32 %v3010, 1.442695
        %v3031 = vpow.pop %v3030
        %v3032 = vmul.f32 %v3011, 1.442695
        %v3033 = vpow.pop %v3032
        %v3034 = vmul.f32 %v3012, 1.442695
        %v3035 = vpow.pop %v3034
        %v3036 = vmul.f32 %v3013, 1.442695
        %v3037 = vpow.pop %v3036
        %v3038 = vmul.f32 %v3014, 1.442695
        %v3039 = vpow.pop %v3038
        %v3040 = vmul.f32 %v3015, 1.442695
        %v3041 = vpow.pop %v3040
        %v3042 = vmul.f32 %v3016, 1.442695
        %v3043 = vpow.pop %v3042
        %v3044 = vmul.f32 %v3017, 1.442695
        %v3045 = vpow.pop %v3044
        %v3046 = vmul.f32 %v3018, 1.442695
        %v3047 = vpow.pop %v3046
        %v3048 = vmul.f32 %v3019, 1.442695
        %v3049 = vpow.pop %v3048
        %v3050 = vmul.f32 %v3020, 1.442695
        %v3051 = vpow.pop %v3050
        %v3052 = vmul.f32 %v3021, 1.442695
        %v3053 = vpow.pop %v3052
        %3054 = vadd.xlane.f32.xlu0 %v3023
        %v3055 = vpop.xlane.xlu0 %3054
        %3056 = vadd.xlane.f32.xlu0 %v3025
        %v3057 = vpop.xlane.xlu0 %3056
        %3058 = vadd.xlane.f32.xlu0 %v3027
        %v3059 = vpop.xlane.xlu0 %3058
        %3060 = vadd.xlane.f32.xlu0 %v3029
        %v3061 = vpop.xlane.xlu0 %3060
        %3062 = vadd.xlane.f32.xlu0 %v3031
        %v3063 = vpop.xlane.xlu0 %3062
        %3064 = vadd.xlane.f32.xlu0 %v3033
        %v3065 = vpop.xlane.xlu0 %3064
        %3066 = vadd.xlane.f32.xlu0 %v3035
        %v3067 = vpop.xlane.xlu0 %3066
        %3068 = vadd.xlane.f32.xlu0 %v3037
        %v3069 = vpop.xlane.xlu0 %3068
        %3070 = vadd.xlane.f32.xlu0 %v3039
        %v3071 = vpop.xlane.xlu0 %3070
        %3072 = vadd.xlane.f32.xlu0 %v3041
        %v3073 = vpop.xlane.xlu0 %3072
        %3074 = vadd.xlane.f32.xlu0 %v3043
        %v3075 = vpop.xlane.xlu0 %3074
        %3076 = vadd.xlane.f32.xlu0 %v3045
        %v3077 = vpop.xlane.xlu0 %3076
        %3078 = vadd.xlane.f32.xlu0 %v3047
        %v3079 = vpop.xlane.xlu0 %3078
        %3080 = vadd.xlane.f32.xlu0 %v3049
        %v3081 = vpop.xlane.xlu0 %3080
        %3082 = vadd.xlane.f32.xlu0 %v3051
        %v3083 = vpop.xlane.xlu0 %3082
        %3084 = vadd.xlane.f32.xlu0 %v3053
        %v3085 = vpop.xlane.xlu0 %3084
        %v3086 = vpack.c.bf16 %v3025, %v3023
        %v3087 = vpack.c.bf16 %v3029, %v3027
        %v3088 = vpack.c.bf16 %v3033, %v3031
        %v3089 = vpack.c.bf16 %v3037, %v3035
        %v3090 = vpack.c.bf16 %v3041, %v3039
        %v3091 = vpack.c.bf16 %v3045, %v3043
        %v3092 = vpack.c.bf16 %v3049, %v3047
        %v3093 = vpack.c.bf16 %v3053, %v3051
        %3094 = vrot.lane.b32.xlu0 %v1019, 32
        %v3095 = vpop.permute.xlu0 %3094
        %3096 = vrot.lane.b32.xlu0 %v1020, 32
        %v3097 = vpop.permute.xlu0 %3096
        %3098 = vrot.lane.b32.xlu0 %v1021, 32
        %v3099 = vpop.permute.xlu0 %3098
        %3100 = vrot.lane.b32.xlu0 %v1022, 32
        %v3101 = vpop.permute.xlu0 %3100
        %3102 = vrot.lane.b32.xlu0 %v1023, 32
        %v3103 = vpop.permute.xlu0 %3102
        %3104 = vrot.lane.b32.xlu0 %v1024, 32
        %v3105 = vpop.permute.xlu0 %3104
        %3106 = vrot.lane.b32.xlu0 %v1025, 32
        %v3107 = vpop.permute.xlu0 %3106
        %3108 = vrot.lane.b32.xlu0 %v1026, 32
        %v3109 = vpop.permute.xlu0 %3108
        %3118 = vmatprep.subr.bf16.mxu0 0
        %3119 = vmatpush1.bf16.msra.mxu0 %v3095
        %3120 = vmatprep.subr.bf16.mxu0 0
        %3121 = vmatpush1.bf16.msra.mxu0 %v3097
        %3122 = vmatprep.subr.bf16.mxu0 0
        %3123 = vmatpush1.bf16.msra.mxu0 %v3099
        %3124 = vmatprep.subr.bf16.mxu0 0
        %3125 = vmatpush1.bf16.msra.mxu0 %v3101
        %3126 = vmatprep.subr.bf16.mxu0 0
        %3127 = vmatpush1.bf16.msra.mxu0 %v3103
        %3128 = vmatprep.subr.bf16.mxu0 0
        %3129 = vmatpush1.bf16.msra.mxu0 %v3105
        %3130 = vmatprep.subr.bf16.mxu0 0
        %3131 = vmatpush1.bf16.msra.mxu0 %v3107
        %3132 = vmatprep.subr.bf16.mxu0 0
        %3133 = vmatpush1.bf16.msra.mxu0 %v3109
        %3134 = vmatprep.subr.bf16.mxu0 0
        %3135 = vmatpush1.bf16.msra.mxu0 0
        %3136 = vmatprep.subr.bf16.mxu0 0
        %3137 = vmatpush1.bf16.msra.mxu0 0
        %3138 = vmatprep.subr.bf16.mxu0 0
        %3139 = vmatpush1.bf16.msra.mxu0 0
        %3140 = vmatprep.subr.bf16.mxu0 0
        %3141 = vmatpush1.bf16.msra.mxu0 0
        %3142 = vmatprep.subr.bf16.mxu0 0
        %3143 = vmatpush1.bf16.msra.mxu0 0
        %3144 = vmatprep.subr.bf16.mxu0 0
        %3145 = vmatpush1.bf16.msra.mxu0 0
        %3146 = vmatprep.subr.bf16.mxu0 0
        %3147 = vmatpush1.bf16.msra.mxu0 0
        %3148 = vmatprep.subr.bf16.mxu0 0
        %3149 = vmatpush1.bf16.msra.mxu0 0
        %3150 = vmatprep.mubr.bf16.mxu0 0
        %3151 = vmatmul.mubr.bf16.gmra.mrb[0].mxu0 %v3086
        %v3152 = vpop.f32.mrb[0].mxu0
        %v3153 = vadd.f32 0.0, %v3152
        %v3154 = vpop.f32.mrb[0].mxu0
        %v3155 = vpop.f32.mrb[0].mxu0
        %v3156 = vadd.f32 0.0, %v3155
        %v3157 = vpop.f32.mrb[0].mxu0
        %3158 = vmatprep.mubr.bf16.mxu0 0
        %3159 = vmatmul.mubr.bf16.gmra.mrb[0].mxu0 %v3087
        %v3160 = vpop.f32.mrb[0].mxu0
        %v3161 = vadd.f32 0.0, %v3160
        %v3162 = vpop.f32.mrb[0].mxu0
        %v3163 = vpop.f32.mrb[0].mxu0
        %v3164 = vadd.f32 0.0, %v3163
        %v3165 = vpop.f32.mrb[0].mxu0
        %3166 = vmatprep.mubr.bf16.mxu0 0
        %3167 = vmatmul.mubr.bf16.gmra.mrb[0].mxu0 %v3088
        %v3168 = vpop.f32.mrb[0].mxu0
        %v3169 = vadd.f32 0.0, %v3168
        %v3170 = vpop.f32.mrb[0].mxu0
        %v3171 = vpop.f32.mrb[0].mxu0
        %v3172 = vadd.f32 0.0, %v3171
        %v3173 = vpop.f32.mrb[0].mxu0
        %3174 = vmatprep.mubr.bf16.mxu0 0
        %3175 = vmatmul.mubr.bf16.gmra.mrb[0].mxu0 %v3089
        %v3176 = vpop.f32.mrb[0].mxu0
        %v3177 = vadd.f32 0.0, %v3176
        %v3178 = vpop.f32.mrb[0].mxu0
        %v3179 = vpop.f32.mrb[0].mxu0
        %v3180 = vadd.f32 0.0, %v3179
        %v3181 = vpop.f32.mrb[0].mxu0
        %3182 = vmatprep.mubr.bf16.mxu0 0
        %3183 = vmatmul.mubr.bf16.gmra.mrb[0].mxu0 %v3090
        %v3184 = vpop.f32.mrb[0].mxu0
        %v3185 = vadd.f32 0.0, %v3184
        %v3186 = vpop.f32.mrb[0].mxu0
        %v3187 = vpop.f32.mrb[0].mxu0
        %v3188 = vadd.f32 0.0, %v3187
        %v3189 = vpop.f32.mrb[0].mxu0
        %3190 = vmatprep.mubr.bf16.mxu0 0
        %3191 = vmatmul.mubr.bf16.gmra.mrb[0].mxu0 %v3091
        %v3192 = vpop.f32.mrb[0].mxu0
        %v3193 = vadd.f32 0.0, %v3192
        %v3194 = vpop.f32.mrb[0].mxu0
        %v3195 = vpop.f32.mrb[0].mxu0
        %v3196 = vadd.f32 0.0, %v3195
        %v3197 = vpop.f32.mrb[0].mxu0
        %3198 = vmatprep.mubr.bf16.mxu0 0
        %3199 = vmatmul.mubr.bf16.gmra.mrb[0].mxu0 %v3092
        %v3200 = vpop.f32.mrb[0].mxu0
        %v3201 = vadd.f32 0.0, %v3200
        %v3202 = vpop.f32.mrb[0].mxu0
        %v3203 = vpop.f32.mrb[0].mxu0
        %v3204 = vadd.f32 0.0, %v3203
        %v3205 = vpop.f32.mrb[0].mxu0
        %3206 = vmatprep.mubr.bf16.mxu0 0
        %3207 = vmatmul.mubr.bf16.gmra.mrb[0].mxu0 %v3093
        %v3208 = vpop.f32.mrb[0].mxu0
        %v3209 = vadd.f32 0.0, %v3208
        %v3210 = vpop.f32.mrb[0].mxu0
        %v3211 = vpop.f32.mrb[0].mxu0
        %v3212 = vadd.f32 0.0, %v3211
        %v3213 = vpop.f32.mrb[0].mxu0
        %3214 = vdwg.mxu0
        %v3215 = vrcp.pop %v3055
        %v3216 = vrcp.pop %v3057
        %v3217 = vrcp.pop %v3059
        %v3218 = vrcp.pop %v3061
        %v3219 = vrcp.pop %v3063
        %v3220 = vrcp.pop %v3065
        %v3221 = vrcp.pop %v3067
        %v3222 = vrcp.pop %v3069
        %v3223 = vrcp.pop %v3071
        %v3224 = vrcp.pop %v3073
        %v3225 = vrcp.pop %v3075
        %v3226 = vrcp.pop %v3077
        %v3227 = vrcp.pop %v3079
        %v3228 = vrcp.pop %v3081
        %v3229 = vrcp.pop %v3083
        %v3230 = vrcp.pop %v3085
        %v3231 = vmul.f32 %v3153, %v3215
        %v3232 = vmul.f32 %v3156, %v3216
        %v3233 = vmul.f32 %v3161, %v3217
        %v3234 = vmul.f32 %v3164, %v3218
        %v3235 = vmul.f32 %v3169, %v3219
        %v3236 = vmul.f32 %v3172, %v3220
        %v3237 = vmul.f32 %v3177, %v3221
        %v3238 = vmul.f32 %v3180, %v3222
        %v3239 = vmul.f32 %v3185, %v3223
        %v3240 = vmul.f32 %v3188, %v3224
        %v3241 = vmul.f32 %v3193, %v3225
        %v3242 = vmul.f32 %v3196, %v3226
        %v3243 = vmul.f32 %v3201, %v3227
        %v3244 = vmul.f32 %v3204, %v3228
        %v3245 = vmul.f32 %v3209, %v3229
        %v3246 = vmul.f32 %v3212, %v3230
        %v3247 = vpack.c.bf16 %v3232, %v3231
        %v3248 = vpack.c.bf16 %v3234, %v3233
        %v3249 = vpack.c.bf16 %v3236, %v3235
        %v3250 = vpack.c.bf16 %v3238, %v3237
        %v3251 = vpack.c.bf16 %v3240, %v3239
        %v3252 = vpack.c.bf16 %v3242, %v3241
        %v3253 = vpack.c.bf16 %v3244, %v3243
        %v3254 = vpack.c.bf16 %v3246, %v3245
        %v3255 = vld [vmem:[#allocation11 + $0x30] sm:$0xf]
        %v3256 = vld [vmem:[#allocation11 + $0x34] sm:$0xf]
        %v3257 = vld [vmem:[#allocation11 + $0x38] sm:$0xf]
        %v3258 = vld [vmem:[#allocation11 + $0x3c] sm:$0xf]
        %v3263 = vunpack.c.l.b16 %v3255
        %v3264 = vunpack.c.l.b16 %v3256
        %v3265 = vunpack.c.l.b16 %v3257
        %v3266 = vunpack.c.l.b16 %v3258
        %v3267 = vpack.c.b16 %v3264, %v3263
        %v3268 = vpack.c.b16 %v3266, %v3265
        %v3272 = vsel %vm1027, %v3247, 0
        %v3275 = vsel %vm1027, %v3248, 0
        %v3278 = vsel %vm1027, %v3249, 0
        %v3281 = vsel %vm1027, %v3250, 0
        %v3284 = vsel %vm1027, %v3251, 0
        %v3287 = vsel %vm1027, %v3252, 0
        %v3290 = vsel %vm1027, %v3253, 0
        %v3293 = vsel %vm1027, %v3254, 0
        %3295 = vmatprep.subr.bf16.mxu0 0
        %3296 = vmatpush1.bf16.msra.mxu0 %v3267
        %3297 = vmatprep.subr.bf16.mxu0 0
        %3298 = vmatpush1.bf16.msra.mxu0 %v3268
        %3299 = vmatprep.subr.bf16.mxu0 0
        %3300 = vmatpush1.bf16.msra.mxu0 0
        %3301 = vmatprep.subr.bf16.mxu0 0
        %3302 = vmatpush1.bf16.msra.mxu0 0
        %3303 = vmatprep.subr.bf16.mxu0 0
        %3304 = vmatpush1.bf16.msra.mxu0 0
        %3305 = vmatprep.subr.bf16.mxu0 0
        %3306 = vmatpush1.bf16.msra.mxu0 0
        %3307 = vmatprep.subr.bf16.mxu0 0
        %3308 = vmatpush1.bf16.msra.mxu0 0
        %3309 = vmatprep.subr.bf16.mxu0 0
        %3310 = vmatpush1.bf16.msra.mxu0 0
        %3311 = vmatprep.subr.bf16.mxu0 0
        %3312 = vmatpush1.bf16.msra.mxu0 0
        %3313 = vmatprep.subr.bf16.mxu0 0
        %3314 = vmatpush1.bf16.msra.mxu0 0
        %3315 = vmatprep.subr.bf16.mxu0 0
        %3316 = vmatpush1.bf16.msra.mxu0 0
        %3317 = vmatprep.subr.bf16.mxu0 0
        %3318 = vmatpush1.bf16.msra.mxu0 0
        %3319 = vmatprep.subr.bf16.mxu0 0
        %3320 = vmatpush1.bf16.msra.mxu0 0
        %3321 = vmatprep.subr.bf16.mxu0 0
        %3322 = vmatpush1.bf16.msra.mxu0 0
        %3323 = vmatprep.subr.bf16.mxu0 0
        %3324 = vmatpush1.bf16.msra.mxu0 0
        %3325 = vmatprep.subr.bf16.mxu0 0
        %3326 = vmatpush1.bf16.msra.mxu0 0
        %3327 = vmatprep.mubr.bf16.mxu0 0
        %3328 = vmatmul.mubr.bf16.gmra.mrb[0].mxu0 %v3272
        %v3329 = vpop.f32.mrb[0].mxu0
        %v3330 = vadd.f32 0.0, %v3329
        %v3331 = vpop.f32.mrb[0].mxu0
        %v3332 = vpop.f32.mrb[0].mxu0
        %v3333 = vadd.f32 0.0, %v3332
        %v3334 = vpop.f32.mrb[0].mxu0
        %3335 = vmatprep.mubr.bf16.mxu0 0
        %3336 = vmatmul.mubr.bf16.gmra.mrb[0].mxu0 %v3275
        %v3337 = vpop.f32.mrb[0].mxu0
        %v3338 = vadd.f32 0.0, %v3337
        %v3339 = vpop.f32.mrb[0].mxu0
        %v3340 = vpop.f32.mrb[0].mxu0
        %v3341 = vadd.f32 0.0, %v3340
        %v3342 = vpop.f32.mrb[0].mxu0
        %3343 = vmatprep.mubr.bf16.mxu0 0
        %3344 = vmatmul.mubr.bf16.gmra.mrb[0].mxu0 %v3278
        %v3345 = vpop.f32.mrb[0].mxu0
        %v3346 = vadd.f32 0.0, %v3345
        %v3347 = vpop.f32.mrb[0].mxu0
        %v3348 = vpop.f32.mrb[0].mxu0
        %v3349 = vadd.f32 0.0, %v3348
        %v3350 = vpop.f32.mrb[0].mxu0
        %3351 = vmatprep.mubr.bf16.mxu0 0
        %3352 = vmatmul.mubr.bf16.gmra.mrb[0].mxu0 %v3281
        %v3353 = vpop.f32.mrb[0].mxu0
        %v3354 = vadd.f32 0.0, %v3353
        %v3355 = vpop.f32.mrb[0].mxu0
        %v3356 = vpop.f32.mrb[0].mxu0
        %v3357 = vadd.f32 0.0, %v3356
        %v3358 = vpop.f32.mrb[0].mxu0
        %3359 = vmatprep.mubr.bf16.mxu0 0
        %3360 = vmatmul.mubr.bf16.gmra.mrb[0].mxu0 %v3284
        %v3361 = vpop.f32.mrb[0].mxu0
        %v3362 = vadd.f32 0.0, %v3361
        %v3363 = vpop.f32.mrb[0].mxu0
        %v3364 = vpop.f32.mrb[0].mxu0
        %v3365 = vadd.f32 0.0, %v3364
        %v3366 = vpop.f32.mrb[0].mxu0
        %3367 = vmatprep.mubr.bf16.mxu0 0
        %3368 = vmatmul.mubr.bf16.gmra.mrb[0].mxu0 %v3287
        %v3369 = vpop.f32.mrb[0].mxu0
        %v3370 = vadd.f32 0.0, %v3369
        %v3371 = vpop.f32.mrb[0].mxu0
        %v3372 = vpop.f32.mrb[0].mxu0
        %v3373 = vadd.f32 0.0, %v3372
        %v3374 = vpop.f32.mrb[0].mxu0
        %3375 = vmatprep.mubr.bf16.mxu0 0
        %3376 = vmatmul.mubr.bf16.gmra.mrb[0].mxu0 %v3290
        %v3377 = vpop.f32.mrb[0].mxu0
        %v3378 = vadd.f32 0.0, %v3377
        %v3379 = vpop.f32.mrb[0].mxu0
        %v3380 = vpop.f32.mrb[0].mxu0
        %v3381 = vadd.f32 0.0, %v3380
        %v3382 = vpop.f32.mrb[0].mxu0
        %3383 = vmatprep.mubr.bf16.mxu0 0
        %3384 = vmatmul.mubr.bf16.gmra.mrb[0].mxu0 %v3293
        %v3385 = vpop.f32.mrb[0].mxu0
        %v3386 = vadd.f32 0.0, %v3385
        %v3387 = vpop.f32.mrb[0].mxu0
        %v3388 = vpop.f32.mrb[0].mxu0
        %v3389 = vadd.f32 0.0, %v3388
        %v3390 = vpop.f32.mrb[0].mxu0
        %3391 = vdwg.mxu0
        %v3392 = vadd.f32 %v2781, %v3330
        %v3393 = vadd.f32 %v2782, %v3333
        %v3394 = vadd.f32 %v2783, %v3338
        %v3395 = vadd.f32 %v2784, %v3341
        %v3396 = vadd.f32 %v2785, %v3346
        %v3397 = vadd.f32 %v2786, %v3349
        %v3398 = vadd.f32 %v2787, %v3354
        %v3399 = vadd.f32 %v2788, %v3357
        %v3400 = vadd.f32 %v2789, %v3362
        %v3401 = vadd.f32 %v2790, %v3365
        %v3402 = vadd.f32 %v2791, %v3370
        %v3403 = vadd.f32 %v2792, %v3373
        %v3404 = vadd.f32 %v2793, %v3378
        %v3405 = vadd.f32 %v2794, %v3381
        %v3406 = vadd.f32 %v2795, %v3386
        %v3407 = vadd.f32 %v2796, %v3389
        %v3408 = vadd.f32 %v480, %v3392
        %v3409 = vadd.f32 %v481, %v3393
        %v3410 = vadd.f32 %v482, %v3394
        %v3411 = vadd.f32 %v483, %v3395
        %v3412 = vadd.f32 %v484, %v3396
        %v3413 = vadd.f32 %v485, %v3397
        %v3414 = vadd.f32 %v486, %v3398
        %v3415 = vadd.f32 %v487, %v3399
        %v3416 = vadd.f32 %v488, %v3400
        %v3417 = vadd.f32 %v489, %v3401
        %v3418 = vadd.f32 %v490, %v3402
        %v3419 = vadd.f32 %v491, %v3403
        %v3420 = vadd.f32 %v492, %v3404
        %v3421 = vadd.f32 %v493, %v3405
        %v3422 = vadd.f32 %v494, %v3406
        %v3423 = vadd.f32 %v495, %v3407
        %s3424 = sld [smem:[#allocation15]]
        %s3425 = sld [smem:[#allocation15 + $0x1]]
        %3426 = vadd.xlane.f32.xlu0 %v3408
        %v3427 = vpop.xlane.xlu0 %3426
        %3428 = vadd.xlane.f32.xlu0 %v3409
        %v3429 = vpop.xlane.xlu0 %3428
        %3430 = vadd.xlane.f32.xlu0 %v3410
        %v3431 = vpop.xlane.xlu0 %3430
        %3432 = vadd.xlane.f32.xlu0 %v3411
        %v3433 = vpop.xlane.xlu0 %3432
        %3434 = vadd.xlane.f32.xlu0 %v3412
        %v3435 = vpop.xlane.xlu0 %3434
        %3436 = vadd.xlane.f32.xlu0 %v3413
        %v3437 = vpop.xlane.xlu0 %3436
        %3438 = vadd.xlane.f32.xlu0 %v3414
        %v3439 = vpop.xlane.xlu0 %3438
        %3440 = vadd.xlane.f32.xlu0 %v3415
        %v3441 = vpop.xlane.xlu0 %3440
        %3442 = vadd.xlane.f32.xlu0 %v3416
        %v3443 = vpop.xlane.xlu0 %3442
        %3444 = vadd.xlane.f32.xlu0 %v3417
        %v3445 = vpop.xlane.xlu0 %3444
        %3446 = vadd.xlane.f32.xlu0 %v3418
        %v3447 = vpop.xlane.xlu0 %3446
        %3448 = vadd.xlane.f32.xlu0 %v3419
        %v3449 = vpop.xlane.xlu0 %3448
        %3450 = vadd.xlane.f32.xlu0 %v3420
        %v3451 = vpop.xlane.xlu0 %3450
        %3452 = vadd.xlane.f32.xlu0 %v3421
        %v3453 = vpop.xlane.xlu0 %3452
        %3454 = vadd.xlane.f32.xlu0 %v3422
        %v3455 = vpop.xlane.xlu0 %3454
        %3456 = vadd.xlane.f32.xlu0 %v3423
        %v3457 = vpop.xlane.xlu0 %3456
        %v3458 = vrcp.pop 128.0
        %v3459 = vmul.f32 %v3427, %v3458
        %v3460 = vmul.f32 %v3429, %v3458
        %v3461 = vmul.f32 %v3431, %v3458
        %v3462 = vmul.f32 %v3433, %v3458
        %v3463 = vmul.f32 %v3435, %v3458
        %v3464 = vmul.f32 %v3437, %v3458
        %v3465 = vmul.f32 %v3439, %v3458
        %v3466 = vmul.f32 %v3441, %v3458
        %v3467 = vmul.f32 %v3443, %v3458
        %v3468 = vmul.f32 %v3445, %v3458
        %v3469 = vmul.f32 %v3447, %v3458
        %v3470 = vmul.f32 %v3449, %v3458
        %v3471 = vmul.f32 %v3451, %v3458
        %v3472 = vmul.f32 %v3453, %v3458
        %v3473 = vmul.f32 %v3455, %v3458
        %v3474 = vmul.f32 %v3457, %v3458
        %v3475 = vsub.f32 %v3408, %v3459
        %v3476 = vsub.f32 %v3409, %v3460
        %v3477 = vsub.f32 %v3410, %v3461
        %v3478 = vsub.f32 %v3411, %v3462
        %v3479 = vsub.f32 %v3412, %v3463
        %v3480 = vsub.f32 %v3413, %v3464
        %v3481 = vsub.f32 %v3414, %v3465
        %v3482 = vsub.f32 %v3415, %v3466
        %v3483 = vsub.f32 %v3416, %v3467
        %v3484 = vsub.f32 %v3417, %v3468
        %v3485 = vsub.f32 %v3418, %v3469
        %v3486 = vsub.f32 %v3419, %v3470
        %v3487 = vsub.f32 %v3420, %v3471
        %v3488 = vsub.f32 %v3421, %v3472
        %v3489 = vsub.f32 %v3422, %v3473
        %v3490 = vsub.f32 %v3423, %v3474
        %v3491 = vmul.f32 %v3475, %v3475
        %v3492 = vmul.f32 %v3476, %v3476
        %v3493 = vmul.f32 %v3477, %v3477
        %v3494 = vmul.f32 %v3478, %v3478
        %v3495 = vmul.f32 %v3479, %v3479
        %v3496 = vmul.f32 %v3480, %v3480
        %v3497 = vmul.f32 %v3481, %v3481
        %v3498 = vmul.f32 %v3482, %v3482
        %v3499 = vmul.f32 %v3483, %v3483
        %v3500 = vmul.f32 %v3484, %v3484
        %v3501 = vmul.f32 %v3485, %v3485
        %v3502 = vmul.f32 %v3486, %v3486
        %v3503 = vmul.f32 %v3487, %v3487
        %v3504 = vmul.f32 %v3488, %v3488
        %v3505 = vmul.f32 %v3489, %v3489
        %v3506 = vmul.f32 %v3490, %v3490
        %3507 = vadd.xlane.f32.xlu0 %v3491
        %v3508 = vpop.xlane.xlu0 %3507
        %3509 = vadd.xlane.f32.xlu0 %v3492
        %v3510 = vpop.xlane.xlu0 %3509
        %3511 = vadd.xlane.f32.xlu0 %v3493
        %v3512 = vpop.xlane.xlu0 %3511
        %3513 = vadd.xlane.f32.xlu0 %v3494
        %v3514 = vpop.xlane.xlu0 %3513
        %3515 = vadd.xlane.f32.xlu0 %v3495
        %v3516 = vpop.xlane.xlu0 %3515
        %3517 = vadd.xlane.f32.xlu0 %v3496
        %v3518 = vpop.xlane.xlu0 %3517
        %3519 = vadd.xlane.f32.xlu0 %v3497
        %v3520 = vpop.xlane.xlu0 %3519
        %3521 = vadd.xlane.f32.xlu0 %v3498
        %v3522 = vpop.xlane.xlu0 %3521
        %3523 = vadd.xlane.f32.xlu0 %v3499
        %v3524 = vpop.xlane.xlu0 %3523
        %3525 = vadd.xlane.f32.xlu0 %v3500
        %v3526 = vpop.xlane.xlu0 %3525
        %3527 = vadd.xlane.f32.xlu0 %v3501
        %v3528 = vpop.xlane.xlu0 %3527
        %3529 = vadd.xlane.f32.xlu0 %v3502
        %v3530 = vpop.xlane.xlu0 %3529
        %3531 = vadd.xlane.f32.xlu0 %v3503
        %v3532 = vpop.xlane.xlu0 %3531
        %3533 = vadd.xlane.f32.xlu0 %v3504
        %v3534 = vpop.xlane.xlu0 %3533
        %3535 = vadd.xlane.f32.xlu0 %v3505
        %v3536 = vpop.xlane.xlu0 %3535
        %3537 = vadd.xlane.f32.xlu0 %v3506
        %v3538 = vpop.xlane.xlu0 %3537
        %v3539 = vmul.f32 %v3508, 0.007874016
        %v3540 = vmul.f32 %v3510, 0.007874016
        %v3541 = vmul.f32 %v3512, 0.007874016
        %v3542 = vmul.f32 %v3514, 0.007874016
        %v3543 = vmul.f32 %v3516, 0.007874016
        %v3544 = vmul.f32 %v3518, 0.007874016
        %v3545 = vmul.f32 %v3520, 0.007874016
        %v3546 = vmul.f32 %v3522, 0.007874016
        %v3547 = vmul.f32 %v3524, 0.007874016
        %v3548 = vmul.f32 %v3526, 0.007874016
        %v3549 = vmul.f32 %v3528, 0.007874016
        %v3550 = vmul.f32 %v3530, 0.007874016
        %v3551 = vmul.f32 %v3532, 0.007874016
        %v3552 = vmul.f32 %v3534, 0.007874016
        %v3553 = vmul.f32 %v3536, 0.007874016
        %v3554 = vmul.f32 %v3538, 0.007874016
        %v3555 = vadd.f32 %v3539, 1e-05
        %v3556 = vadd.f32 %v3540, 1e-05
        %v3557 = vadd.f32 %v3541, 1e-05
        %v3558 = vadd.f32 %v3542, 1e-05
        %v3559 = vadd.f32 %v3543, 1e-05
        %v3560 = vadd.f32 %v3544, 1e-05
        %v3561 = vadd.f32 %v3545, 1e-05
        %v3562 = vadd.f32 %v3546, 1e-05
        %v3563 = vadd.f32 %v3547, 1e-05
        %v3564 = vadd.f32 %v3548, 1e-05
        %v3565 = vadd.f32 %v3549, 1e-05
        %v3566 = vadd.f32 %v3550, 1e-05
        %v3567 = vadd.f32 %v3551, 1e-05
        %v3568 = vadd.f32 %v3552, 1e-05
        %v3569 = vadd.f32 %v3553, 1e-05
        %v3570 = vadd.f32 %v3554, 1e-05
        %v3571 = vrsqrt.pop %v3555
        %v3572 = vrsqrt.pop %v3556
        %v3573 = vrsqrt.pop %v3557
        %v3574 = vrsqrt.pop %v3558
        %v3575 = vrsqrt.pop %v3559
        %v3576 = vrsqrt.pop %v3560
        %v3577 = vrsqrt.pop %v3561
        %v3578 = vrsqrt.pop %v3562
        %v3579 = vrsqrt.pop %v3563
        %v3580 = vrsqrt.pop %v3564
        %v3581 = vrsqrt.pop %v3565
        %v3582 = vrsqrt.pop %v3566
        %v3583 = vrsqrt.pop %v3567
        %v3584 = vrsqrt.pop %v3568
        %v3585 = vrsqrt.pop %v3569
        %v3586 = vrsqrt.pop %v3570
        %v3587 = vstv %s3424
        %v3588 = vmul.f32 %v3587, %v3571
        %v3589 = vmul.f32 %v3587, %v3572
        %v3590 = vmul.f32 %v3587, %v3573
        %v3591 = vmul.f32 %v3587, %v3574
        %v3592 = vmul.f32 %v3587, %v3575
        %v3593 = vmul.f32 %v3587, %v3576
        %v3594 = vmul.f32 %v3587, %v3577
        %v3595 = vmul.f32 %v3587, %v3578
        %v3596 = vmul.f32 %v3587, %v3579
        %v3597 = vmul.f32 %v3587, %v3580
        %v3598 = vmul.f32 %v3587, %v3581
        %v3599 = vmul.f32 %v3587, %v3582
        %v3600 = vmul.f32 %v3587, %v3583
        %v3601 = vmul.f32 %v3587, %v3584
        %v3602 = vmul.f32 %v3587, %v3585
        %v3603 = vmul.f32 %v3587, %v3586
        %v3604 = vmul.f32 %v3475, %v3588
        %v3605 = vmul.f32 %v3476, %v3589
        %v3606 = vmul.f32 %v3477, %v3590
        %v3607 = vmul.f32 %v3478, %v3591
        %v3608 = vmul.f32 %v3479, %v3592
        %v3609 = vmul.f32 %v3480, %v3593
        %v3610 = vmul.f32 %v3481, %v3594
        %v3611 = vmul.f32 %v3482, %v3595
        %v3612 = vmul.f32 %v3483, %v3596
        %v3613 = vmul.f32 %v3484, %v3597
        %v3614 = vmul.f32 %v3485, %v3598
        %v3615 = vmul.f32 %v3486, %v3599
        %v3616 = vmul.f32 %v3487, %v3600
        %v3617 = vmul.f32 %v3488, %v3601
        %v3618 = vmul.f32 %v3489, %v3602
        %v3619 = vmul.f32 %v3490, %v3603
        %v3620 = vstv %s3425
        %v3621 = vadd.f32 %v3604, %v3620
        %v3622 = vadd.f32 %v3605, %v3620
        %v3623 = vadd.f32 %v3606, %v3620
        %v3624 = vadd.f32 %v3607, %v3620
        %v3625 = vadd.f32 %v3608, %v3620
        %v3626 = vadd.f32 %v3609, %v3620
        %v3627 = vadd.f32 %v3610, %v3620
        %v3628 = vadd.f32 %v3611, %v3620
        %v3629 = vadd.f32 %v3612, %v3620
        %v3630 = vadd.f32 %v3613, %v3620
        %v3631 = vadd.f32 %v3614, %v3620
        %v3632 = vadd.f32 %v3615, %v3620
        %v3633 = vadd.f32 %v3616, %v3620
        %v3634 = vadd.f32 %v3617, %v3620
        %v3635 = vadd.f32 %v3618, %v3620
        %v3636 = vadd.f32 %v3619, %v3620
        %v3637 = vpack.c.bf16 %v3622, %v3621
        %v3638 = vpack.c.bf16 %v3624, %v3623
        %v3639 = vpack.c.bf16 %v3626, %v3625
        %v3640 = vpack.c.bf16 %v3628, %v3627
        %v3641 = vpack.c.bf16 %v3630, %v3629
        %v3642 = vpack.c.bf16 %v3632, %v3631
        %v3643 = vpack.c.bf16 %v3634, %v3633
        %v3644 = vpack.c.bf16 %v3636, %v3635
        %v3645 = vld [vmem:[#allocation12] sm:$0xff]
        %v3646 = vld [vmem:[#allocation12 + $0x8] sm:$0xff]
        %v3647 = vld [vmem:[#allocation12 + $0x10] sm:$0xff]
        %v3648 = vld [vmem:[#allocation12 + $0x18] sm:$0xff]
        %v3649 = vld [vmem:[#allocation12 + $0x20] sm:$0xff]
        %v3650 = vld [vmem:[#allocation12 + $0x28] sm:$0xff]
        %v3651 = vld [vmem:[#allocation12 + $0x30] sm:$0xff]
        %v3652 = vld [vmem:[#allocation12 + $0x38] sm:$0xff]
        %v3653 = vld [vmem:[#allocation12 + $0x40] sm:$0xff]
        %v3654 = vld [vmem:[#allocation12 + $0x48] sm:$0xff]
        %v3655 = vld [vmem:[#allocation12 + $0x50] sm:$0xff]
        %v3656 = vld [vmem:[#allocation12 + $0x58] sm:$0xff]
        %v3657 = vld [vmem:[#allocation12 + $0x60] sm:$0xff]
        %v3658 = vld [vmem:[#allocation12 + $0x68] sm:$0xff]
        %v3659 = vld [vmem:[#allocation12 + $0x70] sm:$0xff]
        %v3660 = vld [vmem:[#allocation12 + $0x78] sm:$0xff]
        %v3661 = vld [vmem:[%s6] sm:$0x3]
        %v3663 = vlaneseq
        %v3664 = vshrl.u32 %v3663, 7
        %v3665 = vsub.s32 0, %v3664
        %v3666 = vrot.slane %v3661, %v3665
        %v3667 = vlaneseq
        %v3668 = vshrl.u32 %v3667, 7
        %v3669 = vsub.s32 1, %v3668
        %v3670 = vrot.slane %v3661, %v3669
        %v3689 = vunpack.c.l.b16 %v3645
        %v3690 = vunpack.c.h.b16 %v3645
        %v3691 = vunpack.c.l.b16 %v3646
        %v3692 = vunpack.c.h.b16 %v3646
        %v3693 = vunpack.c.l.b16 %v3647
        %v3694 = vunpack.c.h.b16 %v3647
        %v3695 = vunpack.c.l.b16 %v3648
        %v3696 = vunpack.c.h.b16 %v3648
        %v3697 = vunpack.c.l.b16 %v3649
        %v3698 = vunpack.c.h.b16 %v3649
        %v3699 = vunpack.c.l.b16 %v3650
        %v3700 = vunpack.c.h.b16 %v3650
        %v3701 = vunpack.c.l.b16 %v3651
        %v3702 = vunpack.c.h.b16 %v3651
        %v3703 = vunpack.c.l.b16 %v3652
        %v3704 = vunpack.c.h.b16 %v3652
        %v3705 = vunpack.c.l.b16 %v3653
        %v3706 = vunpack.c.h.b16 %v3653
        %v3707 = vunpack.c.l.b16 %v3654
        %v3708 = vunpack.c.h.b16 %v3654
        %v3709 = vunpack.c.l.b16 %v3655
        %v3710 = vunpack.c.h.b16 %v3655
        %v3711 = vunpack.c.l.b16 %v3656
        %v3712 = vunpack.c.h.b16 %v3656
        %v3713 = vunpack.c.l.b16 %v3657
        %v3714 = vunpack.c.h.b16 %v3657
        %v3715 = vunpack.c.l.b16 %v3658
        %v3716 = vunpack.c.h.b16 %v3658
        %v3717 = vunpack.c.l.b16 %v3659
        %v3718 = vunpack.c.h.b16 %v3659
        %v3719 = vunpack.c.l.b16 %v3660
        %v3720 = vunpack.c.h.b16 %v3660
        %v3721 = vpack.c.b16 %v3691, %v3689
        %v3722 = vpack.c.b16 %v3692, %v3690
        %v3723 = vpack.c.b16 %v3695, %v3693
        %v3724 = vpack.c.b16 %v3696, %v3694
        %v3725 = vpack.c.b16 %v3699, %v3697
        %v3726 = vpack.c.b16 %v3700, %v3698
        %v3727 = vpack.c.b16 %v3703, %v3701
        %v3728 = vpack.c.b16 %v3704, %v3702
        %v3729 = vpack.c.b16 %v3707, %v3705
        %v3730 = vpack.c.b16 %v3708, %v3706
        %v3731 = vpack.c.b16 %v3711, %v3709
        %v3732 = vpack.c.b16 %v3712, %v3710
        %v3733 = vpack.c.b16 %v3715, %v3713
        %v3734 = vpack.c.b16 %v3716, %v3714
        %v3735 = vpack.c.b16 %v3719, %v3717
        %v3736 = vpack.c.b16 %v3720, %v3718
        %3753 = vmatprep.subr.bf16.mxu0 %v3722
        %3754 = vmatpush1.bf16.msra.mxu0 %v3721
        %3755 = vmatprep.subr.bf16.mxu0 %v3724
        %3756 = vmatpush1.bf16.msra.mxu0 %v3723
        %3757 = vmatprep.subr.bf16.mxu0 %v3726
        %3758 = vmatpush1.bf16.msra.mxu0 %v3725
        %3759 = vmatprep.subr.bf16.mxu0 %v3728
        %3760 = vmatpush1.bf16.msra.mxu0 %v3727
        %3761 = vmatprep.subr.bf16.mxu0 %v3730
        %3762 = vmatpush1.bf16.msra.mxu0 %v3729
        %3763 = vmatprep.subr.bf16.mxu0 %v3732
        %3764 = vmatpush1.bf16.msra.mxu0 %v3731
        %3765 = vmatprep.subr.bf16.mxu0 %v3734
        %3766 = vmatpush1.bf16.msra.mxu0 %v3733
        %3767 = vmatprep.subr.bf16.mxu0 %v3736
        %3768 = vmatpush1.bf16.msra.mxu0 %v3735
        %3769 = vmatprep.subr.bf16.mxu0 0
        %3770 = vmatpush1.bf16.msra.mxu0 0
        %3771 = vmatprep.subr.bf16.mxu0 0
        %3772 = vmatpush1.bf16.msra.mxu0 0
        %3773 = vmatprep.subr.bf16.mxu0 0
        %3774 = vmatpush1.bf16.msra.mxu0 0
        %3775 = vmatprep.subr.bf16.mxu0 0
        %3776 = vmatpush1.bf16.msra.mxu0 0
        %3777 = vmatprep.subr.bf16.mxu0 0
        %3778 = vmatpush1.bf16.msra.mxu0 0
        %3779 = vmatprep.subr.bf16.mxu0 0
        %3780 = vmatpush1.bf16.msra.mxu0 0
        %3781 = vmatprep.subr.bf16.mxu0 0
        %3782 = vmatpush1.bf16.msra.mxu0 0
        %3783 = vmatprep.subr.bf16.mxu0 0
        %3784 = vmatpush1.bf16.msra.mxu0 0
        %3785 = vmatprep.mubr.bf16.mxu0 0
        %3786 = vmatmul.mubr.bf16.gmra.mrb[0].mxu0 %v3637
        %v3787 = vpop.f32.mrb[0].mxu0
        %v3788 = vadd.f32 %v3666, %v3787
        %v3789 = vpop.f32.mrb[0].mxu0
        %v3790 = vadd.f32 %v3670, %v3789
        %v3791 = vpop.f32.mrb[0].mxu0
        %v3792 = vadd.f32 %v3666, %v3791
        %v3793 = vpop.f32.mrb[0].mxu0
        %v3794 = vadd.f32 %v3670, %v3793
        %3795 = vmatprep.mubr.bf16.mxu0 0
        %3796 = vmatmul.mubr.bf16.gmra.mrb[0].mxu0 %v3638
        %v3797 = vpop.f32.mrb[0].mxu0
        %v3798 = vadd.f32 %v3666, %v3797
        %v3799 = vpop.f32.mrb[0].mxu0
        %v3800 = vadd.f32 %v3670, %v3799
        %v3801 = vpop.f32.mrb[0].mxu0
        %v3802 = vadd.f32 %v3666, %v3801
        %v3803 = vpop.f32.mrb[0].mxu0
        %v3804 = vadd.f32 %v3670, %v3803
        %3805 = vmatprep.mubr.bf16.mxu0 0
        %3806 = vmatmul.mubr.bf16.gmra.mrb[0].mxu0 %v3639
        %v3807 = vpop.f32.mrb[0].mxu0
        %v3808 = vadd.f32 %v3666, %v3807
        %v3809 = vpop.f32.mrb[0].mxu0
        %v3810 = vadd.f32 %v3670, %v3809
        %v3811 = vpop.f32.mrb[0].mxu0
        %v3812 = vadd.f32 %v3666, %v3811
        %v3813 = vpop.f32.mrb[0].mxu0
        %v3814 = vadd.f32 %v3670, %v3813
        %3815 = vmatprep.mubr.bf16.mxu0 0
        %3816 = vmatmul.mubr.bf16.gmra.mrb[0].mxu0 %v3640
        %v3817 = vpop.f32.mrb[0].mxu0
        %v3818 = vadd.f32 %v3666, %v3817
        %v3819 = vpop.f32.mrb[0].mxu0
        %v3820 = vadd.f32 %v3670, %v3819
        %v3821 = vpop.f32.mrb[0].mxu0
        %v3822 = vadd.f32 %v3666, %v3821
        %v3823 = vpop.f32.mrb[0].mxu0
        %v3824 = vadd.f32 %v3670, %v3823
        %3825 = vmatprep.mubr.bf16.mxu0 0
        %3826 = vmatmul.mubr.bf16.gmra.mrb[0].mxu0 %v3641
        %v3827 = vpop.f32.mrb[0].mxu0
        %v3828 = vadd.f32 %v3666, %v3827
        %v3829 = vpop.f32.mrb[0].mxu0
        %v3830 = vadd.f32 %v3670, %v3829
        %v3831 = vpop.f32.mrb[0].mxu0
        %v3832 = vadd.f32 %v3666, %v3831
        %v3833 = vpop.f32.mrb[0].mxu0
        %v3834 = vadd.f32 %v3670, %v3833
        %3835 = vmatprep.mubr.bf16.mxu0 0
        %3836 = vmatmul.mubr.bf16.gmra.mrb[0].mxu0 %v3642
        %v3837 = vpop.f32.mrb[0].mxu0
        %v3838 = vadd.f32 %v3666, %v3837
        %v3839 = vpop.f32.mrb[0].mxu0
        %v3840 = vadd.f32 %v3670, %v3839
        %v3841 = vpop.f32.mrb[0].mxu0
        %v3842 = vadd.f32 %v3666, %v3841
        %v3843 = vpop.f32.mrb[0].mxu0
        %v3844 = vadd.f32 %v3670, %v3843
        %3845 = vmatprep.mubr.bf16.mxu0 0
        %3846 = vmatmul.mubr.bf16.gmra.mrb[0].mxu0 %v3643
        %v3847 = vpop.f32.mrb[0].mxu0
        %v3848 = vadd.f32 %v3666, %v3847
        %v3849 = vpop.f32.mrb[0].mxu0
        %v3850 = vadd.f32 %v3670, %v3849
        %v3851 = vpop.f32.mrb[0].mxu0
        %v3852 = vadd.f32 %v3666, %v3851
        %v3853 = vpop.f32.mrb[0].mxu0
        %v3854 = vadd.f32 %v3670, %v3853
        %3855 = vmatprep.mubr.bf16.mxu0 0
        %3856 = vmatmul.mubr.bf16.gmra.mrb[0].mxu0 %v3644
        %v3857 = vpop.f32.mrb[0].mxu0
        %v3858 = vadd.f32 %v3666, %v3857
        %v3859 = vpop.f32.mrb[0].mxu0
        %v3860 = vadd.f32 %v3670, %v3859
        %v3861 = vpop.f32.mrb[0].mxu0
        %v3862 = vadd.f32 %v3666, %v3861
        %v3863 = vpop.f32.mrb[0].mxu0
        %v3864 = vadd.f32 %v3670, %v3863
        %3865 = vdwg.mxu0
        %v3866 = vmax.f32 %v3788, 0.0
        %v3867 = vmax.f32 %v3790, 0.0
        %v3868 = vmax.f32 %v3792, 0.0
        %v3869 = vmax.f32 %v3794, 0.0
        %v3870 = vmax.f32 %v3798, 0.0
        %v3871 = vmax.f32 %v3800, 0.0
        %v3872 = vmax.f32 %v3802, 0.0
        %v3873 = vmax.f32 %v3804, 0.0
        %v3874 = vmax.f32 %v3808, 0.0
        %v3875 = vmax.f32 %v3810, 0.0
        %v3876 = vmax.f32 %v3812, 0.0
        %v3877 = vmax.f32 %v3814, 0.0
        %v3878 = vmax.f32 %v3818, 0.0
        %v3879 = vmax.f32 %v3820, 0.0
        %v3880 = vmax.f32 %v3822, 0.0
        %v3881 = vmax.f32 %v3824, 0.0
        %v3882 = vmax.f32 %v3828, 0.0
        %v3883 = vmax.f32 %v3830, 0.0
        %v3884 = vmax.f32 %v3832, 0.0
        %v3885 = vmax.f32 %v3834, 0.0
        %v3886 = vmax.f32 %v3838, 0.0
        %v3887 = vmax.f32 %v3840, 0.0
        %v3888 = vmax.f32 %v3842, 0.0
        %v3889 = vmax.f32 %v3844, 0.0
        %v3890 = vmax.f32 %v3848, 0.0
        %v3891 = vmax.f32 %v3850, 0.0
        %v3892 = vmax.f32 %v3852, 0.0
        %v3893 = vmax.f32 %v3854, 0.0
        %v3894 = vmax.f32 %v3858, 0.0
        %v3895 = vmax.f32 %v3860, 0.0
        %v3896 = vmax.f32 %v3862, 0.0
        %v3897 = vmax.f32 %v3864, 0.0
        %v3898 = vpack.c.bf16 %v3868, %v3866
        %v3899 = vpack.c.bf16 %v3869, %v3867
        %v3900 = vpack.c.bf16 %v3872, %v3870
        %v3901 = vpack.c.bf16 %v3873, %v3871
        %v3902 = vpack.c.bf16 %v3876, %v3874
        %v3903 = vpack.c.bf16 %v3877, %v3875
        %v3904 = vpack.c.bf16 %v3880, %v3878
        %v3905 = vpack.c.bf16 %v3881, %v3879
        %v3906 = vpack.c.bf16 %v3884, %v3882
        %v3907 = vpack.c.bf16 %v3885, %v3883
        %v3908 = vpack.c.bf16 %v3888, %v3886
        %v3909 = vpack.c.bf16 %v3889, %v3887
        %v3910 = vpack.c.bf16 %v3892, %v3890
        %v3911 = vpack.c.bf16 %v3893, %v3891
        %v3912 = vpack.c.bf16 %v3896, %v3894
        %v3913 = vpack.c.bf16 %v3897, %v3895
        %v3914 = vld [vmem:[#allocation14] sm:$0xf]
        %v3915 = vld [vmem:[#allocation14 + $0x4] sm:$0xf]
        %v3916 = vld [vmem:[#allocation14 + $0x8] sm:$0xf]
        %v3917 = vld [vmem:[#allocation14 + $0xc] sm:$0xf]
        %v3918 = vld [vmem:[#allocation14 + $0x10] sm:$0xf]
        %v3919 = vld [vmem:[#allocation14 + $0x14] sm:$0xf]
        %v3920 = vld [vmem:[#allocation14 + $0x18] sm:$0xf]
        %v3921 = vld [vmem:[#allocation14 + $0x1c] sm:$0xf]
        %v3922 = vld [vmem:[#allocation14 + $0x20] sm:$0xf]
        %v3923 = vld [vmem:[#allocation14 + $0x24] sm:$0xf]
        %v3924 = vld [vmem:[#allocation14 + $0x28] sm:$0xf]
        %v3925 = vld [vmem:[#allocation14 + $0x2c] sm:$0xf]
        %v3926 = vld [vmem:[#allocation14 + $0x30] sm:$0xf]
        %v3927 = vld [vmem:[#allocation14 + $0x34] sm:$0xf]
        %v3928 = vld [vmem:[#allocation14 + $0x38] sm:$0xf]
        %v3929 = vld [vmem:[#allocation14 + $0x3c] sm:$0xf]
        %v3930 = vld [vmem:[#allocation14 + $0x40] sm:$0xf]
        %v3931 = vld [vmem:[#allocation14 + $0x44] sm:$0xf]
        %v3932 = vld [vmem:[#allocation14 + $0x48] sm:$0xf]
        %v3933 = vld [vmem:[#allocation14 + $0x4c] sm:$0xf]
        %v3934 = vld [vmem:[#allocation14 + $0x50] sm:$0xf]
        %v3935 = vld [vmem:[#allocation14 + $0x54] sm:$0xf]
        %v3936 = vld [vmem:[#allocation14 + $0x58] sm:$0xf]
        %v3937 = vld [vmem:[#allocation14 + $0x5c] sm:$0xf]
        %v3938 = vld [vmem:[#allocation14 + $0x60] sm:$0xf]
        %v3939 = vld [vmem:[#allocation14 + $0x64] sm:$0xf]
        %v3940 = vld [vmem:[#allocation14 + $0x68] sm:$0xf]
        %v3941 = vld [vmem:[#allocation14 + $0x6c] sm:$0xf]
        %v3942 = vld [vmem:[#allocation14 + $0x70] sm:$0xf]
        %v3943 = vld [vmem:[#allocation14 + $0x74] sm:$0xf]
        %v3944 = vld [vmem:[#allocation14 + $0x78] sm:$0xf]
        %v3945 = vld [vmem:[#allocation14 + $0x7c] sm:$0xf]
        %v3946 = vld [vmem:[%s8] sm:$0x1]
        %v3948 = vlaneseq
        %v3949 = vshrl.u32 %v3948, 7
        %v3950 = vsub.s32 0, %v3949
        %v3951 = vrot.slane %v3946, %v3950
        %v3985 = vunpack.c.l.b16 %v3914
        %v3986 = vunpack.c.l.b16 %v3915
        %v3987 = vunpack.c.l.b16 %v3916
        %v3988 = vunpack.c.l.b16 %v3917
        %v3989 = vunpack.c.l.b16 %v3918
        %v3990 = vunpack.c.l.b16 %v3919
        %v3991 = vunpack.c.l.b16 %v3920
        %v3992 = vunpack.c.l.b16 %v3921
        %v3993 = vunpack.c.l.b16 %v3922
        %v3994 = vunpack.c.l.b16 %v3923
        %v3995 = vunpack.c.l.b16 %v3924
        %v3996 = vunpack.c.l.b16 %v3925
        %v3997 = vunpack.c.l.b16 %v3926
        %v3998 = vunpack.c.l.b16 %v3927
        %v3999 = vunpack.c.l.b16 %v3928
        %v4000 = vunpack.c.l.b16 %v3929
        %v4001 = vunpack.c.l.b16 %v3930
        %v4002 = vunpack.c.l.b16 %v3931
        %v4003 = vunpack.c.l.b16 %v3932
        %v4004 = vunpack.c.l.b16 %v3933
        %v4005 = vunpack.c.l.b16 %v3934
        %v4006 = vunpack.c.l.b16 %v3935
        %v4007 = vunpack.c.l.b16 %v3936
        %v4008 = vunpack.c.l.b16 %v3937
        %v4009 = vunpack.c.l.b16 %v3938
        %v4010 = vunpack.c.l.b16 %v3939
        %v4011 = vunpack.c.l.b16 %v3940
        %v4012 = vunpack.c.l.b16 %v3941
        %v4013 = vunpack.c.l.b16 %v3942
        %v4014 = vunpack.c.l.b16 %v3943
        %v4015 = vunpack.c.l.b16 %v3944
        %v4016 = vunpack.c.l.b16 %v3945
        %v4017 = vpack.c.b16 %v3986, %v3985
        %v4018 = vpack.c.b16 %v3988, %v3987
        %v4019 = vpack.c.b16 %v3990, %v3989
        %v4020 = vpack.c.b16 %v3992, %v3991
        %v4021 = vpack.c.b16 %v3994, %v3993
        %v4022 = vpack.c.b16 %v3996, %v3995
        %v4023 = vpack.c.b16 %v3998, %v3997
        %v4024 = vpack.c.b16 %v4000, %v3999
        %v4025 = vpack.c.b16 %v4002, %v4001
        %v4026 = vpack.c.b16 %v4004, %v4003
        %v4027 = vpack.c.b16 %v4006, %v4005
        %v4028 = vpack.c.b16 %v4008, %v4007
        %v4029 = vpack.c.b16 %v4010, %v4009
        %v4030 = vpack.c.b16 %v4012, %v4011
        %v4031 = vpack.c.b16 %v4014, %v4013
        %v4032 = vpack.c.b16 %v4016, %v4015
        %4049 = vmatprep.subr.bf16.mxu0 0
        %4050 = vmatpush1.bf16.msra.mxu0 %v4017
        %4051 = vmatprep.subr.bf16.mxu0 0
        %4052 = vmatpush1.bf16.msra.mxu0 %v4018
        %4053 = vmatprep.subr.bf16.mxu0 0
        %4054 = vmatpush1.bf16.msra.mxu0 %v4019
        %4055 = vmatprep.subr.bf16.mxu0 0
        %4056 = vmatpush1.bf16.msra.mxu0 %v4020
        %4057 = vmatprep.subr.bf16.mxu0 0
        %4058 = vmatpush1.bf16.msra.mxu0 %v4021
        %4059 = vmatprep.subr.bf16.mxu0 0
        %4060 = vmatpush1.bf16.msra.mxu0 %v4022
        %4061 = vmatprep.subr.bf16.mxu0 0
        %4062 = vmatpush1.bf16.msra.mxu0 %v4023
        %4063 = vmatprep.subr.bf16.mxu0 0
        %4064 = vmatpush1.bf16.msra.mxu0 %v4024
        %4065 = vmatprep.subr.bf16.mxu0 0
        %4066 = vmatpush1.bf16.msra.mxu0 %v4025
        %4067 = vmatprep.subr.bf16.mxu0 0
        %4068 = vmatpush1.bf16.msra.mxu0 %v4026
        %4069 = vmatprep.subr.bf16.mxu0 0
        %4070 = vmatpush1.bf16.msra.mxu0 %v4027
        %4071 = vmatprep.subr.bf16.mxu0 0
        %4072 = vmatpush1.bf16.msra.mxu0 %v4028
        %4073 = vmatprep.subr.bf16.mxu0 0
        %4074 = vmatpush1.bf16.msra.mxu0 %v4029
        %4075 = vmatprep.subr.bf16.mxu0 0
        %4076 = vmatpush1.bf16.msra.mxu0 %v4030
        %4077 = vmatprep.subr.bf16.mxu0 0
        %4078 = vmatpush1.bf16.msra.mxu0 %v4031
        %4079 = vmatprep.subr.bf16.mxu0 0
        %4080 = vmatpush1.bf16.msra.mxu0 %v4032
        %4081 = vmatprep.mubr.bf16.mxu0 %v3899
        %4082 = vmatmul.mubr.bf16.gmra.mrb[0].mxu0 %v3898
        %v4083 = vpop.f32.mrb[0].mxu0
        %v4084 = vadd.f32 %v3951, %v4083
        %v4085 = vpop.f32.mrb[0].mxu0
        %v4086 = vpop.f32.mrb[0].mxu0
        %v4087 = vadd.f32 %v3951, %v4086
        %v4088 = vpop.f32.mrb[0].mxu0
        %4089 = vmatprep.mubr.bf16.mxu0 %v3901
        %4090 = vmatmul.mubr.bf16.gmra.mrb[0].mxu0 %v3900
        %v4091 = vpop.f32.mrb[0].mxu0
        %v4092 = vadd.f32 %v3951, %v4091
        %v4093 = vpop.f32.mrb[0].mxu0
        %v4094 = vpop.f32.mrb[0].mxu0
        %v4095 = vadd.f32 %v3951, %v4094
        %v4096 = vpop.f32.mrb[0].mxu0
        %4097 = vmatprep.mubr.bf16.mxu0 %v3903
        %4098 = vmatmul.mubr.bf16.gmra.mrb[0].mxu0 %v3902
        %v4099 = vpop.f32.mrb[0].mxu0
        %v4100 = vadd.f32 %v3951, %v4099
        %v4101 = vpop.f32.mrb[0].mxu0
        %v4102 = vpop.f32.mrb[0].mxu0
        %v4103 = vadd.f32 %v3951, %v4102
        %v4104 = vpop.f32.mrb[0].mxu0
        %4105 = vmatprep.mubr.bf16.mxu0 %v3905
        %4106 = vmatmul.mubr.bf16.gmra.mrb[0].mxu0 %v3904
        %v4107 = vpop.f32.mrb[0].mxu0
        %v4108 = vadd.f32 %v3951, %v4107
        %v4109 = vpop.f32.mrb[0].mxu0
        %v4110 = vpop.f32.mrb[0].mxu0
        %v4111 = vadd.f32 %v3951, %v4110
        %v4112 = vpop.f32.mrb[0].mxu0
        %4113 = vmatprep.mubr.bf16.mxu0 %v3907
        %4114 = vmatmul.mubr.bf16.gmra.mrb[0].mxu0 %v3906
        %v4115 = vpop.f32.mrb[0].mxu0
        %v4116 = vadd.f32 %v3951, %v4115
        %v4117 = vpop.f32.mrb[0].mxu0
        %v4118 = vpop.f32.mrb[0].mxu0
        %v4119 = vadd.f32 %v3951, %v4118
        %v4120 = vpop.f32.mrb[0].mxu0
        %4121 = vmatprep.mubr.bf16.mxu0 %v3909
        %4122 = vmatmul.mubr.bf16.gmra.mrb[0].mxu0 %v3908
        %v4123 = vpop.f32.mrb[0].mxu0
        %v4124 = vadd.f32 %v3951, %v4123
        %v4125 = vpop.f32.mrb[0].mxu0
        %v4126 = vpop.f32.mrb[0].mxu0
        %v4127 = vadd.f32 %v3951, %v4126
        %v4128 = vpop.f32.mrb[0].mxu0
        %4129 = vmatprep.mubr.bf16.mxu0 %v3911
        %4130 = vmatmul.mubr.bf16.gmra.mrb[0].mxu0 %v3910
        %v4131 = vpop.f32.mrb[0].mxu0
        %v4132 = vadd.f32 %v3951, %v4131
        %v4133 = vpop.f32.mrb[0].mxu0
        %v4134 = vpop.f32.mrb[0].mxu0
        %v4135 = vadd.f32 %v3951, %v4134
        %v4136 = vpop.f32.mrb[0].mxu0
        %4137 = vmatprep.mubr.bf16.mxu0 %v3913
        %4138 = vmatmul.mubr.bf16.gmra.mrb[0].mxu0 %v3912
        %v4139 = vpop.f32.mrb[0].mxu0
        %v4140 = vadd.f32 %v3951, %v4139
        %v4141 = vpop.f32.mrb[0].mxu0
        %v4142 = vpop.f32.mrb[0].mxu0
        %v4143 = vadd.f32 %v3951, %v4142
        %v4144 = vpop.f32.mrb[0].mxu0
        %4145 = vdwg.mxu0
        %v4146 = vadd.f32 %v3621, %v4084
        %v4147 = vadd.f32 %v3622, %v4087
        %v4148 = vadd.f32 %v3623, %v4092
        %v4149 = vadd.f32 %v3624, %v4095
        %v4150 = vadd.f32 %v3625, %v4100
        %v4151 = vadd.f32 %v3626, %v4103
        %v4152 = vadd.f32 %v3627, %v4108
        %v4153 = vadd.f32 %v3628, %v4111
        %v4154 = vadd.f32 %v3629, %v4116
        %v4155 = vadd.f32 %v3630, %v4119
        %v4156 = vadd.f32 %v3631, %v4124
        %v4157 = vadd.f32 %v3632, %v4127
        %v4158 = vadd.f32 %v3633, %v4132
        %v4159 = vadd.f32 %v3634, %v4135
        %v4160 = vadd.f32 %v3635, %v4140
        %v4161 = vadd.f32 %v3636, %v4143
        %s4162 = sld [smem:[#allocation15 + $0x2]]
        %s4163 = sld [smem:[#allocation15 + $0x3]]
        %4164 = vadd.xlane.f32.xlu0 %v4146
        %v4165 = vpop.xlane.xlu0 %4164
        %4166 = vadd.xlane.f32.xlu0 %v4147
        %v4167 = vpop.xlane.xlu0 %4166
        %4168 = vadd.xlane.f32.xlu0 %v4148
        %v4169 = vpop.xlane.xlu0 %4168
        %4170 = vadd.xlane.f32.xlu0 %v4149
        %v4171 = vpop.xlane.xlu0 %4170
        %4172 = vadd.xlane.f32.xlu0 %v4150
        %v4173 = vpop.xlane.xlu0 %4172
        %4174 = vadd.xlane.f32.xlu0 %v4151
        %v4175 = vpop.xlane.xlu0 %4174
        %4176 = vadd.xlane.f32.xlu0 %v4152
        %v4177 = vpop.xlane.xlu0 %4176
        %4178 = vadd.xlane.f32.xlu0 %v4153
        %v4179 = vpop.xlane.xlu0 %4178
        %4180 = vadd.xlane.f32.xlu0 %v4154
        %v4181 = vpop.xlane.xlu0 %4180
        %4182 = vadd.xlane.f32.xlu0 %v4155
        %v4183 = vpop.xlane.xlu0 %4182
        %4184 = vadd.xlane.f32.xlu0 %v4156
        %v4185 = vpop.xlane.xlu0 %4184
        %4186 = vadd.xlane.f32.xlu0 %v4157
        %v4187 = vpop.xlane.xlu0 %4186
        %4188 = vadd.xlane.f32.xlu0 %v4158
        %v4189 = vpop.xlane.xlu0 %4188
        %4190 = vadd.xlane.f32.xlu0 %v4159
        %v4191 = vpop.xlane.xlu0 %4190
        %4192 = vadd.xlane.f32.xlu0 %v4160
        %v4193 = vpop.xlane.xlu0 %4192
        %4194 = vadd.xlane.f32.xlu0 %v4161
        %v4195 = vpop.xlane.xlu0 %4194
        %v4196 = vmul.f32 %v4165, %v3458
        %v4197 = vmul.f32 %v4167, %v3458
        %v4198 = vmul.f32 %v4169, %v3458
        %v4199 = vmul.f32 %v4171, %v3458
        %v4200 = vmul.f32 %v4173, %v3458
        %v4201 = vmul.f32 %v4175, %v3458
        %v4202 = vmul.f32 %v4177, %v3458
        %v4203 = vmul.f32 %v4179, %v3458
        %v4204 = vmul.f32 %v4181, %v3458
        %v4205 = vmul.f32 %v4183, %v3458
        %v4206 = vmul.f32 %v4185, %v3458
        %v4207 = vmul.f32 %v4187, %v3458
        %v4208 = vmul.f32 %v4189, %v3458
        %v4209 = vmul.f32 %v4191, %v3458
        %v4210 = vmul.f32 %v4193, %v3458
        %v4211 = vmul.f32 %v4195, %v3458
        %v4212 = vsub.f32 %v4146, %v4196
        %v4213 = vsub.f32 %v4147, %v4197
        %v4214 = vsub.f32 %v4148, %v4198
        %v4215 = vsub.f32 %v4149, %v4199
        %v4216 = vsub.f32 %v4150, %v4200
        %v4217 = vsub.f32 %v4151, %v4201
        %v4218 = vsub.f32 %v4152, %v4202
        %v4219 = vsub.f32 %v4153, %v4203
        %v4220 = vsub.f32 %v4154, %v4204
        %v4221 = vsub.f32 %v4155, %v4205
        %v4222 = vsub.f32 %v4156, %v4206
        %v4223 = vsub.f32 %v4157, %v4207
        %v4224 = vsub.f32 %v4158, %v4208
        %v4225 = vsub.f32 %v4159, %v4209
        %v4226 = vsub.f32 %v4160, %v4210
        %v4227 = vsub.f32 %v4161, %v4211
        %v4228 = vmul.f32 %v4212, %v4212
        %v4229 = vmul.f32 %v4213, %v4213
        %v4230 = vmul.f32 %v4214, %v4214
        %v4231 = vmul.f32 %v4215, %v4215
        %v4232 = vmul.f32 %v4216, %v4216
        %v4233 = vmul.f32 %v4217, %v4217
        %v4234 = vmul.f32 %v4218, %v4218
        %v4235 = vmul.f32 %v4219, %v4219
        %v4236 = vmul.f32 %v4220, %v4220
        %v4237 = vmul.f32 %v4221, %v4221
        %v4238 = vmul.f32 %v4222, %v4222
        %v4239 = vmul.f32 %v4223, %v4223
        %v4240 = vmul.f32 %v4224, %v4224
        %v4241 = vmul.f32 %v4225, %v4225
        %v4242 = vmul.f32 %v4226, %v4226
        %v4243 = vmul.f32 %v4227, %v4227
        %4244 = vadd.xlane.f32.xlu0 %v4228
        %v4245 = vpop.xlane.xlu0 %4244
        %4246 = vadd.xlane.f32.xlu0 %v4229
        %v4247 = vpop.xlane.xlu0 %4246
        %4248 = vadd.xlane.f32.xlu0 %v4230
        %v4249 = vpop.xlane.xlu0 %4248
        %4250 = vadd.xlane.f32.xlu0 %v4231
        %v4251 = vpop.xlane.xlu0 %4250
        %4252 = vadd.xlane.f32.xlu0 %v4232
        %v4253 = vpop.xlane.xlu0 %4252
        %4254 = vadd.xlane.f32.xlu0 %v4233
        %v4255 = vpop.xlane.xlu0 %4254
        %4256 = vadd.xlane.f32.xlu0 %v4234
        %v4257 = vpop.xlane.xlu0 %4256
        %4258 = vadd.xlane.f32.xlu0 %v4235
        %v4259 = vpop.xlane.xlu0 %4258
        %4260 = vadd.xlane.f32.xlu0 %v4236
        %v4261 = vpop.xlane.xlu0 %4260
        %4262 = vadd.xlane.f32.xlu0 %v4237
        %v4263 = vpop.xlane.xlu0 %4262
        %4264 = vadd.xlane.f32.xlu0 %v4238
        %v4265 = vpop.xlane.xlu0 %4264
        %4266 = vadd.xlane.f32.xlu0 %v4239
        %v4267 = vpop.xlane.xlu0 %4266
        %4268 = vadd.xlane.f32.xlu0 %v4240
        %v4269 = vpop.xlane.xlu0 %4268
        %4270 = vadd.xlane.f32.xlu0 %v4241
        %v4271 = vpop.xlane.xlu0 %4270
        %4272 = vadd.xlane.f32.xlu0 %v4242
        %v4273 = vpop.xlane.xlu0 %4272
        %4274 = vadd.xlane.f32.xlu0 %v4243
        %v4275 = vpop.xlane.xlu0 %4274
        %v4276 = vmul.f32 %v4245, 0.007874016
        %v4277 = vmul.f32 %v4247, 0.007874016
        %v4278 = vmul.f32 %v4249, 0.007874016
        %v4279 = vmul.f32 %v4251, 0.007874016
        %v4280 = vmul.f32 %v4253, 0.007874016
        %v4281 = vmul.f32 %v4255, 0.007874016
        %v4282 = vmul.f32 %v4257, 0.007874016
        %v4283 = vmul.f32 %v4259, 0.007874016
        %v4284 = vmul.f32 %v4261, 0.007874016
        %v4285 = vmul.f32 %v4263, 0.007874016
        %v4286 = vmul.f32 %v4265, 0.007874016
        %v4287 = vmul.f32 %v4267, 0.007874016
        %v4288 = vmul.f32 %v4269, 0.007874016
        %v4289 = vmul.f32 %v4271, 0.007874016
        %v4290 = vmul.f32 %v4273, 0.007874016
        %v4291 = vmul.f32 %v4275, 0.007874016
        %v4292 = vadd.f32 %v4276, 1e-05
        %v4293 = vadd.f32 %v4277, 1e-05
        %v4294 = vadd.f32 %v4278, 1e-05
        %v4295 = vadd.f32 %v4279, 1e-05
        %v4296 = vadd.f32 %v4280, 1e-05
        %v4297 = vadd.f32 %v4281, 1e-05
        %v4298 = vadd.f32 %v4282, 1e-05
        %v4299 = vadd.f32 %v4283, 1e-05
        %v4300 = vadd.f32 %v4284, 1e-05
        %v4301 = vadd.f32 %v4285, 1e-05
        %v4302 = vadd.f32 %v4286, 1e-05
        %v4303 = vadd.f32 %v4287, 1e-05
        %v4304 = vadd.f32 %v4288, 1e-05
        %v4305 = vadd.f32 %v4289, 1e-05
        %v4306 = vadd.f32 %v4290, 1e-05
        %v4307 = vadd.f32 %v4291, 1e-05
        %v4308 = vrsqrt.pop %v4292
        %v4309 = vrsqrt.pop %v4293
        %v4310 = vrsqrt.pop %v4294
        %v4311 = vrsqrt.pop %v4295
        %v4312 = vrsqrt.pop %v4296
        %v4313 = vrsqrt.pop %v4297
        %v4314 = vrsqrt.pop %v4298
        %v4315 = vrsqrt.pop %v4299
        %v4316 = vrsqrt.pop %v4300
        %v4317 = vrsqrt.pop %v4301
        %v4318 = vrsqrt.pop %v4302
        %v4319 = vrsqrt.pop %v4303
        %v4320 = vrsqrt.pop %v4304
        %v4321 = vrsqrt.pop %v4305
        %v4322 = vrsqrt.pop %v4306
        %v4323 = vrsqrt.pop %v4307
        %v4324 = vstv %s4162
        %v4325 = vmul.f32 %v4324, %v4308
        %v4326 = vmul.f32 %v4324, %v4309
        %v4327 = vmul.f32 %v4324, %v4310
        %v4328 = vmul.f32 %v4324, %v4311
        %v4329 = vmul.f32 %v4324, %v4312
        %v4330 = vmul.f32 %v4324, %v4313
        %v4331 = vmul.f32 %v4324, %v4314
        %v4332 = vmul.f32 %v4324, %v4315
        %v4333 = vmul.f32 %v4324, %v4316
        %v4334 = vmul.f32 %v4324, %v4317
        %v4335 = vmul.f32 %v4324, %v4318
        %v4336 = vmul.f32 %v4324, %v4319
        %v4337 = vmul.f32 %v4324, %v4320
        %v4338 = vmul.f32 %v4324, %v4321
        %v4339 = vmul.f32 %v4324, %v4322
        %v4340 = vmul.f32 %v4324, %v4323
        %v4341 = vmul.f32 %v4212, %v4325
        %v4342 = vmul.f32 %v4213, %v4326
        %v4343 = vmul.f32 %v4214, %v4327
        %v4344 = vmul.f32 %v4215, %v4328
        %v4345 = vmul.f32 %v4216, %v4329
        %v4346 = vmul.f32 %v4217, %v4330
        %v4347 = vmul.f32 %v4218, %v4331
        %v4348 = vmul.f32 %v4219, %v4332
        %v4349 = vmul.f32 %v4220, %v4333
        %v4350 = vmul.f32 %v4221, %v4334
        %v4351 = vmul.f32 %v4222, %v4335
        %v4352 = vmul.f32 %v4223, %v4336
        %v4353 = vmul.f32 %v4224, %v4337
        %v4354 = vmul.f32 %v4225, %v4338
        %v4355 = vmul.f32 %v4226, %v4339
        %v4356 = vmul.f32 %v4227, %v4340
        %v4357 = vstv %s4163
        %v4358 = vadd.f32 %v4341, %v4357
        %v4359 = vadd.f32 %v4342, %v4357
        %v4360 = vadd.f32 %v4343, %v4357
        %v4361 = vadd.f32 %v4344, %v4357
        %v4362 = vadd.f32 %v4345, %v4357
        %v4363 = vadd.f32 %v4346, %v4357
        %v4364 = vadd.f32 %v4347, %v4357
        %v4365 = vadd.f32 %v4348, %v4357
        %v4366 = vadd.f32 %v4349, %v4357
        %v4367 = vadd.f32 %v4350, %v4357
        %v4368 = vadd.f32 %v4351, %v4357
        %v4369 = vadd.f32 %v4352, %v4357
        %v4370 = vadd.f32 %v4353, %v4357
        %v4371 = vadd.f32 %v4354, %v4357
        %v4372 = vadd.f32 %v4355, %v4357
        %v4373 = vadd.f32 %v4356, %v4357
        %4374 = vst [vmem:[%s478] sm:$0xff] %v4358
        %4375 = vst [vmem:[%s478 + $0x8] sm:$0xff] %v4359
        %4376 = vst [vmem:[%s478 + $0x10] sm:$0xff] %v4360
        %4377 = vst [vmem:[%s478 + $0x18] sm:$0xff] %v4361
        %4378 = vst [vmem:[%s478 + $0x20] sm:$0xff] %v4362
        %4379 = vst [vmem:[%s478 + $0x28] sm:$0xff] %v4363
        %4380 = vst [vmem:[%s478 + $0x30] sm:$0xff] %v4364
        %4381 = vst [vmem:[%s478 + $0x38] sm:$0xff] %v4365
        %4382 = vst [vmem:[%s478 + $0x40] sm:$0xff] %v4366
        %4383 = vst [vmem:[%s478 + $0x48] sm:$0xff] %v4367
        %4384 = vst [vmem:[%s478 + $0x50] sm:$0xff] %v4368
        %4385 = vst [vmem:[%s478 + $0x58] sm:$0xff] %v4369
        %4386 = vst [vmem:[%s478 + $0x60] sm:$0xff] %v4370
        %4387 = vst [vmem:[%s478 + $0x68] sm:$0xff] %v4371
        %4388 = vst [vmem:[%s478 + $0x70] sm:$0xff] %v4372
        %4389 = vst [vmem:[%s478 + $0x78] sm:$0xff] %v4373
        %s4390 = sand.u32 %s254, 1
        %s4391 = scalar_lea.sflag [#allocation4], %s4390
        %s4392 = sand.u32 %s254, 1
        %s4393 = smul.addr %s4392, 128
        %s4394 = scalar_lea.vmem [#allocation16], %s4393
        // Predicated region
        $region93: #{tpu_custom_call.1} parent=59 // pred_check
          %p4395 = pneg %p264
        $region94: #{tpu_custom_call.1} parent=59 // pred_check_branch
          %4397 = sbr.rel (%p4395) target = $region96
        $region95: #{tpu_custom_call.1} parent=59 // pred_region
          %s4399 = ssub.s32 2048, 2048
          %4400 = vsyncadd %s4391, %s4399
          %s4401 = smul.addr %s31, 16
          %s4402 = smul.addr %s4401, 128
          %s4403 = scalar_lea.hbm %s10, %s4402
          %s4404 = sshll.u32 %s4394, 4
          %s4405 = int_to_ptr.vmem [resolvable:$true] %s4404
          %4410 = dma.vmem_to_hbm [thread:$0]  %s4405, 2048, %s4403, %s4391, 128, 128, 8
        $region96: #{tpu_custom_call.1} parent=59 // pred_fallthru
          _
      $region60: #{tpu_custom_call.1} parent=5 // pred_fallthru
        _
      %p4411 = scmp.le.s32.totalorder 2, %s26
      // Predicated region
      $region97: #{tpu_custom_call.1} parent=5 // pred_check
        %p4412 = pneg %p4411
      $region98: #{tpu_custom_call.1} parent=5 // pred_check_branch
        %4414 = sbr.rel (%p4412) target = $region100
      $region99: #{tpu_custom_call.1} parent=5 // pred_region
        %s4415 = ssub.s32 %s26, 2
        // Predicated region
        $region101: #{tpu_custom_call.1} parent=99 // pred_check
          %p4416 = pneg %p270
        $region102: #{tpu_custom_call.1} parent=99 // pred_check_branch
          %4418 = sbr.rel (%p4416) target = $region104
        $region103: #{tpu_custom_call.1} parent=99 // pred_region
          %s4419 = sand.u32 %s255, 1
          %s4420 = scalar_lea.sflag [#allocation4], %s4419
          %s4421 = sand.u32 %s255, 1
          %s4422 = smul.addr %s4421, 128
          %s4423 = scalar_lea.vmem [#allocation16], %s4422
          %4424 = dma.done %s4420, 2048
        $region104: #{tpu_custom_call.1} parent=99 // pred_fallthru
          _
      $region100: #{tpu_custom_call.1} parent=5 // pred_fallthru
        _
    $region6: #{tpu_custom_call.1} parent=1 // loop_footer
      %s30 = sadd.s32 1, %s26
    $region7: #{tpu_custom_call.1} parent=1 // loop_footer_branch
      %25 = sbr.rel target = $region3
    $region8: #{tpu_custom_call.1} parent=1 // loop_exit
      _
    %4425 = vsyncpa [#allocation3], 1
    %s4426 = scalar_lea.sflag [#allocation3], 1
    %4427 = vsyncpa %s4426, 1
    %4428 = vsyncpa [#allocation7], 1
    %4429 = vsyncpa [#allocation10], 1
    %4430 = vsyncpa [#allocation13], 1
    %4431 = vsyncpa [#allocation4], 1
    %s4432 = scalar_lea.sflag [#allocation4], 1
    %4433 = vsyncpa %s4432, 1
    %4434 = vsyncpa [#allocation5], 1
    %s4435 = scalar_lea.sflag [#allocation5], 1
    %4436 = vsyncpa %s4435, 1

</llo_original>
